<compile_context>
chip_gen: v6e
topology: v6e:2x2x1
jax: 0.10.0
libtpu: 0.0.40
codegen_flags: <defaults>
</compile_context>

<pallas_src>
from functools import partial

import jax
import jax.numpy as jnp
from jax.experimental import pallas as pl
from jax.experimental.pallas import tpu as pltpu


# ----------------------------------------------------------------------------
# tiling helper
# ----------------------------------------------------------------------------
def _pick_tm(M, tm_max=256):
    """Row-tile size that avoids any padding in the common case."""
    if M <= tm_max:
        return M                              # single tile == full dim (always legal)
    for t in (tm_max, 128, 64, 32, 16, 8):
        if M % t == 0:
            return t
    return tm_max                             # fallback: caller pads + masks stats


# ----------------------------------------------------------------------------
# Pallas kernels
# ----------------------------------------------------------------------------
def _mm_bias_kernel(x_ref, w_ref, b_ref, y_ref):
    acc = jnp.dot(x_ref[...], w_ref[...], preferred_element_type=jnp.float32)
    y_ref[...] = acc + b_ref[...]


def _mm_bias_stats_kernel(x_ref, w_ref, b_ref, y_ref, st_ref, *, rows_valid, tm):
    # y = x @ w + b, plus per-tile column sum / sum-of-squares for BatchNorm.
    acc = jnp.dot(x_ref[...], w_ref[...], preferred_element_type=jnp.float32)
    y = acc + b_ref[...]
    y_ref[...] = y
    if rows_valid is not None:                # static: only when M was padded
        valid = rows_valid - pl.program_id(0) * tm
        row = jax.lax.broadcasted_iota(jnp.int32, y.shape, 0)
        ym = jnp.where(row < valid, y, 0.0)
    else:
        ym = y
    s1 = jnp.sum(ym, axis=0, keepdims=True)       # (1, N) column sums
    s2 = jnp.sum(ym * y, axis=0, keepdims=True)   # (1, N) column sums of squares
    st = jnp.concatenate([s1, s2], axis=0)        # (2, N)
    st_ref[...] = st.reshape(1, 2, st.shape[1])


def _bn_act_kernel(y_ref, sc_ref, sh_ref, o_ref, *, relu):
    o = y_ref[...] * sc_ref[...] + sh_ref[...]
    if relu:
        o = jnp.maximum(o, 0.0)
    o_ref[...] = o.astype(o_ref.dtype)


# ----------------------------------------------------------------------------
# Pallas wrappers
# ----------------------------------------------------------------------------
def pallas_matmul_bias(x, w, b, *, with_stats=False, tm_max=256):
    """y = x @ w + b (bf16 operands, f32 accumulate).  If with_stats, also
    returns (ntiles, 2, N) per-tile column sums / sums-of-squares of y."""
    M, K = x.shape
    N = w.shape[1]
    tm = _pick_tm(M, tm_max)
    ntiles = pl.cdiv(M, tm)
    Mp = ntiles * tm
    padded = Mp != M
    xp = jnp.pad(x, ((0, Mp - M), (0, 0))) if padded else x

    x_spec = pl.BlockSpec((tm, K), lambda i: (i, 0))
    w_spec = pl.BlockSpec((K, N), lambda i: (0, 0))
    b_spec = pl.BlockSpec((1, N), lambda i: (0, 0))
    y_spec = pl.BlockSpec((tm, N), lambda i: (i, 0))
    cp = pltpu.CompilerParams(dimension_semantics=("parallel",))
    b2 = b.reshape(1, N).astype(jnp.float32)

    if with_stats:
        kern = partial(_mm_bias_stats_kernel,
                       rows_valid=(M if padded else None), tm=tm)
        y, st = pl.pallas_call(
            kern,
            out_shape=(jax.ShapeDtypeStruct((Mp, N), jnp.float32),
                       jax.ShapeDtypeStruct((ntiles, 2, N), jnp.float32)),
            grid=(ntiles,),
            in_specs=[x_spec, w_spec, b_spec],
            out_specs=(y_spec, pl.BlockSpec((1, 2, N), lambda i: (i, 0, 0))),
            compiler_params=cp,
        )(xp, w, b2)
        return (y[:M] if padded else y), st

    y = pl.pallas_call(
        _mm_bias_kernel,
        out_shape=jax.ShapeDtypeStruct((Mp, N), jnp.float32),
        grid=(ntiles,),
        in_specs=[x_spec, w_spec, b_spec],
        out_specs=y_spec,
        compiler_params=cp,
    )(xp, w, b2)
    return y[:M] if padded else y


def pallas_bn_act(y, scale, shift, *, relu=True, out_dtype=jnp.bfloat16, tm_max=256):
    """Tiled per-column y*scale + shift (+ReLU); f32 math, bf16 store."""
    M, N = y.shape
    tm = _pick_tm(M, tm_max)
    ntiles = pl.cdiv(M, tm)
    Mp = ntiles * tm
    padded = Mp != M
    yp = jnp.pad(y, ((0, Mp - M), (0, 0))) if padded else y
    out = pl.pallas_call(
        partial(_bn_act_kernel, relu=relu),
        out_shape=jax.ShapeDtypeStruct((Mp, N), out_dtype),
        grid=(ntiles,),
        in_specs=[pl.BlockSpec((tm, N), lambda i: (i, 0)),
                  pl.BlockSpec((1, N), lambda i: (0, 0)),
                  pl.BlockSpec((1, N), lambda i: (0, 0))],
        out_specs=pl.BlockSpec((tm, N), lambda i: (i, 0)),
        compiler_params=pltpu.CompilerParams(dimension_semantics=("parallel",)),
    )(yp, scale.reshape(1, N).astype(jnp.float32),
      shift.reshape(1, N).astype(jnp.float32))
    return out[:M] if padded else out


# ----------------------------------------------------------------------------
# XLA glue: patch gather, pixel shuffle, BN finalize
# ----------------------------------------------------------------------------
def patches3x3(x):
    """(B, H, W, C) -> (B*H*W, 9*C) 3x3 neighbourhoods (zero padded)."""
    B, H, W, C = x.shape
    xp = jnp.pad(x, ((0, 0), (1, 1), (1, 1), (0, 0)))
    cols = [xp[:, a:a + H, bb:bb + W, :] for a in range(3) for bb in range(3)]
    p = jnp.stack(cols, axis=3)                       # (B, H, W, 9, C)
    return p.reshape(B * H * W, 9 * C)


def pixel_shuffle_2x(y_mat, B, H, W, Cout):
    """(B*H*W, 4*Cout) with columns (r, c, co) -> (B, 2H, 2W, Cout)."""
    t = y_mat.reshape(B, H, W, 2, 2, Cout)
    t = t.transpose(0, 1, 3, 2, 4, 5)                 # (B, H, 2, W, 2, Cout)
    return t.reshape(B, 2 * H, 2 * W, Cout)


def _bn_scale_shift(stat_sum, stat_sumsq, count, gamma, beta, eps=1e-5):
    mean = stat_sum / count
    var = jnp.maximum(stat_sumsq / count - mean * mean, 0.0)   # biased variance
    scale = gamma * jax.lax.rsqrt(var + eps)
    shift = beta - mean * scale
    return scale, shift


# ----------------------------------------------------------------------------
# Weight preparation (hoisted out of the forward pass, done once)
# ----------------------------------------------------------------------------
# (dy, k) tap pairs for each output parity of a k=4, stride=2, pad=1 ConvTranspose.
_PAIRS = {0: ((0, 1), (-1, 3)), 1: ((1, 0), (0, 2))}


def subpixel_weight_matrix(w_pt):
    """(Cin, Cout, 4, 4) -> (9*Cin, 4*Cout); rows (dy+1, dx+1, ci), cols (r, c, co)."""
    Cin, Cout = w_pt.shape[0], w_pt.shape[1]
    wm = jnp.zeros((3, 3, Cin, 2, 2, Cout), jnp.float32)
    for r in (0, 1):
        for dy, ky in _PAIRS[r]:
            for c in (0, 1):
                for dx, kx in _PAIRS[c]:
                    wm = wm.at[dy + 1, dx + 1, :, r, c, :].set(w_pt[:, :, ky, kx])
    return wm.reshape(9 * Cin, 4 * Cout)


def col2im_weight_matrix(w_pt):
    """(Cin, Cout, 4, 4) -> (Cin, 16*Cout); columns ordered (ky, kx, co)."""
    Cin, Cout = w_pt.shape[0], w_pt.shape[1]
    return w_pt.transpose(0, 2, 3, 1).reshape(Cin, 16 * Cout)


def prepare_params(params):
    """Precompute bf16 matmul weights / f32 column biases from torch-layout params."""
    # Layer 1: block-diagonal [z(100) | onehot(10)] weight, columns (ky*4+kx, channel)
    w11 = params["w1_1"].transpose(0, 2, 3, 1)        # (100, 4, 4, 2d)
    w12 = params["w1_2"].transpose(0, 2, 3, 1)        # (10,  4, 4, 2d)
    top = jnp.concatenate([w11, jnp.zeros_like(w11)], axis=-1)   # (100, 4, 4, 4d)
    bot = jnp.concatenate([jnp.zeros_like(w12), w12], axis=-1)   # (10,  4, 4, 4d)
    W1 = jnp.concatenate([top, bot], axis=0).reshape(110, -1)
    return {
        "W1": W1.astype(jnp.bfloat16),
        "b1": jnp.tile(jnp.concatenate([params["b1_1"], params["b1_2"]]), 16),
        "g1": jnp.concatenate([params["g1_1"], params["g1_2"]]),
        "be1": jnp.concatenate([params["be1_1"], params["be1_2"]]),
        "W2": subpixel_weight_matrix(params["w2"]).astype(jnp.bfloat16),
        "b2": jnp.tile(params["b2"], 4),
        "g2": params["g2"], "be2": params["be2"],
        "W3": subpixel_weight_matrix(params["w3"]).astype(jnp.bfloat16),
        "b3": jnp.tile(params["b3"], 4),
        "g3": params["g3"], "be3": params["be3"],
        "W4": col2im_weight_matrix(params["w4"]).astype(jnp.bfloat16),
        "b4": params["b4"],
    }


# ----------------------------------------------------------------------------
# Layer building blocks
# ----------------------------------------------------------------------------
def deconv_s2_bn_relu(h, Wm, b_cols, gamma, beta):
    """ConvTranspose2d(k=4, s=2, p=1) + train-mode BatchNorm + ReLU (subpixel)."""
    B, H, W, _ = h.shape
    Cout = gamma.shape[0]
    p = patches3x3(h)                                          # (B*H*W, 9*Cin) bf16
    y, st = pallas_matmul_bias(p, Wm, b_cols, with_stats=True)  # (M, 4*Cout) f32
    st = st.sum(axis=0).reshape(2, 4, Cout).sum(axis=1)        # pool tiles + parities
    count = 4.0 * p.shape[0]                                   # = B * 2H * 2W
    scale, shift = _bn_scale_shift(st[0], st[1], count, gamma, beta)
    yn = pallas_bn_act(y, jnp.tile(scale, 4), jnp.tile(shift, 4), relu=True)
    return pixel_shuffle_2x(yn, B, H, W, Cout)                 # (B, 2H, 2W, Cout) bf16


def deconv_s2_tanh(h, Wm, bias):
    """Final ConvTranspose2d(Cin, 1, 4, 2, 1) + tanh via col2im.

    The Pallas matmul emits all 16 kernel taps as output channels; the tiny
    overlap-add + bias + tanh run in XLA on the (B, 2H, 2W, 1) result
    (tanh must follow the overlap-add, so it stays in the glue)."""
    B, H, W, Cin = h.shape
    y = pallas_matmul_bias(h.reshape(B * H * W, Cin), Wm,
                           jnp.zeros((Wm.shape[1],), jnp.float32),
                           with_stats=False)                   # (M, 16) f32
    contrib = y.reshape(B, H, W, 4, 4, 1)
    Ho, Wo = 2 * H, 2 * W
    full = jnp.zeros((B, Ho + 2, Wo + 2, 1), jnp.float32)
    for ky in range(4):
        for kx in range(4):
            full = full.at[:, ky:ky + Ho:2, kx:kx + Wo:2, :].add(
                contrib[:, :, :, ky, kx, :])
    return jnp.tanh(full[:, 1:-1, 1:-1, :] + bias.reshape(1, 1, 1, -1))


def generator_forward(pp, inp):
    # inp: (B, 101); inp[:, 0] = class label (float), inp[:, 1:] = z (100-dim)
    B = inp.shape[0]
    labels = inp[:, 0].astype(jnp.int32)
    onehot = jax.nn.one_hot(labels, 10, dtype=jnp.float32)
    x0 = jnp.concatenate([inp[:, 1:], onehot], axis=1).astype(jnp.bfloat16)  # (B, 110)

    # ---- layer 1: deconv1_1 & deconv1_2 fused into one block-diagonal matmul + one BN
    C1 = pp["g1"].shape[0]                                     # 4*d
    y1, st1 = pallas_matmul_bias(x0, pp["W1"], pp["b1"], with_stats=True)  # (B, 16*4d)
    st1 = st1.sum(axis=0).reshape(2, 16, C1).sum(axis=1)       # pool tiles + spatial
    scale1, shift1 = _bn_scale_shift(st1[0], st1[1], float(B * 16),
                                     pp["g1"], pp["be1"])
    h = pallas_bn_act(y1.reshape(B * 16, C1), scale1, shift1, relu=True)
    h = h.reshape(B, 4, 4, C1)                                 # NHWC, channels [x | y]

    # ---- layers 2/3: stride-2 ConvTranspose + BN + ReLU (subpixel matmuls)
    h = deconv_s2_bn_relu(h, pp["W2"], pp["b2"], pp["g2"], pp["be2"])   # (B, 8, 8, 2d)
    h = deconv_s2_bn_relu(h, pp["W3"], pp["b3"], pp["g3"], pp["be3"])   # (B, 16, 16, d)

    # ---- layer 4: ConvTranspose(d, 1, 4, 2, 1) + tanh (col2im)
    out = deconv_s2_tanh(h, pp["W4"], pp["b4"])                # (B, 32, 32, 1)
    return out.transpose(0, 3, 1, 2)                           # NCHW (B, 1, 32, 32)


# ----------------------------------------------------------------------------
# Parameters (weights ~ N(0, 0.02), bias 0, BN gamma=1 / beta=0)
# ----------------------------------------------------------------------------
def init_params(key, d):
    ks = jax.random.split(key, 5)
    std = 0.02

    def conv_w(k, cin, cout):
        return std * jax.random.normal(k, (cin, cout, 4, 4), jnp.float32)

    return {
        "w1_1": conv_w(ks[0], 100, 2 * d), "b1_1": jnp.zeros((2 * d,), jnp.float32),
        "g1_1": jnp.ones((2 * d,), jnp.float32), "be1_1": jnp.zeros((2 * d,), jnp.float32),
        "w1_2": conv_w(ks[1], 10, 2 * d), "b1_2": jnp.zeros((2 * d,), jnp.float32),
        "g1_2": jnp.ones((2 * d,), jnp.float32), "be1_2": jnp.zeros((2 * d,), jnp.float32),
        "w2": conv_w(ks[2], 4 * d, 2 * d), "b2": jnp.zeros((2 * d,), jnp.float32),
        "g2": jnp.ones((2 * d,), jnp.float32), "be2": jnp.zeros((2 * d,), jnp.float32),
        "w3": conv_w(ks[3], 2 * d, d), "b3": jnp.zeros((d,), jnp.float32),
        "g3": jnp.ones((d,), jnp.float32), "be3": jnp.zeros((d,), jnp.float32),
        "w4": conv_w(ks[4], d, 1), "b4": jnp.zeros((1,), jnp.float32),
    }


# ----------------------------------------------------------------------------
# Pure-JAX f32 reference (numerical sanity check only)
# ----------------------------------------------------------------------------
def _ref_deconv(x_nchw, w_pt, b, stride, padding):
    K = w_pt.shape[2]
    w = jnp.flip(w_pt, axis=(2, 3)).transpose(1, 0, 2, 3)      # (Cout, Cin, K, K)
    out = jax.lax.conv_general_dilated(
        x_nchw, w, window_strides=(1, 1),
        padding=[(K - 1 - padding, K - 1 - padding)] * 2,
        lhs_dilation=(stride, stride),
        dimension_numbers=("NCHW", "OIHW", "NCHW"))
    return out + b.reshape(1, -1, 1, 1)


def _ref_bn_relu(x, g, be):
    mean = x.mean(axis=(0, 2, 3), keepdims=True)
    var = ((x - mean) ** 2).mean(axis=(0, 2, 3), keepdims=True)
    xn = (x - mean) * jax.lax.rsqrt(var + 1e-5)
    return jnp.maximum(xn * g.reshape(1, -1, 1, 1) + be.reshape(1, -1, 1, 1), 0.0)


def reference_forward(params, inp):
    B = inp.shape[0]
    labels = inp[:, 0].astype(jnp.int32)
    z = inp[:, 1:].reshape(B, 100, 1, 1)
    oh = jax.nn.one_hot(labels, 10, dtype=jnp.float32).reshape(B, 10, 1, 1)
    x = _ref_bn_relu(_ref_deconv(z, params["w1_1"], params["b1_1"], 1, 0),
                     params["g1_1"], params["be1_1"])
    y = _ref_bn_relu(_ref_deconv(oh, params["w1_2"], params["b1_2"], 1, 0),
                     params["g1_2"], params["be1_2"])
    h = jnp.concatenate([x, y], axis=1)
    h = _ref_bn_relu(_ref_deconv(h, params["w2"], params["b2"], 2, 1),
                     params["g2"], params["be2"])
    h = _ref_bn_relu(_ref_deconv(h, params["w3"], params["b3"], 2, 1),
                     params["g3"], params["be3"])
    return jnp.tanh(_ref_deconv(h, params["w4"], params["b4"], 2, 1))


if __name__ == "__main__":
    d = 16          # small d for testing (module default is 128); structure identical
    B = 2

    root = jax.random.PRNGKey(0)
    k_params, k_z, k_lbl = jax.random.split(root, 3)

    params = init_params(k_params, d)
    pp = prepare_params(params)

    z = jax.random.normal(k_z, (B, 100), jnp.float32)
    labels = jax.random.randint(k_lbl, (B,), 0, 10).astype(jnp.float32)
    inp = jnp.concatenate([labels[:, None], z], axis=1)        # (B, 101)

    fwd = jax.jit(generator_forward)
    out = jax.block_until_ready(fwd(pp, inp))
    assert out.shape == (B, 1, 32, 32), out.shape
    assert bool(jnp.all(jnp.isfinite(out)))

    # numerical sanity check against a pure-JAX f32 reference of the module
    ref = jax.block_until_ready(jax.jit(reference_forward)(params, inp))
    err = float(jnp.max(jnp.abs(out - ref)))
    assert err < 6e-2, f"max abs diff vs f32 reference too large: {err}"

    print("KERNEL_OK")
</pallas_src>

<mosaic_0001>
module attributes {stable_mosaic.version = 11 : i64} {
  func.func @_mm_bias_stats_kernel(%arg0: i32, %arg1: memref<2x110xbf16, #tpu.memory_space<vmem>>, %arg2: memref<110x1024xbf16, #tpu.memory_space<vmem>>, %arg3: memref<1x1024xf32, #tpu.memory_space<vmem>>, %arg4: memref<2x1024xf32, #tpu.memory_space<vmem>>, %arg5: memref<1x2x1024xf32, #tpu.memory_space<vmem>>) attributes {dimension_semantics = [#tpu.dimension_semantics<parallel>], iteration_bounds = array<i64: 1>, scalar_prefetch = 0 : i64, scratch_operands = 0 : i64, tpu.core_type = #tpu.core_type<tc>, window_params = [{transform_indices = @transform_0, window_bounds = array<i64: 2, 110>}, {pipeline_mode = #tpu.pipeline_mode<synchronous>, transform_indices = @transform_1, window_bounds = array<i64: 110, 1024>}, {pipeline_mode = #tpu.pipeline_mode<synchronous>, transform_indices = @transform_2, window_bounds = array<i64: 1, 1024>}, {transform_indices = @transform_3, window_bounds = array<i64: 2, 1024>}, {transform_indices = @transform_4, window_bounds = array<i64: 1, 2, 1024>}]} {
    %c0 = arith.constant 0 : index
    %c0_0 = arith.constant 0 : index
    %0 = vector.load %arg1[%c0, %c0_0] : memref<2x110xbf16, #tpu.memory_space<vmem>>, vector<2x110xbf16>
    %c0_1 = arith.constant 0 : index
    %c0_2 = arith.constant 0 : index
    %1 = vector.load %arg2[%c0_1, %c0_2] : memref<110x1024xbf16, #tpu.memory_space<vmem>>, vector<110x1024xbf16>
    %cst = arith.constant dense<0.000000e+00> : vector<2x1024xf32>
    %2 = tpu.matmul %0, %1, %cst {dimension_numbers = #tpu.dot_dimension_numbers<[1], [0], [0], [1], [0, 0, 1, 1], [], []>} : vector<2x110xbf16>, vector<110x1024xbf16>, vector<2x1024xf32> -> vector<2x1024xf32>
    %c0_3 = arith.constant 0 : index
    %c0_4 = arith.constant 0 : index
    %3 = vector.load %arg3[%c0_3, %c0_4] : memref<1x1024xf32, #tpu.memory_space<vmem>>, vector<1x1024xf32>
    %4 = vector.broadcast %3 : vector<1x1024xf32> to vector<2x1024xf32>
    %5 = arith.addf %2, %4 : vector<2x1024xf32>
    %c0_5 = arith.constant 0 : index
    %c0_6 = arith.constant 0 : index
    %6 = vector.load %arg4[%c0_5, %c0_6] : memref<2x1024xf32, #tpu.memory_space<vmem>>, vector<2x1024xf32>
    tpu.vector_store %arg4[%c0_5, %c0_6], %5 {strides = array<i32>} : memref<2x1024xf32, #tpu.memory_space<vmem>>, vector<2x1024xf32>,
    %cst_7 = arith.constant dense<0.000000e+00> : vector<1024xf32>
    %7 = vector.multi_reduction <add>, %5, %cst_7 [0] : vector<2x1024xf32> to vector<1024xf32>
    %8 = vector.shape_cast %7 : vector<1024xf32> to vector<1x1024xf32>
    %9 = arith.mulf %5, %5 : vector<2x1024xf32>
    %cst_8 = arith.constant dense<0.000000e+00> : vector<1024xf32>
    %10 = vector.multi_reduction <add>, %9, %cst_8 [0] : vector<2x1024xf32> to vector<1024xf32>
    %11 = vector.shape_cast %10 : vector<1024xf32> to vector<1x1024xf32>
    %12 = tpu.concatenate %8, %11 in 0 : vector<1x1024xf32>, vector<1x1024xf32> -> vector<2x1024xf32>
    %13 = vector.shape_cast %12 : vector<2x1024xf32> to vector<1x2x1024xf32>
    %c0_9 = arith.constant 0 : index
    %c0_10 = arith.constant 0 : index
    %c0_11 = arith.constant 0 : index
    %14 = vector.load %arg5[%c0_9, %c0_10, %c0_11] : memref<1x2x1024xf32, #tpu.memory_space<vmem>>, vector<1x2x1024xf32>
    tpu.vector_store %arg5[%c0_9, %c0_10, %c0_11], %13 {strides = array<i32>} : memref<1x2x1024xf32, #tpu.memory_space<vmem>>, vector<1x2x1024xf32>,
    return
  }
  func.func @transform_0(%arg0: i32) -> (i32, i32) {
    %c0_i32 = arith.constant 0 : i32
    %c0_i32_0 = arith.constant 0 : i32
    return %arg0, %c0_i32 : i32, i32
  }
  func.func @transform_1(%arg0: i32) -> (i32, i32) {
    %c0_i32 = arith.constant 0 : i32
    %c0_i32_0 = arith.constant 0 : i32
    %c0_i32_1 = arith.constant 0 : i32
    return %c0_i32, %c0_i32_0 : i32, i32
  }
  func.func @transform_2(%arg0: i32) -> (i32, i32) {
    %c0_i32 = arith.constant 0 : i32
    %c0_i32_0 = arith.constant 0 : i32
    %c0_i32_1 = arith.constant 0 : i32
    return %c0_i32, %c0_i32_0 : i32, i32
  }
  func.func @transform_3(%arg0: i32) -> (i32, i32) {
    %c0_i32 = arith.constant 0 : i32
    %c0_i32_0 = arith.constant 0 : i32
    return %arg0, %c0_i32 : i32, i32
  }
  func.func @transform_4(%arg0: i32) -> (i32, i32, i32) {
    %c0_i32 = arith.constant 0 : i32
    %c0_i32_0 = arith.constant 0 : i32
    %c0_i32_1 = arith.constant 0 : i32
    return %arg0, %c0_i32, %c0_i32_0 : i32, i32, i32
  }
}

module attributes {stable_mosaic.version = 11 : i64} {
  func.func @_bn_act_kernel(%arg0: i32, %arg1: memref<32x64xf32, #tpu.memory_space<vmem>>, %arg2: memref<1x64xf32, #tpu.memory_space<vmem>>, %arg3: memref<1x64xf32, #tpu.memory_space<vmem>>, %arg4: memref<32x64xbf16, #tpu.memory_space<vmem>>) attributes {dimension_semantics = [#tpu.dimension_semantics<parallel>], iteration_bounds = array<i64: 1>, scalar_prefetch = 0 : i64, scratch_operands = 0 : i64, tpu.core_type = #tpu.core_type<tc>, window_params = [{transform_indices = @transform_0, window_bounds = array<i64: 32, 64>}, {pipeline_mode = #tpu.pipeline_mode<synchronous>, transform_indices = @transform_1, window_bounds = array<i64: 1, 64>}, {pipeline_mode = #tpu.pipeline_mode<synchronous>, transform_indices = @transform_2, window_bounds = array<i64: 1, 64>}, {transform_indices = @transform_3, window_bounds = array<i64: 32, 64>}]} {
    %c0 = arith.constant 0 : index
    %c0_0 = arith.constant 0 : index
    %0 = vector.load %arg1[%c0, %c0_0] : memref<32x64xf32, #tpu.memory_space<vmem>>, vector<32x64xf32>
    %c0_1 = arith.constant 0 : index
    %c0_2 = arith.constant 0 : index
    %1 = vector.load %arg2[%c0_1, %c0_2] : memref<1x64xf32, #tpu.memory_space<vmem>>, vector<1x64xf32>
    %2 = vector.broadcast %1 : vector<1x64xf32> to vector<32x64xf32>
    %3 = arith.mulf %0, %2 : vector<32x64xf32>
    %c0_3 = arith.constant 0 : index
    %c0_4 = arith.constant 0 : index
    %4 = vector.load %arg3[%c0_3, %c0_4] : memref<1x64xf32, #tpu.memory_space<vmem>>, vector<1x64xf32>
    %5 = vector.broadcast %4 : vector<1x64xf32> to vector<32x64xf32>
    %6 = arith.addf %3, %5 : vector<32x64xf32>
    %cst = arith.constant 0.000000e+00 : f32
    %7 = vector.broadcast %cst : f32 to vector<32x64xf32>
    %8 = arith.maximumf %6, %7 : vector<32x64xf32>
    %9 = arith.truncf %8 : vector<32x64xf32> to vector<32x64xbf16>
    %c0_5 = arith.constant 0 : index
    %c0_6 = arith.constant 0 : index
    %10 = vector.load %arg4[%c0_5, %c0_6] : memref<32x64xbf16, #tpu.memory_space<vmem>>, vector<32x64xbf16>
    tpu.vector_store %arg4[%c0_5, %c0_6], %9 {strides = array<i32>} : memref<32x64xbf16, #tpu.memory_space<vmem>>, vector<32x64xbf16>,
    return
  }
  func.func @transform_0(%arg0: i32) -> (i32, i32) {
    %c0_i32 = arith.constant 0 : i32
    %c0_i32_0 = arith.constant 0 : i32
    return %arg0, %c0_i32 : i32, i32
  }
  func.func @transform_1(%arg0: i32) -> (i32, i32) {
    %c0_i32 = arith.constant 0 : i32
    %c0_i32_0 = arith.constant 0 : i32
    %c0_i32_1 = arith.constant 0 : i32
    return %c0_i32, %c0_i32_0 : i32, i32
  }
  func.func @transform_2(%arg0: i32) -> (i32, i32) {
    %c0_i32 = arith.constant 0 : i32
    %c0_i32_0 = arith.constant 0 : i32
    %c0_i32_1 = arith.constant 0 : i32
    return %c0_i32, %c0_i32_0 : i32, i32
  }
  func.func @transform_3(%arg0: i32) -> (i32, i32) {
    %c0_i32 = arith.constant 0 : i32
    %c0_i32_0 = arith.constant 0 : i32
    return %arg0, %c0_i32 : i32, i32
  }
}

module attributes {stable_mosaic.version = 11 : i64} {
  func.func @_bn_act_kernel(%arg0: i32, %arg1: memref<32x128xf32, #tpu.memory_space<vmem>>, %arg2: memref<1x128xf32, #tpu.memory_space<vmem>>, %arg3: memref<1x128xf32, #tpu.memory_space<vmem>>, %arg4: memref<32x128xbf16, #tpu.memory_space<vmem>>) attributes {dimension_semantics = [#tpu.dimension_semantics<parallel>], iteration_bounds = array<i64: 1>, scalar_prefetch = 0 : i64, scratch_operands = 0 : i64, tpu.core_type = #tpu.core_type<tc>, window_params = [{transform_indices = @transform_0, window_bounds = array<i64: 32, 128>}, {pipeline_mode = #tpu.pipeline_mode<synchronous>, transform_indices = @transform_1, window_bounds = array<i64: 1, 128>}, {pipeline_mode = #tpu.pipeline_mode<synchronous>, transform_indices = @transform_2, window_bounds = array<i64: 1, 128>}, {transform_indices = @transform_3, window_bounds = array<i64: 32, 128>}]} {
    %c0 = arith.constant 0 : index
    %c0_0 = arith.constant 0 : index
    %0 = vector.load %arg1[%c0, %c0_0] : memref<32x128xf32, #tpu.memory_space<vmem>>, vector<32x128xf32>
    %c0_1 = arith.constant 0 : index
    %c0_2 = arith.constant 0 : index
    %1 = vector.load %arg2[%c0_1, %c0_2] : memref<1x128xf32, #tpu.memory_space<vmem>>, vector<1x128xf32>
    %2 = vector.broadcast %1 : vector<1x128xf32> to vector<32x128xf32>
    %3 = arith.mulf %0, %2 : vector<32x128xf32>
    %c0_3 = arith.constant 0 : index
    %c0_4 = arith.constant 0 : index
    %4 = vector.load %arg3[%c0_3, %c0_4] : memref<1x128xf32, #tpu.memory_space<vmem>>, vector<1x128xf32>
    %5 = vector.broadcast %4 : vector<1x128xf32> to vector<32x128xf32>
    %6 = arith.addf %3, %5 : vector<32x128xf32>
    %cst = arith.constant 0.000000e+00 : f32
    %7 = vector.broadcast %cst : f32 to vector<32x128xf32>
    %8 = arith.maximumf %6, %7 : vector<32x128xf32>
    %9 = arith.truncf %8 : vector<32x128xf32> to vector<32x128xbf16>
    %c0_5 = arith.constant 0 : index
    %c0_6 = arith.constant 0 : index
    %10 = vector.load %arg4[%c0_5, %c0_6] : memref<32x128xbf16, #tpu.memory_space<vmem>>, vector<32x128xbf16>
    tpu.vector_store %arg4[%c0_5, %c0_6], %9 {strides = array<i32>} : memref<32x128xbf16, #tpu.memory_space<vmem>>, vector<32x128xbf16>,
    return
  }
  func.func @transform_0(%arg0: i32) -> (i32, i32) {
    %c0_i32 = arith.constant 0 : i32
    %c0_i32_0 = arith.constant 0 : i32
    return %arg0, %c0_i32 : i32, i32
  }
  func.func @transform_1(%arg0: i32) -> (i32, i32) {
    %c0_i32 = arith.constant 0 : i32
    %c0_i32_0 = arith.constant 0 : i32
    %c0_i32_1 = arith.constant 0 : i32
    return %c0_i32, %c0_i32_0 : i32, i32
  }
  func.func @transform_2(%arg0: i32) -> (i32, i32) {
    %c0_i32 = arith.constant 0 : i32
    %c0_i32_0 = arith.constant 0 : i32
    %c0_i32_1 = arith.constant 0 : i32
    return %c0_i32, %c0_i32_0 : i32, i32
  }
  func.func @transform_3(%arg0: i32) -> (i32, i32) {
    %c0_i32 = arith.constant 0 : i32
    %c0_i32_0 = arith.constant 0 : i32
    return %arg0, %c0_i32 : i32, i32
  }
}

module attributes {stable_mosaic.version = 11 : i64} {
  func.func @_mm_bias_stats_kernel(%arg0: i32, %arg1: memref<32x576xbf16, #tpu.memory_space<vmem>>, %arg2: memref<576x128xbf16, #tpu.memory_space<vmem>>, %arg3: memref<1x128xf32, #tpu.memory_space<vmem>>, %arg4: memref<32x128xf32, #tpu.memory_space<vmem>>, %arg5: memref<1x2x128xf32, #tpu.memory_space<vmem>>) attributes {dimension_semantics = [#tpu.dimension_semantics<parallel>], iteration_bounds = array<i64: 1>, scalar_prefetch = 0 : i64, scratch_operands = 0 : i64, tpu.core_type = #tpu.core_type<tc>, window_params = [{transform_indices = @transform_0, window_bounds = array<i64: 32, 576>}, {pipeline_mode = #tpu.pipeline_mode<synchronous>, transform_indices = @transform_1, window_bounds = array<i64: 576, 128>}, {pipeline_mode = #tpu.pipeline_mode<synchronous>, transform_indices = @transform_2, window_bounds = array<i64: 1, 128>}, {transform_indices = @transform_3, window_bounds = array<i64: 32, 128>}, {transform_indices = @transform_4, window_bounds = array<i64: 1, 2, 128>}]} {
    %c0 = arith.constant 0 : index
    %c0_0 = arith.constant 0 : index
    %0 = vector.load %arg1[%c0, %c0_0] : memref<32x576xbf16, #tpu.memory_space<vmem>>, vector<32x576xbf16>
    %c0_1 = arith.constant 0 : index
    %c0_2 = arith.constant 0 : index
    %1 = vector.load %arg2[%c0_1, %c0_2] : memref<576x128xbf16, #tpu.memory_space<vmem>>, vector<576x128xbf16>
    %cst = arith.constant dense<0.000000e+00> : vector<32x128xf32>
    %2 = tpu.matmul %0, %1, %cst {dimension_numbers = #tpu.dot_dimension_numbers<[1], [0], [0], [1], [0, 0, 1, 1], [], []>} : vector<32x576xbf16>, vector<576x128xbf16>, vector<32x128xf32> -> vector<32x128xf32>
    %c0_3 = arith.constant 0 : index
    %c0_4 = arith.constant 0 : index
    %3 = vector.load %arg3[%c0_3, %c0_4] : memref<1x128xf32, #tpu.memory_space<vmem>>, vector<1x128xf32>
    %4 = vector.broadcast %3 : vector<1x128xf32> to vector<32x128xf32>
    %5 = arith.addf %2, %4 : vector<32x128xf32>
    %c0_5 = arith.constant 0 : index
    %c0_6 = arith.constant 0 : index
    %6 = vector.load %arg4[%c0_5, %c0_6] : memref<32x128xf32, #tpu.memory_space<vmem>>, vector<32x128xf32>
    tpu.vector_store %arg4[%c0_5, %c0_6], %5 {strides = array<i32>} : memref<32x128xf32, #tpu.memory_space<vmem>>, vector<32x128xf32>,
    %cst_7 = arith.constant dense<0.000000e+00> : vector<128xf32>
    %7 = vector.multi_reduction <add>, %5, %cst_7 [0] : vector<32x128xf32> to vector<128xf32>
    %8 = vector.shape_cast %7 : vector<128xf32> to vector<1x128xf32>
    %9 = arith.mulf %5, %5 : vector<32x128xf32>
    %cst_8 = arith.constant dense<0.000000e+00> : vector<128xf32>
    %10 = vector.multi_reduction <add>, %9, %cst_8 [0] : vector<32x128xf32> to vector<128xf32>
    %11 = vector.shape_cast %10 : vector<128xf32> to vector<1x128xf32>
    %12 = tpu.concatenate %8, %11 in 0 : vector<1x128xf32>, vector<1x128xf32> -> vector<2x128xf32>
    %13 = vector.shape_cast %12 : vector<2x128xf32> to vector<1x2x128xf32>
    %c0_9 = arith.constant 0 : index
    %c0_10 = arith.constant 0 : index
    %c0_11 = arith.constant 0 : index
    %14 = vector.load %arg5[%c0_9, %c0_10, %c0_11] : memref<1x2x128xf32, #tpu.memory_space<vmem>>, vector<1x2x128xf32>
    tpu.vector_store %arg5[%c0_9, %c0_10, %c0_11], %13 {strides = array<i32>} : memref<1x2x128xf32, #tpu.memory_space<vmem>>, vector<1x2x128xf32>,
    return
  }
  func.func @transform_0(%arg0: i32) -> (i32, i32) {
    %c0_i32 = arith.constant 0 : i32
    %c0_i32_0 = arith.constant 0 : i32
    return %arg0, %c0_i32 : i32, i32
  }
  func.func @transform_1(%arg0: i32) -> (i32, i32) {
    %c0_i32 = arith.constant 0 : i32
    %c0_i32_0 = arith.constant 0 : i32
    %c0_i32_1 = arith.constant 0 : i32
    return %c0_i32, %c0_i32_0 : i32, i32
  }
  func.func @transform_2(%arg0: i32) -> (i32, i32) {
    %c0_i32 = arith.constant 0 : i32
    %c0_i32_0 = arith.constant 0 : i32
    %c0_i32_1 = arith.constant 0 : i32
    return %c0_i32, %c0_i32_0 : i32, i32
  }
  func.func @transform_3(%arg0: i32) -> (i32, i32) {
    %c0_i32 = arith.constant 0 : i32
    %c0_i32_0 = arith.constant 0 : i32
    return %arg0, %c0_i32 : i32, i32
  }
  func.func @transform_4(%arg0: i32) -> (i32, i32, i32) {
    %c0_i32 = arith.constant 0 : i32
    %c0_i32_0 = arith.constant 0 : i32
    %c0_i32_1 = arith.constant 0 : i32
    return %arg0, %c0_i32, %c0_i32_0 : i32, i32, i32
  }
}

module attributes {stable_mosaic.version = 11 : i64} {
  func.func @_mm_bias_stats_kernel(%arg0: i32, %arg1: memref<128x288xbf16, #tpu.memory_space<vmem>>, %arg2: memref<288x64xbf16, #tpu.memory_space<vmem>>, %arg3: memref<1x64xf32, #tpu.memory_space<vmem>>, %arg4: memref<128x64xf32, #tpu.memory_space<vmem>>, %arg5: memref<1x2x64xf32, #tpu.memory_space<vmem>>) attributes {dimension_semantics = [#tpu.dimension_semantics<parallel>], iteration_bounds = array<i64: 1>, scalar_prefetch = 0 : i64, scratch_operands = 0 : i64, tpu.core_type = #tpu.core_type<tc>, window_params = [{transform_indices = @transform_0, window_bounds = array<i64: 128, 288>}, {pipeline_mode = #tpu.pipeline_mode<synchronous>, transform_indices = @transform_1, window_bounds = array<i64: 288, 64>}, {pipeline_mode = #tpu.pipeline_mode<synchronous>, transform_indices = @transform_2, window_bounds = array<i64: 1, 64>}, {transform_indices = @transform_3, window_bounds = array<i64: 128, 64>}, {transform_indices = @transform_4, window_bounds = array<i64: 1, 2, 64>}]} {
    %c0 = arith.constant 0 : index
    %c0_0 = arith.constant 0 : index
    %0 = vector.load %arg1[%c0, %c0_0] : memref<128x288xbf16, #tpu.memory_space<vmem>>, vector<128x288xbf16>
    %c0_1 = arith.constant 0 : index
    %c0_2 = arith.constant 0 : index
    %1 = vector.load %arg2[%c0_1, %c0_2] : memref<288x64xbf16, #tpu.memory_space<vmem>>, vector<288x64xbf16>
    %cst = arith.constant dense<0.000000e+00> : vector<128x64xf32>
    %2 = tpu.matmul %0, %1, %cst {dimension_numbers = #tpu.dot_dimension_numbers<[1], [0], [0], [1], [0, 0, 1, 1], [], []>} : vector<128x288xbf16>, vector<288x64xbf16>, vector<128x64xf32> -> vector<128x64xf32>
    %c0_3 = arith.constant 0 : index
    %c0_4 = arith.constant 0 : index
    %3 = vector.load %arg3[%c0_3, %c0_4] : memref<1x64xf32, #tpu.memory_space<vmem>>, vector<1x64xf32>
    %4 = vector.broadcast %3 : vector<1x64xf32> to vector<128x64xf32>
    %5 = arith.addf %2, %4 : vector<128x64xf32>
    %c0_5 = arith.constant 0 : index
    %c0_6 = arith.constant 0 : index
    %6 = vector.load %arg4[%c0_5, %c0_6] : memref<128x64xf32, #tpu.memory_space<vmem>>, vector<128x64xf32>
    tpu.vector_store %arg4[%c0_5, %c0_6], %5 {strides = array<i32>} : memref<128x64xf32, #tpu.memory_space<vmem>>, vector<128x64xf32>,
    %cst_7 = arith.constant dense<0.000000e+00> : vector<64xf32>
    %7 = vector.multi_reduction <add>, %5, %cst_7 [0] : vector<128x64xf32> to vector<64xf32>
    %8 = vector.shape_cast %7 : vector<64xf32> to vector<1x64xf32>
    %9 = arith.mulf %5, %5 : vector<128x64xf32>
    %cst_8 = arith.constant dense<0.000000e+00> : vector<64xf32>
    %10 = vector.multi_reduction <add>, %9, %cst_8 [0] : vector<128x64xf32> to vector<64xf32>
    %11 = vector.shape_cast %10 : vector<64xf32> to vector<1x64xf32>
    %12 = tpu.concatenate %8, %11 in 0 : vector<1x64xf32>, vector<1x64xf32> -> vector<2x64xf32>
    %13 = vector.shape_cast %12 : vector<2x64xf32> to vector<1x2x64xf32>
    %c0_9 = arith.constant 0 : index
    %c0_10 = arith.constant 0 : index
    %c0_11 = arith.constant 0 : index
    %14 = vector.load %arg5[%c0_9, %c0_10, %c0_11] : memref<1x2x64xf32, #tpu.memory_space<vmem>>, vector<1x2x64xf32>
    tpu.vector_store %arg5[%c0_9, %c0_10, %c0_11], %13 {strides = array<i32>} : memref<1x2x64xf32, #tpu.memory_space<vmem>>, vector<1x2x64xf32>,
    return
  }
  func.func @transform_0(%arg0: i32) -> (i32, i32) {
    %c0_i32 = arith.constant 0 : i32
    %c0_i32_0 = arith.constant 0 : i32
    return %arg0, %c0_i32 : i32, i32
  }
  func.func @transform_1(%arg0: i32) -> (i32, i32) {
    %c0_i32 = arith.constant 0 : i32
    %c0_i32_0 = arith.constant 0 : i32
    %c0_i32_1 = arith.constant 0 : i32
    return %c0_i32, %c0_i32_0 : i32, i32
  }
  func.func @transform_2(%arg0: i32) -> (i32, i32) {
    %c0_i32 = arith.constant 0 : i32
    %c0_i32_0 = arith.constant 0 : i32
    %c0_i32_1 = arith.constant 0 : i32
    return %c0_i32, %c0_i32_0 : i32, i32
  }
  func.func @transform_3(%arg0: i32) -> (i32, i32) {
    %c0_i32 = arith.constant 0 : i32
    %c0_i32_0 = arith.constant 0 : i32
    return %arg0, %c0_i32 : i32, i32
  }
  func.func @transform_4(%arg0: i32) -> (i32, i32, i32) {
    %c0_i32 = arith.constant 0 : i32
    %c0_i32_0 = arith.constant 0 : i32
    %c0_i32_1 = arith.constant 0 : i32
    return %arg0, %c0_i32, %c0_i32_0 : i32, i32, i32
  }
}

module attributes {stable_mosaic.version = 11 : i64} {
  func.func @_bn_act_kernel(%arg0: i32, %arg1: memref<128x64xf32, #tpu.memory_space<vmem>>, %arg2: memref<1x64xf32, #tpu.memory_space<vmem>>, %arg3: memref<1x64xf32, #tpu.memory_space<vmem>>, %arg4: memref<128x64xbf16, #tpu.memory_space<vmem>>) attributes {dimension_semantics = [#tpu.dimension_semantics<parallel>], iteration_bounds = array<i64: 1>, scalar_prefetch = 0 : i64, scratch_operands = 0 : i64, tpu.core_type = #tpu.core_type<tc>, window_params = [{transform_indices = @transform_0, window_bounds = array<i64: 128, 64>}, {pipeline_mode = #tpu.pipeline_mode<synchronous>, transform_indices = @transform_1, window_bounds = array<i64: 1, 64>}, {pipeline_mode = #tpu.pipeline_mode<synchronous>, transform_indices = @transform_2, window_bounds = array<i64: 1, 64>}, {transform_indices = @transform_3, window_bounds = array<i64: 128, 64>}]} {
    %c0 = arith.constant 0 : index
    %c0_0 = arith.constant 0 : index
    %0 = vector.load %arg1[%c0, %c0_0] : memref<128x64xf32, #tpu.memory_space<vmem>>, vector<128x64xf32>
    %c0_1 = arith.constant 0 : index
    %c0_2 = arith.constant 0 : index
    %1 = vector.load %arg2[%c0_1, %c0_2] : memref<1x64xf32, #tpu.memory_space<vmem>>, vector<1x64xf32>
    %2 = vector.broadcast %1 : vector<1x64xf32> to vector<128x64xf32>
    %3 = arith.mulf %0, %2 : vector<128x64xf32>
    %c0_3 = arith.constant 0 : index
    %c0_4 = arith.constant 0 : index
    %4 = vector.load %arg3[%c0_3, %c0_4] : memref<1x64xf32, #tpu.memory_space<vmem>>, vector<1x64xf32>
    %5 = vector.broadcast %4 : vector<1x64xf32> to vector<128x64xf32>
    %6 = arith.addf %3, %5 : vector<128x64xf32>
    %cst = arith.constant 0.000000e+00 : f32
    %7 = vector.broadcast %cst : f32 to vector<128x64xf32>
    %8 = arith.maximumf %6, %7 : vector<128x64xf32>
    %9 = arith.truncf %8 : vector<128x64xf32> to vector<128x64xbf16>
    %c0_5 = arith.constant 0 : index
    %c0_6 = arith.constant 0 : index
    %10 = vector.load %arg4[%c0_5, %c0_6] : memref<128x64xbf16, #tpu.memory_space<vmem>>, vector<128x64xbf16>
    tpu.vector_store %arg4[%c0_5, %c0_6], %9 {strides = array<i32>} : memref<128x64xbf16, #tpu.memory_space<vmem>>, vector<128x64xbf16>,
    return
  }
  func.func @transform_0(%arg0: i32) -> (i32, i32) {
    %c0_i32 = arith.constant 0 : i32
    %c0_i32_0 = arith.constant 0 : i32
    return %arg0, %c0_i32 : i32, i32
  }
  func.func @transform_1(%arg0: i32) -> (i32, i32) {
    %c0_i32 = arith.constant 0 : i32
    %c0_i32_0 = arith.constant 0 : i32
    %c0_i32_1 = arith.constant 0 : i32
    return %c0_i32, %c0_i32_0 : i32, i32
  }
  func.func @transform_2(%arg0: i32) -> (i32, i32) {
    %c0_i32 = arith.constant 0 : i32
    %c0_i32_0 = arith.constant 0 : i32
    %c0_i32_1 = arith.constant 0 : i32
    return %c0_i32, %c0_i32_0 : i32, i32
  }
  func.func @transform_3(%arg0: i32) -> (i32, i32) {
    %c0_i32 = arith.constant 0 : i32
    %c0_i32_0 = arith.constant 0 : i32
    return %arg0, %c0_i32 : i32, i32
  }
}

module attributes {stable_mosaic.version = 11 : i64} {
  func.func @_mm_bias_kernel(%arg0: i32, %arg1: memref<256x16xbf16, #tpu.memory_space<vmem>>, %arg2: memref<16x16xbf16, #tpu.memory_space<vmem>>, %arg3: memref<1x16xf32, #tpu.memory_space<vmem>>, %arg4: memref<256x16xf32, #tpu.memory_space<vmem>>) attributes {dimension_semantics = [#tpu.dimension_semantics<parallel>], iteration_bounds = array<i64: 2>, scalar_prefetch = 0 : i64, scratch_operands = 0 : i64, tpu.core_type = #tpu.core_type<tc>, window_params = [{transform_indices = @transform_0, window_bounds = array<i64: 256, 16>}, {pipeline_mode = #tpu.pipeline_mode<synchronous>, transform_indices = @transform_1, window_bounds = array<i64: 16, 16>}, {pipeline_mode = #tpu.pipeline_mode<synchronous>, transform_indices = @transform_2, window_bounds = array<i64: 1, 16>}, {transform_indices = @transform_3, window_bounds = array<i64: 256, 16>}]} {
    %c0 = arith.constant 0 : index
    %c0_0 = arith.constant 0 : index
    %0 = vector.load %arg1[%c0, %c0_0] : memref<256x16xbf16, #tpu.memory_space<vmem>>, vector<256x16xbf16>
    %c0_1 = arith.constant 0 : index
    %c0_2 = arith.constant 0 : index
    %1 = vector.load %arg2[%c0_1, %c0_2] : memref<16x16xbf16, #tpu.memory_space<vmem>>, vector<16x16xbf16>
    %cst = arith.constant dense<0.000000e+00> : vector<256x16xf32>
    %2 = tpu.matmul %0, %1, %cst {dimension_numbers = #tpu.dot_dimension_numbers<[1], [0], [0], [1], [0, 0, 1, 1], [], []>} : vector<256x16xbf16>, vector<16x16xbf16>, vector<256x16xf32> -> vector<256x16xf32>
    %c0_3 = arith.constant 0 : index
    %c0_4 = arith.constant 0 : index
    %3 = vector.load %arg3[%c0_3, %c0_4] : memref<1x16xf32, #tpu.memory_space<vmem>>, vector<1x16xf32>
    %4 = vector.broadcast %3 : vector<1x16xf32> to vector<256x16xf32>
    %5 = arith.addf %2, %4 : vector<256x16xf32>
    %c0_5 = arith.constant 0 : index
    %c0_6 = arith.constant 0 : index
    %6 = vector.load %arg4[%c0_5, %c0_6] : memref<256x16xf32, #tpu.memory_space<vmem>>, vector<256x16xf32>
    tpu.vector_store %arg4[%c0_5, %c0_6], %5 {strides = array<i32>} : memref<256x16xf32, #tpu.memory_space<vmem>>, vector<256x16xf32>,
    return
  }
  func.func @transform_0(%arg0: i32) -> (i32, i32) {
    %c0_i32 = arith.constant 0 : i32
    %c0_i32_0 = arith.constant 0 : i32
    return %arg0, %c0_i32 : i32, i32
  }
  func.func @transform_1(%arg0: i32) -> (i32, i32) {
    %c0_i32 = arith.constant 0 : i32
    %c0_i32_0 = arith.constant 0 : i32
    %c0_i32_1 = arith.constant 0 : i32
    return %c0_i32, %c0_i32_0 : i32, i32
  }
  func.func @transform_2(%arg0: i32) -> (i32, i32) {
    %c0_i32 = arith.constant 0 : i32
    %c0_i32_0 = arith.constant 0 : i32
    %c0_i32_1 = arith.constant 0 : i32
    return %c0_i32, %c0_i32_0 : i32, i32
  }
  func.func @transform_3(%arg0: i32) -> (i32, i32) {
    %c0_i32 = arith.constant 0 : i32
    %c0_i32_0 = arith.constant 0 : i32
    return %arg0, %c0_i32 : i32, i32
  }
}

</mosaic_0001>

<llo_original>
// kernel: generator_forward.8
$region0: #{generator_forward.8}
  #allocation0 [shape = 'u32[]', space=smem, size = 0x4, offset = 0x4, fixed_abs, tag = 'smem constant byte address 0x4 - core index']
  #allocation1 [shape = 'u32[144,128]{1,0:T(1,128)}', space=vmem, size = 0x12000, scoped, tag = 'internal scratch']
  %s0 = inlined_call_operand.vmem [shape: f32[32,64], index: 0, kind: input, shape index: {}]
  %s1 = inlined_call_operand.vmem [shape: f32[1,64], index: 1, kind: input, shape index: {}]
  %s2 = inlined_call_operand.vmem [shape: f32[1,64], index: 2, kind: input, shape index: {}]
  %s3 = inlined_call_operand.vmem [shape: bf16[32,64], index: 3, kind: output, shape index: {}]
  %s4 = sld [smem:[#allocation0]]
  $region22: #{generator_forward.8} parent=0
    _
  %s6 = ssub.s32 1, %s4
  %s7 = scalar_select 0, %s6, %s4
  // Predicated region
  $region2: #{generator_forward.8} parent=0 // pred_check
    _
  $region3: #{generator_forward.8} parent=0 // pred_check_branch
    %9 = sbr.rel (0) target = $region5
  $region4: #{generator_forward.8} parent=0 // pred_region
    _
  $region5: #{generator_forward.8} parent=0 // pred_fallthru
    _
  // Predicated region
  $region6: #{generator_forward.8} parent=0 // pred_check
    _
  $region7: #{generator_forward.8} parent=0 // pred_check_branch
    %11 = sbr.rel (0) target = $region9
  $region8: #{generator_forward.8} parent=0 // pred_region
    _
  $region9: #{generator_forward.8} parent=0 // pred_fallthru
    _
  // Predicated region
  $region10: #{generator_forward.8} parent=0 // pred_check
    _
  $region11: #{generator_forward.8} parent=0 // pred_check_branch
    %13 = sbr.rel (0) target = $region13
  $region12: #{generator_forward.8} parent=0 // pred_region
    _
  $region13: #{generator_forward.8} parent=0 // pred_fallthru
    _
  %v14 = vld [vmem:[%s0] sm:$0xff]
  %v15 = vld [vmem:[%s0 + $0x8] sm:$0xff]
  %v16 = vld [vmem:[%s0 + $0x10] sm:$0xff]
  %v17 = vld [vmem:[%s0 + $0x18] sm:$0xff]
  %v18 = vld [vmem:[%s1] sm:$0x1]
  %v20 = vlaneseq
  %v21 = vshrl.u32 %v20, 7
  %v22 = vsub.s32 0, %v21
  %v23 = vrot.slane %v18, %v22
  %v25 = vmul.f32 %v14, %v23
  %v26 = vmul.f32 %v15, %v23
  %v27 = vmul.f32 %v16, %v23
  %v28 = vmul.f32 %v17, %v23
  %v29 = vld [vmem:[%s2] sm:$0x1]
  %v31 = vlaneseq
  %v32 = vshrl.u32 %v31, 7
  %v33 = vsub.s32 0, %v32
  %v34 = vrot.slane %v29, %v33
  %v36 = vadd.f32 %v25, %v34
  %v37 = vadd.f32 %v26, %v34
  %v38 = vadd.f32 %v27, %v34
  %v39 = vadd.f32 %v28, %v34
  %v40 = vmax.f32 %v36, 0.0
  %v41 = vmax.f32 %v37, 0.0
  %v42 = vmax.f32 %v38, 0.0
  %v43 = vmax.f32 %v39, 0.0
  %v44 = vpack.c.bf16 %v41, %v40
  %v45 = vpack.c.bf16 %v43, %v42
  %v48 = vunpack.c.l.b16 %v44
  %v49 = vunpack.c.h.b16 %v44
  %v50 = vunpack.c.l.b16 %v45
  %v51 = vunpack.c.h.b16 %v45
  %v52 = vpack.c.b16 %v48, %v48
  %v53 = vpack.c.b16 %v49, %v49
  %v54 = vpack.c.b16 %v50, %v50
  %v55 = vpack.c.b16 %v51, %v51
  %vm60 = vcmask 519168
  %61 = vst.msk [vmem:[%s3] sm:$0xf] %vm60, %v52
  %62 = vst.msk [vmem:[%s3 + $0x4] sm:$0xf] %vm60, %v53
  %63 = vst.msk [vmem:[%s3 + $0x8] sm:$0xf] %vm60, %v54
  %64 = vst.msk [vmem:[%s3 + $0xc] sm:$0xf] %vm60, %v55
  // Predicated region
  $region14: #{generator_forward.8} parent=0 // pred_check
    _
  $region15: #{generator_forward.8} parent=0 // pred_check_branch
    %66 = sbr.rel (0) target = $region17
  $region16: #{generator_forward.8} parent=0 // pred_region
    _
  $region17: #{generator_forward.8} parent=0 // pred_fallthru
    _
  // Predicated region
  $region18: #{generator_forward.8} parent=0 // pred_check
    _
  $region19: #{generator_forward.8} parent=0 // pred_check_branch
    %68 = sbr.rel (0) target = $region21
  $region20: #{generator_forward.8} parent=0 // pred_region
    _
  $region21: #{generator_forward.8} parent=0 // pred_fallthru
    _

// kernel: tile.23
$region0: #{tile.23}
  #allocation0 [shape = 's32[1]{0}', space=sflag, size = 0x4, scoped, tag = 'scoped memory for tile.23']
  %s0 = inlined_call_operand.vmem [shape: f32[32], index: 0, kind: input, shape index: {}]
  %s1 = inlined_call_operand.vmem [shape: f32[4,32], index: 1, kind: output, shape index: {}]
  // Predicated region
  $region2: #{tile.23} parent=0 // pred_check
    _
  $region3: #{tile.23} parent=0 // pred_check_branch
    %3 = sbr.rel (0) target = $region5
  $region4: #{tile.23} parent=0 // pred_region
    _
  $region5: #{tile.23} parent=0 // pred_fallthru
    _
  %v4 = vld [vmem:[%s0] ss:$0 sm:$0xff]
  %5 = vst [vmem:[%s1] sm:$0xf] %v4

// kernel: tile.28
$region0: #{tile.28}
  %s0 = inlined_call_operand.vmem [shape: f32[4,32], index: 0, kind: input, shape index: {}]
  %s1 = inlined_call_operand.vmem [shape: f32[1,128], index: 1, kind: output, shape index: {}]
  $region1: #{tile.28} parent=0
    #allocation0 [shape = 'u8[4096]{0}', space=vmem, size = 0x1000, scoped, tag = 'scoped mem for output reshape']
    #allocation1 [shape = 'u8[4096]{0}', space=vmem, size = 0x1000, scoped, tag = 'scoped mem for input reshape']
    %s3 = sshll.u32 1, 4
    %s4 = ssub.s32 %s3, 1
    %v5 = vld [vmem:[%s0] sm:%s4]
    %6 = vst [vmem:[#allocation1] sm:%s4] %v5
    %v7 = vld [vmem:[#allocation1] sm:$0x1]
    %vm8 = vcmask 261120
    %9 = vst.msk [vmem:[#allocation0] sm:$0x1] %vm8, %v7
    %s10 = scalar_lea.vmem [#allocation1], 3
    %v11 = vld [vmem:[%s10] sm:$0x1]
    %12 = vrot.lane.b32.xlu0 %v11, 96
    %v13 = vpop.permute.xlu0 %12
    %vm14 = vcmask 1048320
    %15 = vst.msk [vmem:[#allocation0] sm:$0x1] %vm14, %v13
    %s16 = scalar_lea.vmem [#allocation1], 2
    %v17 = vld [vmem:[%s16] sm:$0x1]
    %18 = vrot.lane.b32.xlu0 %v17, 64
    %v19 = vpop.permute.xlu0 %18
    %vm20 = vcmask 785920
    %21 = vst.msk [vmem:[#allocation0] sm:$0x1] %vm20, %v19
    %s22 = scalar_lea.vmem [#allocation1], 1
    %v23 = vld [vmem:[%s22] sm:$0x1]
    %24 = vrot.lane.b32.xlu0 %v23, 32
    %v25 = vpop.permute.xlu0 %24
    %vm26 = vcmask 523520
    %27 = vst.msk [vmem:[#allocation0] sm:$0x1] %vm26, %v25
    %s29 = sshll.u32 1, 1
    %s30 = ssub.s32 %s29, 1
    %v32 = vld [vmem:[#allocation0] sm:%s30]
    %s33 = sshll.u32 1, 1
    %s34 = ssub.s32 %s33, 1
    %35 = vst [vmem:[%s1] sm:%s34] %v32

// kernel: generator_forward.7
$region0: #{generator_forward.7}
  #allocation0 [shape = 'u32[]', space=smem, size = 0x4, offset = 0x4, fixed_abs, tag = 'smem constant byte address 0x4 - core index']
  #allocation1 [shape = 'u32[144,128]{1,0:T(1,128)}', space=vmem, size = 0x12000, scoped, tag = 'internal scratch']
  %s0 = inlined_call_operand.vmem [shape: bf16[2,110], index: 0, kind: input, shape index: {}]
  %s1 = inlined_call_operand.hbm [shape: bf16[110,1024], index: 1, kind: input, shape index: {}]
  %s2 = inlined_call_operand.vmem [shape: f32[1,1024], index: 2, kind: input, shape index: {}]
  %s3 = inlined_call_operand.vmem [shape: f32[2,1024], index: 3, kind: output, shape index: {0}]
  %s4 = inlined_call_operand.vmem [shape: f32[1,2,1024], index: 4, kind: output, shape index: {1}]
  %5 = xla_tuple %s3, %s4
  %s6 = sld [smem:[#allocation0]]
  $region34: #{generator_forward.7} parent=0
    _
  %s8 = ssub.s32 1, %s6
  %s9 = scalar_select 0, %s8, %s6
  $region1: #{generator_forward.7} parent=0
    #allocation2 [shape = 'u8[229376]{0}', space=vmem, size = 0x38000, scoped, tag = 'input window, operand 1, single buffered']
    #allocation3 [shape = 's32[1]{0}', space=sflag, size = 0x4, scoped, tag = 'scoped memory for generator_forward.7']
    %10 = vsyncpa [#allocation3], 0
    // Predicated region
    $region2: #{generator_forward.7} parent=1 // pred_check
      _
    $region3: #{generator_forward.7} parent=1 // pred_check_branch
      %12 = sbr.rel (0) target = $region5
    $region4: #{generator_forward.7} parent=1 // pred_region
      _
    $region5: #{generator_forward.7} parent=1 // pred_fallthru
      _
    // Predicated region
    $region6: #{generator_forward.7} parent=1 // pred_check
      _
    $region7: #{generator_forward.7} parent=1 // pred_check_branch
      %14 = sbr.rel (0) target = $region9
    $region8: #{generator_forward.7} parent=1 // pred_region
      %s16 = ssub.s32 7168, 7168
      %17 = vsyncadd [#allocation3], %s16
      %s18 = sshll.u32 [#allocation2], 4
      %s19 = int_to_ptr.vmem [resolvable:$true] %s18
      %24 = dma.hbm_to_vmem [thread:$0]  %s1, 7168, %s19, [#allocation3], 512, 512, 32
    $region9: #{generator_forward.7} parent=1 // pred_fallthru
      _
    // Predicated region
    $region10: #{generator_forward.7} parent=1 // pred_check
      _
    $region11: #{generator_forward.7} parent=1 // pred_check_branch
      %26 = sbr.rel (0) target = $region13
    $region12: #{generator_forward.7} parent=1 // pred_region
      _
    $region13: #{generator_forward.7} parent=1 // pred_fallthru
      _
    // Predicated region
    $region14: #{generator_forward.7} parent=1 // pred_check
      _
    $region15: #{generator_forward.7} parent=1 // pred_check_branch
      %28 = sbr.rel (0) target = $region17
    $region16: #{generator_forward.7} parent=1 // pred_region
      %29 = dma.done [#allocation3], 7168
    $region17: #{generator_forward.7} parent=1 // pred_fallthru
      _
    %v31 = vld [vmem:[%s0] sm:$0x1]
    %v32 = vld [vmem:[#allocation2] sm:$0xff]
    %v33 = vld [vmem:[#allocation2 + $0x8] sm:$0xff]
    %v34 = vld [vmem:[#allocation2 + $0x10] sm:$0xff]
    %v35 = vld [vmem:[#allocation2 + $0x18] sm:$0xff]
    %v36 = vld [vmem:[#allocation2 + $0x20] sm:$0xff]
    %v37 = vld [vmem:[#allocation2 + $0x28] sm:$0xff]
    %v38 = vld [vmem:[#allocation2 + $0x30] sm:$0xff]
    %v39 = vld [vmem:[#allocation2 + $0x38] sm:$0xff]
    %v40 = vld [vmem:[#allocation2 + $0x40] sm:$0xff]
    %v41 = vld [vmem:[#allocation2 + $0x48] sm:$0xff]
    %v42 = vld [vmem:[#allocation2 + $0x50] sm:$0xff]
    %v43 = vld [vmem:[#allocation2 + $0x58] sm:$0xff]
    %v44 = vld [vmem:[#allocation2 + $0x60] sm:$0xff]
    %v45 = vld [vmem:[#allocation2 + $0x68] sm:$0xff]
    %v46 = vld [vmem:[#allocation2 + $0x70] sm:$0xff]
    %v47 = vld [vmem:[#allocation2 + $0x78] sm:$0xff]
    %v48 = vld [vmem:[#allocation2 + $0x80] sm:$0xff]
    %v49 = vld [vmem:[#allocation2 + $0x88] sm:$0xff]
    %v50 = vld [vmem:[#allocation2 + $0x90] sm:$0xff]
    %v51 = vld [vmem:[#allocation2 + $0x98] sm:$0xff]
    %v52 = vld [vmem:[#allocation2 + $0xa0] sm:$0xff]
    %v53 = vld [vmem:[#allocation2 + $0xa8] sm:$0xff]
    %v54 = vld [vmem:[#allocation2 + $0xb0] sm:$0xff]
    %v55 = vld [vmem:[#allocation2 + $0xb8] sm:$0xff]
    %v56 = vld [vmem:[#allocation2 + $0xc0] sm:$0xff]
    %v57 = vld [vmem:[#allocation2 + $0xc8] sm:$0xff]
    %v58 = vld [vmem:[#allocation2 + $0xd0] sm:$0xff]
    %v59 = vld [vmem:[#allocation2 + $0xd8] sm:$0xff]
    %v60 = vld [vmem:[#allocation2 + $0xe0] sm:$0xff]
    %v61 = vld [vmem:[#allocation2 + $0xe8] sm:$0xff]
    %v62 = vld [vmem:[#allocation2 + $0xf0] sm:$0xff]
    %v63 = vld [vmem:[#allocation2 + $0xf8] sm:$0xff]
    %v64 = vld [vmem:[#allocation2 + $0x100] sm:$0xff]
    %v65 = vld [vmem:[#allocation2 + $0x108] sm:$0xff]
    %v66 = vld [vmem:[#allocation2 + $0x110] sm:$0xff]
    %v67 = vld [vmem:[#allocation2 + $0x118] sm:$0xff]
    %v68 = vld [vmem:[#allocation2 + $0x120] sm:$0xff]
    %v69 = vld [vmem:[#allocation2 + $0x128] sm:$0xff]
    %v70 = vld [vmem:[#allocation2 + $0x130] sm:$0xff]
    %v71 = vld [vmem:[#allocation2 + $0x138] sm:$0xff]
    %v72 = vld [vmem:[#allocation2 + $0x140] sm:$0xff]
    %v73 = vld [vmem:[#allocation2 + $0x148] sm:$0xff]
    %v74 = vld [vmem:[#allocation2 + $0x150] sm:$0xff]
    %v75 = vld [vmem:[#allocation2 + $0x158] sm:$0xff]
    %v76 = vld [vmem:[#allocation2 + $0x160] sm:$0xff]
    %v77 = vld [vmem:[#allocation2 + $0x168] sm:$0xff]
    %v78 = vld [vmem:[#allocation2 + $0x170] sm:$0xff]
    %v79 = vld [vmem:[#allocation2 + $0x178] sm:$0xff]
    %v80 = vld [vmem:[#allocation2 + $0x180] sm:$0xff]
    %v81 = vld [vmem:[#allocation2 + $0x188] sm:$0xff]
    %v82 = vld [vmem:[#allocation2 + $0x190] sm:$0xff]
    %v83 = vld [vmem:[#allocation2 + $0x198] sm:$0xff]
    %v84 = vld [vmem:[#allocation2 + $0x1a0] sm:$0x77]
    %v85 = vld [vmem:[#allocation2 + $0x1a8] sm:$0x77]
    %v86 = vld [vmem:[#allocation2 + $0x1b0] sm:$0x77]
    %v87 = vld [vmem:[#allocation2 + $0x1b8] sm:$0x77]
    %v88 = vld [vmem:[%s2] sm:$0xff]
    %v90 = vlaneseq
    %v91 = vshrl.u32 %v90, 7
    %v92 = vsub.s32 0, %v91
    %v93 = vrot.slane %v88, %v92
    %v94 = vlaneseq
    %v95 = vshrl.u32 %v94, 7
    %v96 = vsub.s32 1, %v95
    %v97 = vrot.slane %v88, %v96
    %v98 = vlaneseq
    %v99 = vshrl.u32 %v98, 7
    %v100 = vsub.s32 2, %v99
    %v101 = vrot.slane %v88, %v100
    %v102 = vlaneseq
    %v103 = vshrl.u32 %v102, 7
    %v104 = vsub.s32 3, %v103
    %v105 = vrot.slane %v88, %v104
    %v106 = vlaneseq
    %v107 = vshrl.u32 %v106, 7
    %v108 = vsub.s32 4, %v107
    %v109 = vrot.slane %v88, %v108
    %v110 = vlaneseq
    %v111 = vshrl.u32 %v110, 7
    %v112 = vsub.s32 5, %v111
    %v113 = vrot.slane %v88, %v112
    %v114 = vlaneseq
    %v115 = vshrl.u32 %v114, 7
    %v116 = vsub.s32 6, %v115
    %v117 = vrot.slane %v88, %v116
    %v118 = vlaneseq
    %v119 = vshrl.u32 %v118, 7
    %v120 = vsub.s32 7, %v119
    %v121 = vrot.slane %v88, %v120
    %v186 = vunpack.c.l.b16 %v32
    %v187 = vunpack.c.h.b16 %v32
    %v188 = vunpack.c.l.b16 %v33
    %v189 = vunpack.c.h.b16 %v33
    %v190 = vunpack.c.l.b16 %v34
    %v191 = vunpack.c.h.b16 %v34
    %v192 = vunpack.c.l.b16 %v35
    %v193 = vunpack.c.h.b16 %v35
    %v194 = vunpack.c.l.b16 %v36
    %v195 = vunpack.c.h.b16 %v36
    %v196 = vunpack.c.l.b16 %v37
    %v197 = vunpack.c.h.b16 %v37
    %v198 = vunpack.c.l.b16 %v38
    %v199 = vunpack.c.h.b16 %v38
    %v200 = vunpack.c.l.b16 %v39
    %v201 = vunpack.c.h.b16 %v39
    %v202 = vunpack.c.l.b16 %v40
    %v203 = vunpack.c.h.b16 %v40
    %v204 = vunpack.c.l.b16 %v41
    %v205 = vunpack.c.h.b16 %v41
    %v206 = vunpack.c.l.b16 %v42
    %v207 = vunpack.c.h.b16 %v42
    %v208 = vunpack.c.l.b16 %v43
    %v209 = vunpack.c.h.b16 %v43
    %v210 = vunpack.c.l.b16 %v44
    %v211 = vunpack.c.h.b16 %v44
    %v212 = vunpack.c.l.b16 %v45
    %v213 = vunpack.c.h.b16 %v45
    %v214 = vunpack.c.l.b16 %v46
    %v215 = vunpack.c.h.b16 %v46
    %v216 = vunpack.c.l.b16 %v47
    %v217 = vunpack.c.h.b16 %v47
    %v218 = vunpack.c.l.b16 %v48
    %v219 = vunpack.c.h.b16 %v48
    %v220 = vunpack.c.l.b16 %v49
    %v221 = vunpack.c.h.b16 %v49
    %v222 = vunpack.c.l.b16 %v50
    %v223 = vunpack.c.h.b16 %v50
    %v224 = vunpack.c.l.b16 %v51
    %v225 = vunpack.c.h.b16 %v51
    %v226 = vunpack.c.l.b16 %v52
    %v227 = vunpack.c.h.b16 %v52
    %v228 = vunpack.c.l.b16 %v53
    %v229 = vunpack.c.h.b16 %v53
    %v230 = vunpack.c.l.b16 %v54
    %v231 = vunpack.c.h.b16 %v54
    %v232 = vunpack.c.l.b16 %v55
    %v233 = vunpack.c.h.b16 %v55
    %v234 = vunpack.c.l.b16 %v56
    %v235 = vunpack.c.h.b16 %v56
    %v236 = vunpack.c.l.b16 %v57
    %v237 = vunpack.c.h.b16 %v57
    %v238 = vunpack.c.l.b16 %v58
    %v239 = vunpack.c.h.b16 %v58
    %v240 = vunpack.c.l.b16 %v59
    %v241 = vunpack.c.h.b16 %v59
    %v242 = vunpack.c.l.b16 %v60
    %v243 = vunpack.c.h.b16 %v60
    %v244 = vunpack.c.l.b16 %v61
    %v245 = vunpack.c.h.b16 %v61
    %v246 = vunpack.c.l.b16 %v62
    %v247 = vunpack.c.h.b16 %v62
    %v248 = vunpack.c.l.b16 %v63
    %v249 = vunpack.c.h.b16 %v63
    %v250 = vunpack.c.l.b16 %v64
    %v251 = vunpack.c.h.b16 %v64
    %v252 = vunpack.c.l.b16 %v65
    %v253 = vunpack.c.h.b16 %v65
    %v254 = vunpack.c.l.b16 %v66
    %v255 = vunpack.c.h.b16 %v66
    %v256 = vunpack.c.l.b16 %v67
    %v257 = vunpack.c.h.b16 %v67
    %v258 = vunpack.c.l.b16 %v68
    %v259 = vunpack.c.h.b16 %v68
    %v260 = vunpack.c.l.b16 %v69
    %v261 = vunpack.c.h.b16 %v69
    %v262 = vunpack.c.l.b16 %v70
    %v263 = vunpack.c.h.b16 %v70
    %v264 = vunpack.c.l.b16 %v71
    %v265 = vunpack.c.h.b16 %v71
    %v266 = vunpack.c.l.b16 %v72
    %v267 = vunpack.c.h.b16 %v72
    %v268 = vunpack.c.l.b16 %v73
    %v269 = vunpack.c.h.b16 %v73
    %v270 = vunpack.c.l.b16 %v74
    %v271 = vunpack.c.h.b16 %v74
    %v272 = vunpack.c.l.b16 %v75
    %v273 = vunpack.c.h.b16 %v75
    %v274 = vunpack.c.l.b16 %v76
    %v275 = vunpack.c.h.b16 %v76
    %v276 = vunpack.c.l.b16 %v77
    %v277 = vunpack.c.h.b16 %v77
    %v278 = vunpack.c.l.b16 %v78
    %v279 = vunpack.c.h.b16 %v78
    %v280 = vunpack.c.l.b16 %v79
    %v281 = vunpack.c.h.b16 %v79
    %v282 = vunpack.c.l.b16 %v80
    %v283 = vunpack.c.h.b16 %v80
    %v284 = vunpack.c.l.b16 %v81
    %v285 = vunpack.c.h.b16 %v81
    %v286 = vunpack.c.l.b16 %v82
    %v287 = vunpack.c.h.b16 %v82
    %v288 = vunpack.c.l.b16 %v83
    %v289 = vunpack.c.h.b16 %v83
    %v290 = vunpack.c.l.b16 %v84
    %v291 = vunpack.c.h.b16 %v84
    %v292 = vunpack.c.l.b16 %v85
    %v293 = vunpack.c.h.b16 %v85
    %v294 = vunpack.c.l.b16 %v86
    %v295 = vunpack.c.h.b16 %v86
    %v296 = vunpack.c.l.b16 %v87
    %v297 = vunpack.c.h.b16 %v87
    %v298 = vpack.c.b16 %v194, %v186
    %v299 = vpack.c.b16 %v195, %v187
    %v300 = vpack.c.b16 %v196, %v188
    %v301 = vpack.c.b16 %v197, %v189
    %v302 = vpack.c.b16 %v198, %v190
    %v303 = vpack.c.b16 %v199, %v191
    %v304 = vpack.c.b16 %v200, %v192
    %v305 = vpack.c.b16 %v201, %v193
    %v306 = vpack.c.b16 %v210, %v202
    %v307 = vpack.c.b16 %v211, %v203
    %v308 = vpack.c.b16 %v212, %v204
    %v309 = vpack.c.b16 %v213, %v205
    %v310 = vpack.c.b16 %v214, %v206
    %v311 = vpack.c.b16 %v215, %v207
    %v312 = vpack.c.b16 %v216, %v208
    %v313 = vpack.c.b16 %v217, %v209
    %v314 = vpack.c.b16 %v226, %v218
    %v315 = vpack.c.b16 %v227, %v219
    %v316 = vpack.c.b16 %v228, %v220
    %v317 = vpack.c.b16 %v229, %v221
    %v318 = vpack.c.b16 %v230, %v222
    %v319 = vpack.c.b16 %v231, %v223
    %v320 = vpack.c.b16 %v232, %v224
    %v321 = vpack.c.b16 %v233, %v225
    %v322 = vpack.c.b16 %v242, %v234
    %v323 = vpack.c.b16 %v243, %v235
    %v324 = vpack.c.b16 %v244, %v236
    %v325 = vpack.c.b16 %v245, %v237
    %v326 = vpack.c.b16 %v246, %v238
    %v327 = vpack.c.b16 %v247, %v239
    %v328 = vpack.c.b16 %v248, %v240
    %v329 = vpack.c.b16 %v249, %v241
    %v330 = vpack.c.b16 %v258, %v250
    %v331 = vpack.c.b16 %v259, %v251
    %v332 = vpack.c.b16 %v260, %v252
    %v333 = vpack.c.b16 %v261, %v253
    %v334 = vpack.c.b16 %v262, %v254
    %v335 = vpack.c.b16 %v263, %v255
    %v336 = vpack.c.b16 %v264, %v256
    %v337 = vpack.c.b16 %v265, %v257
    %v338 = vpack.c.b16 %v274, %v266
    %v339 = vpack.c.b16 %v275, %v267
    %v340 = vpack.c.b16 %v276, %v268
    %v341 = vpack.c.b16 %v277, %v269
    %v342 = vpack.c.b16 %v278, %v270
    %v343 = vpack.c.b16 %v279, %v271
    %v344 = vpack.c.b16 %v280, %v272
    %v345 = vpack.c.b16 %v281, %v273
    %v346 = vpack.c.b16 %v290, %v282
    %v347 = vpack.c.b16 %v291, %v283
    %v348 = vpack.c.b16 %v292, %v284
    %v349 = vpack.c.b16 %v293, %v285
    %v350 = vpack.c.b16 %v294, %v286
    %v351 = vpack.c.b16 %v295, %v287
    %v352 = vpack.c.b16 %v296, %v288
    %v353 = vpack.c.b16 %v297, %v289
    %vm402 = vcmask 900096
    %v404 = vsel %vm402, %v31, 0
    %vm406 = vcmask 1046528
    %v408 = vsel %vm406, %v346, 0
    %v411 = vsel %vm406, %v347, 0
    %v414 = vsel %vm406, %v348, 0
    %v417 = vsel %vm406, %v349, 0
    %v420 = vsel %vm406, %v350, 0
    %v423 = vsel %vm406, %v351, 0
    %v426 = vsel %vm406, %v352, 0
    %v429 = vsel %vm406, %v353, 0
    %431 = vmatprep.subr.bf16.mxu0 0
    %432 = vmatpush1.bf16.msra.mxu0 0
    %433 = vmatprep.subr.bf16.mxu0 %v411
    %434 = vmatpush1.bf16.msra.mxu0 %v408
    %435 = vmatprep.subr.bf16.mxu0 %v339
    %436 = vmatpush1.bf16.msra.mxu0 %v338
    %437 = vmatprep.subr.bf16.mxu0 %v331
    %438 = vmatpush1.bf16.msra.mxu0 %v330
    %439 = vmatprep.subr.bf16.mxu0 %v323
    %440 = vmatpush1.bf16.msra.mxu0 %v322
    %441 = vmatprep.subr.bf16.mxu0 %v315
    %442 = vmatpush1.bf16.msra.mxu0 %v314
    %443 = vmatprep.subr.bf16.mxu0 %v307
    %444 = vmatpush1.bf16.msra.mxu0 %v306
    %445 = vmatprep.subr.bf16.mxu0 %v299
    %446 = vmatpush1.bf16.msra.mxu0 %v298
    %447 = vmatprep.subr.bf16.mxu0 0
    %448 = vmatpush2.bf16.msra.mxu0 0
    %449 = vmatprep.subr.bf16.mxu0 0
    %450 = vmatpush2.bf16.msra.mxu0 0
    %451 = vmatprep.subr.bf16.mxu0 0
    %452 = vmatpush2.bf16.msra.mxu0 0
    %453 = vmatprep.subr.bf16.mxu0 0
    %454 = vmatpush2.bf16.msra.mxu0 0
    %455 = vmatprep.subr.bf16.mxu0 0
    %456 = vmatpush2.bf16.msra.mxu0 0
    %457 = vmatprep.subr.bf16.mxu0 0
    %458 = vmatpush2.bf16.msra.mxu0 0
    %459 = vmatprep.subr.bf16.mxu0 0
    %460 = vmatpush2.bf16.msra.mxu0 0
    %461 = vmatprep.subr.bf16.mxu0 0
    %462 = vmatpush2.bf16.msra.mxu0 0
    %463 = vmatprep.mubr.bf16.mxu0 0
    %464 = vmatmul.mubr.bf16.gmra.mxu0 %v404
    %v465 = vpop.f32.mrf.mxu0
    %v466 = vadd.f32 %v93, %v465
    %v467 = vpop.f32.mrf.mxu0
    %v468 = vadd.f32 %v97, %v467
    %v469 = vpop.f32.mrf.mxu0
    %v470 = vpop.f32.mrf.mxu0
    %471 = vdwg.mxu0
    %472 = vmatprep.subr.bf16.mxu0 0
    %473 = vmatpush1.bf16.msra.mxu0 0
    %474 = vmatprep.subr.bf16.mxu0 %v417
    %475 = vmatpush1.bf16.msra.mxu0 %v414
    %476 = vmatprep.subr.bf16.mxu0 %v341
    %477 = vmatpush1.bf16.msra.mxu0 %v340
    %478 = vmatprep.subr.bf16.mxu0 %v333
    %479 = vmatpush1.bf16.msra.mxu0 %v332
    %480 = vmatprep.subr.bf16.mxu0 %v325
    %481 = vmatpush1.bf16.msra.mxu0 %v324
    %482 = vmatprep.subr.bf16.mxu0 %v317
    %483 = vmatpush1.bf16.msra.mxu0 %v316
    %484 = vmatprep.subr.bf16.mxu0 %v309
    %485 = vmatpush1.bf16.msra.mxu0 %v308
    %486 = vmatprep.subr.bf16.mxu0 %v301
    %487 = vmatpush1.bf16.msra.mxu0 %v300
    %488 = vmatprep.subr.bf16.mxu0 0
    %489 = vmatpush2.bf16.msra.mxu0 0
    %490 = vmatprep.subr.bf16.mxu0 0
    %491 = vmatpush2.bf16.msra.mxu0 0
    %492 = vmatprep.subr.bf16.mxu0 0
    %493 = vmatpush2.bf16.msra.mxu0 0
    %494 = vmatprep.subr.bf16.mxu0 0
    %495 = vmatpush2.bf16.msra.mxu0 0
    %496 = vmatprep.subr.bf16.mxu0 0
    %497 = vmatpush2.bf16.msra.mxu0 0
    %498 = vmatprep.subr.bf16.mxu0 0
    %499 = vmatpush2.bf16.msra.mxu0 0
    %500 = vmatprep.subr.bf16.mxu0 0
    %501 = vmatpush2.bf16.msra.mxu0 0
    %502 = vmatprep.subr.bf16.mxu0 0
    %503 = vmatpush2.bf16.msra.mxu0 0
    %504 = vmatprep.mubr.bf16.mxu0 0
    %505 = vmatmul.mubr.bf16.gmra.mxu0 %v404
    %v506 = vpop.f32.mrf.mxu0
    %v507 = vadd.f32 %v101, %v506
    %v508 = vpop.f32.mrf.mxu0
    %v509 = vadd.f32 %v105, %v508
    %v510 = vpop.f32.mrf.mxu0
    %v511 = vpop.f32.mrf.mxu0
    %512 = vdwg.mxu0
    %513 = vmatprep.subr.bf16.mxu0 0
    %514 = vmatpush1.bf16.msra.mxu0 0
    %515 = vmatprep.subr.bf16.mxu0 %v423
    %516 = vmatpush1.bf16.msra.mxu0 %v420
    %517 = vmatprep.subr.bf16.mxu0 %v343
    %518 = vmatpush1.bf16.msra.mxu0 %v342
    %519 = vmatprep.subr.bf16.mxu0 %v335
    %520 = vmatpush1.bf16.msra.mxu0 %v334
    %521 = vmatprep.subr.bf16.mxu0 %v327
    %522 = vmatpush1.bf16.msra.mxu0 %v326
    %523 = vmatprep.subr.bf16.mxu0 %v319
    %524 = vmatpush1.bf16.msra.mxu0 %v318
    %525 = vmatprep.subr.bf16.mxu0 %v311
    %526 = vmatpush1.bf16.msra.mxu0 %v310
    %527 = vmatprep.subr.bf16.mxu0 %v303
    %528 = vmatpush1.bf16.msra.mxu0 %v302
    %529 = vmatprep.subr.bf16.mxu0 0
    %530 = vmatpush2.bf16.msra.mxu0 0
    %531 = vmatprep.subr.bf16.mxu0 0
    %532 = vmatpush2.bf16.msra.mxu0 0
    %533 = vmatprep.subr.bf16.mxu0 0
    %534 = vmatpush2.bf16.msra.mxu0 0
    %535 = vmatprep.subr.bf16.mxu0 0
    %536 = vmatpush2.bf16.msra.mxu0 0
    %537 = vmatprep.subr.bf16.mxu0 0
    %538 = vmatpush2.bf16.msra.mxu0 0
    %539 = vmatprep.subr.bf16.mxu0 0
    %540 = vmatpush2.bf16.msra.mxu0 0
    %541 = vmatprep.subr.bf16.mxu0 0
    %542 = vmatpush2.bf16.msra.mxu0 0
    %543 = vmatprep.subr.bf16.mxu0 0
    %544 = vmatpush2.bf16.msra.mxu0 0
    %545 = vmatprep.mubr.bf16.mxu0 0
    %546 = vmatmul.mubr.bf16.gmra.mxu0 %v404
    %v547 = vpop.f32.mrf.mxu0
    %v548 = vadd.f32 %v109, %v547
    %v549 = vpop.f32.mrf.mxu0
    %v550 = vadd.f32 %v113, %v549
    %v551 = vpop.f32.mrf.mxu0
    %v552 = vpop.f32.mrf.mxu0
    %553 = vdwg.mxu0
    %554 = vmatprep.subr.bf16.mxu0 0
    %555 = vmatpush1.bf16.msra.mxu0 0
    %556 = vmatprep.subr.bf16.mxu0 %v429
    %557 = vmatpush1.bf16.msra.mxu0 %v426
    %558 = vmatprep.subr.bf16.mxu0 %v345
    %559 = vmatpush1.bf16.msra.mxu0 %v344
    %560 = vmatprep.subr.bf16.mxu0 %v337
    %561 = vmatpush1.bf16.msra.mxu0 %v336
    %562 = vmatprep.subr.bf16.mxu0 %v329
    %563 = vmatpush1.bf16.msra.mxu0 %v328
    %564 = vmatprep.subr.bf16.mxu0 %v321
    %565 = vmatpush1.bf16.msra.mxu0 %v320
    %566 = vmatprep.subr.bf16.mxu0 %v313
    %567 = vmatpush1.bf16.msra.mxu0 %v312
    %568 = vmatprep.subr.bf16.mxu0 %v305
    %569 = vmatpush1.bf16.msra.mxu0 %v304
    %570 = vmatprep.subr.bf16.mxu0 0
    %571 = vmatpush2.bf16.msra.mxu0 0
    %572 = vmatprep.subr.bf16.mxu0 0
    %573 = vmatpush2.bf16.msra.mxu0 0
    %574 = vmatprep.subr.bf16.mxu0 0
    %575 = vmatpush2.bf16.msra.mxu0 0
    %576 = vmatprep.subr.bf16.mxu0 0
    %577 = vmatpush2.bf16.msra.mxu0 0
    %578 = vmatprep.subr.bf16.mxu0 0
    %579 = vmatpush2.bf16.msra.mxu0 0
    %580 = vmatprep.subr.bf16.mxu0 0
    %581 = vmatpush2.bf16.msra.mxu0 0
    %582 = vmatprep.subr.bf16.mxu0 0
    %583 = vmatpush2.bf16.msra.mxu0 0
    %584 = vmatprep.subr.bf16.mxu0 0
    %585 = vmatpush2.bf16.msra.mxu0 0
    %586 = vmatprep.mubr.bf16.mxu0 0
    %587 = vmatmul.mubr.bf16.gmra.mxu0 %v404
    %v588 = vpop.f32.mrf.mxu0
    %v589 = vadd.f32 %v117, %v588
    %v590 = vpop.f32.mrf.mxu0
    %v591 = vadd.f32 %v121, %v590
    %v592 = vpop.f32.mrf.mxu0
    %v593 = vpop.f32.mrf.mxu0
    %594 = vdwg.mxu0
    %v603 = vcombine.low %v466, %v468
    %v604 = vcombine.low %v507, %v509
    %v606 = vunpack.c.l.s4 1983009808
    %v607 = vunpack.c.0.s8 %v606
    %v608 = vlaneseq
    %v609 = vshrl.u32 %v608, 7
    %v610 = vsub.s32 %v607, %v609
    %v611 = vrot.slane %v603, %v610
    %v613 = vunpack.c.l.s4 1983009808
    %v614 = vunpack.c.0.s8 %v613
    %v615 = vlaneseq
    %v616 = vshrl.u32 %v615, 7
    %v617 = vsub.s32 %v614, %v616
    %v618 = vrot.slane %v604, %v617
    %v619 = vcombine.low %v611, %v618
    %v620 = vcombine.low %v548, %v550
    %v621 = vcombine.low %v589, %v591
    %v623 = vunpack.c.l.s4 1983009808
    %v624 = vunpack.c.0.s8 %v623
    %v625 = vlaneseq
    %v626 = vshrl.u32 %v625, 7
    %v627 = vsub.s32 %v624, %v626
    %v628 = vrot.slane %v620, %v627
    %v630 = vunpack.c.l.s4 1983009808
    %v631 = vunpack.c.0.s8 %v630
    %v632 = vlaneseq
    %v633 = vshrl.u32 %v632, 7
    %v634 = vsub.s32 %v631, %v633
    %v635 = vrot.slane %v621, %v634
    %v636 = vcombine.low %v628, %v635
    %639 = vst [vmem:[%s3] sm:$0xff] %v619
    %640 = vst [vmem:[%s3 + $0x8] sm:$0xff] %v636
    %vm641 = vcmask 1041408
    %v642 = vsel %vm641, %v466, 0.0
    %v643 = vrot.slane %v642, 4
    %v644 = vadd.f32 %v642, %v643
    %v645 = vrot.slane %v644, 2
    %v646 = vadd.f32 %v644, %v645
    %v647 = vrot.slane %v646, 1
    %v648 = vadd.f32 %v646, %v647
    %v649 = vsel %vm641, %v468, 0.0
    %v650 = vrot.slane %v649, 4
    %v651 = vadd.f32 %v649, %v650
    %v652 = vrot.slane %v651, 2
    %v653 = vadd.f32 %v651, %v652
    %v654 = vrot.slane %v653, 1
    %v655 = vadd.f32 %v653, %v654
    %v656 = vsel %vm641, %v507, 0.0
    %v657 = vrot.slane %v656, 4
    %v658 = vadd.f32 %v656, %v657
    %v659 = vrot.slane %v658, 2
    %v660 = vadd.f32 %v658, %v659
    %v661 = vrot.slane %v660, 1
    %v662 = vadd.f32 %v660, %v661
    %v663 = vsel %vm641, %v509, 0.0
    %v664 = vrot.slane %v663, 4
    %v665 = vadd.f32 %v663, %v664
    %v666 = vrot.slane %v665, 2
    %v667 = vadd.f32 %v665, %v666
    %v668 = vrot.slane %v667, 1
    %v669 = vadd.f32 %v667, %v668
    %v670 = vsel %vm641, %v548, 0.0
    %v671 = vrot.slane %v670, 4
    %v672 = vadd.f32 %v670, %v671
    %v673 = vrot.slane %v672, 2
    %v674 = vadd.f32 %v672, %v673
    %v675 = vrot.slane %v674, 1
    %v676 = vadd.f32 %v674, %v675
    %v677 = vsel %vm641, %v550, 0.0
    %v678 = vrot.slane %v677, 4
    %v679 = vadd.f32 %v677, %v678
    %v680 = vrot.slane %v679, 2
    %v681 = vadd.f32 %v679, %v680
    %v682 = vrot.slane %v681, 1
    %v683 = vadd.f32 %v681, %v682
    %v684 = vsel %vm641, %v589, 0.0
    %v685 = vrot.slane %v684, 4
    %v686 = vadd.f32 %v684, %v685
    %v687 = vrot.slane %v686, 2
    %v688 = vadd.f32 %v686, %v687
    %v689 = vrot.slane %v688, 1
    %v690 = vadd.f32 %v688, %v689
    %v691 = vsel %vm641, %v591, 0.0
    %v692 = vrot.slane %v691, 4
    %v693 = vadd.f32 %v691, %v692
    %v694 = vrot.slane %v693, 2
    %v695 = vadd.f32 %v693, %v694
    %v696 = vrot.slane %v695, 1
    %v697 = vadd.f32 %v695, %v696
    %v698 = vmul.f32 %v466, %v466
    %v699 = vmul.f32 %v468, %v468
    %v700 = vmul.f32 %v507, %v507
    %v701 = vmul.f32 %v509, %v509
    %v702 = vmul.f32 %v548, %v548
    %v703 = vmul.f32 %v550, %v550
    %v704 = vmul.f32 %v589, %v589
    %v705 = vmul.f32 %v591, %v591
    %v706 = vsel %vm641, %v698, 0.0
    %v707 = vrot.slane %v706, 4
    %v708 = vadd.f32 %v706, %v707
    %v709 = vrot.slane %v708, 2
    %v710 = vadd.f32 %v708, %v709
    %v711 = vrot.slane %v710, 1
    %v712 = vadd.f32 %v710, %v711
    %v713 = vsel %vm641, %v699, 0.0
    %v714 = vrot.slane %v713, 4
    %v715 = vadd.f32 %v713, %v714
    %v716 = vrot.slane %v715, 2
    %v717 = vadd.f32 %v715, %v716
    %v718 = vrot.slane %v717, 1
    %v719 = vadd.f32 %v717, %v718
    %v720 = vsel %vm641, %v700, 0.0
    %v721 = vrot.slane %v720, 4
    %v722 = vadd.f32 %v720, %v721
    %v723 = vrot.slane %v722, 2
    %v724 = vadd.f32 %v722, %v723
    %v725 = vrot.slane %v724, 1
    %v726 = vadd.f32 %v724, %v725
    %v727 = vsel %vm641, %v701, 0.0
    %v728 = vrot.slane %v727, 4
    %v729 = vadd.f32 %v727, %v728
    %v730 = vrot.slane %v729, 2
    %v731 = vadd.f32 %v729, %v730
    %v732 = vrot.slane %v731, 1
    %v733 = vadd.f32 %v731, %v732
    %v734 = vsel %vm641, %v702, 0.0
    %v735 = vrot.slane %v734, 4
    %v736 = vadd.f32 %v734, %v735
    %v737 = vrot.slane %v736, 2
    %v738 = vadd.f32 %v736, %v737
    %v739 = vrot.slane %v738, 1
    %v740 = vadd.f32 %v738, %v739
    %v741 = vsel %vm641, %v703, 0.0
    %v742 = vrot.slane %v741, 4
    %v743 = vadd.f32 %v741, %v742
    %v744 = vrot.slane %v743, 2
    %v745 = vadd.f32 %v743, %v744
    %v746 = vrot.slane %v745, 1
    %v747 = vadd.f32 %v745, %v746
    %v748 = vsel %vm641, %v704, 0.0
    %v749 = vrot.slane %v748, 4
    %v750 = vadd.f32 %v748, %v749
    %v751 = vrot.slane %v750, 2
    %v752 = vadd.f32 %v750, %v751
    %v753 = vrot.slane %v752, 1
    %v754 = vadd.f32 %v752, %v753
    %v755 = vsel %vm641, %v705, 0.0
    %v756 = vrot.slane %v755, 4
    %v757 = vadd.f32 %v755, %v756
    %v758 = vrot.slane %v757, 2
    %v759 = vadd.f32 %v757, %v758
    %v760 = vrot.slane %v759, 1
    %v761 = vadd.f32 %v759, %v760
    %vm762 = vcmask 1040384
    %v763 = vsel %vm762, %v648, %v712
    %v764 = vsel %vm762, %v655, %v719
    %v765 = vsel %vm762, %v662, %v726
    %v766 = vsel %vm762, %v669, %v733
    %v767 = vsel %vm762, %v676, %v740
    %v768 = vsel %vm762, %v683, %v747
    %v769 = vsel %vm762, %v690, %v754
    %v770 = vsel %vm762, %v697, %v761
    %v779 = vcombine.low %v763, %v764
    %v780 = vcombine.low %v765, %v766
    %v782 = vunpack.c.l.s4 1983009808
    %v783 = vunpack.c.0.s8 %v782
    %v784 = vlaneseq
    %v785 = vshrl.u32 %v784, 7
    %v786 = vsub.s32 %v783, %v785
    %v787 = vrot.slane %v779, %v786
    %v789 = vunpack.c.l.s4 1983009808
    %v790 = vunpack.c.0.s8 %v789
    %v791 = vlaneseq
    %v792 = vshrl.u32 %v791, 7
    %v793 = vsub.s32 %v790, %v792
    %v794 = vrot.slane %v780, %v793
    %v795 = vcombine.low %v787, %v794
    %v796 = vcombine.low %v767, %v768
    %v797 = vcombine.low %v769, %v770
    %v799 = vunpack.c.l.s4 1983009808
    %v800 = vunpack.c.0.s8 %v799
    %v801 = vlaneseq
    %v802 = vshrl.u32 %v801, 7
    %v803 = vsub.s32 %v800, %v802
    %v804 = vrot.slane %v796, %v803
    %v806 = vunpack.c.l.s4 1983009808
    %v807 = vunpack.c.0.s8 %v806
    %v808 = vlaneseq
    %v809 = vshrl.u32 %v808, 7
    %v810 = vsub.s32 %v807, %v809
    %v811 = vrot.slane %v797, %v810
    %v812 = vcombine.low %v804, %v811
    %815 = vst [vmem:[%s4] sm:$0xff] %v795
    %816 = vst [vmem:[%s4 + $0x8] sm:$0xff] %v812
    // Predicated region
    $region18: #{generator_forward.7} parent=1 // pred_check
      _
    $region19: #{generator_forward.7} parent=1 // pred_check_branch
      %818 = sbr.rel (0) target = $region21
    $region20: #{generator_forward.7} parent=1 // pred_region
      _
    $region21: #{generator_forward.7} parent=1 // pred_fallthru
      _
    // Predicated region
    $region22: #{generator_forward.7} parent=1 // pred_check
      _
    $region23: #{generator_forward.7} parent=1 // pred_check_branch
      %820 = sbr.rel (0) target = $region25
    $region24: #{generator_forward.7} parent=1 // pred_region
      _
    $region25: #{generator_forward.7} parent=1 // pred_fallthru
      _
    // Predicated region
    $region26: #{generator_forward.7} parent=1 // pred_check
      _
    $region27: #{generator_forward.7} parent=1 // pred_check_branch
      %822 = sbr.rel (0) target = $region29
    $region28: #{generator_forward.7} parent=1 // pred_region
      _
    $region29: #{generator_forward.7} parent=1 // pred_fallthru
      _
    // Predicated region
    $region30: #{generator_forward.7} parent=1 // pred_check
      _
    $region31: #{generator_forward.7} parent=1 // pred_check_branch
      %824 = sbr.rel (0) target = $region33
    $region32: #{generator_forward.7} parent=1 // pred_region
      _
    $region33: #{generator_forward.7} parent=1 // pred_fallthru
      _
    %825 = vsyncpa [#allocation3], 1

// kernel: generator_forward.10
$region0: #{generator_forward.10}
  #allocation0 [shape = 'u32[]', space=smem, size = 0x4, offset = 0x4, fixed_abs, tag = 'smem constant byte address 0x4 - core index']
  #allocation1 [shape = 'u32[144,128]{1,0:T(1,128)}', space=vmem, size = 0x12000, scoped, tag = 'internal scratch']
  %s0 = inlined_call_operand.vmem [shape: f32[32,128], index: 0, kind: input, shape index: {}]
  %s1 = inlined_call_operand.vmem [shape: f32[1,128], index: 1, kind: input, shape index: {}]
  %s2 = inlined_call_operand.vmem [shape: f32[1,128], index: 2, kind: input, shape index: {}]
  %s3 = inlined_call_operand.vmem [shape: bf16[32,128], index: 3, kind: output, shape index: {}]
  %s4 = sld [smem:[#allocation0]]
  $region22: #{generator_forward.10} parent=0
    _
  %s6 = ssub.s32 1, %s4
  %s7 = scalar_select 0, %s6, %s4
  // Predicated region
  $region2: #{generator_forward.10} parent=0 // pred_check
    _
  $region3: #{generator_forward.10} parent=0 // pred_check_branch
    %9 = sbr.rel (0) target = $region5
  $region4: #{generator_forward.10} parent=0 // pred_region
    _
  $region5: #{generator_forward.10} parent=0 // pred_fallthru
    _
  // Predicated region
  $region6: #{generator_forward.10} parent=0 // pred_check
    _
  $region7: #{generator_forward.10} parent=0 // pred_check_branch
    %11 = sbr.rel (0) target = $region9
  $region8: #{generator_forward.10} parent=0 // pred_region
    _
  $region9: #{generator_forward.10} parent=0 // pred_fallthru
    _
  // Predicated region
  $region10: #{generator_forward.10} parent=0 // pred_check
    _
  $region11: #{generator_forward.10} parent=0 // pred_check_branch
    %13 = sbr.rel (0) target = $region13
  $region12: #{generator_forward.10} parent=0 // pred_region
    _
  $region13: #{generator_forward.10} parent=0 // pred_fallthru
    _
  %v14 = vld [vmem:[%s0] sm:$0xff]
  %v15 = vld [vmem:[%s0 + $0x8] sm:$0xff]
  %v16 = vld [vmem:[%s0 + $0x10] sm:$0xff]
  %v17 = vld [vmem:[%s0 + $0x18] sm:$0xff]
  %v18 = vld [vmem:[%s1] sm:$0x1]
  %v20 = vlaneseq
  %v21 = vshrl.u32 %v20, 7
  %v22 = vsub.s32 0, %v21
  %v23 = vrot.slane %v18, %v22
  %v25 = vmul.f32 %v14, %v23
  %v26 = vmul.f32 %v15, %v23
  %v27 = vmul.f32 %v16, %v23
  %v28 = vmul.f32 %v17, %v23
  %v29 = vld [vmem:[%s2] sm:$0x1]
  %v31 = vlaneseq
  %v32 = vshrl.u32 %v31, 7
  %v33 = vsub.s32 0, %v32
  %v34 = vrot.slane %v29, %v33
  %v36 = vadd.f32 %v25, %v34
  %v37 = vadd.f32 %v26, %v34
  %v38 = vadd.f32 %v27, %v34
  %v39 = vadd.f32 %v28, %v34
  %v40 = vmax.f32 %v36, 0.0
  %v41 = vmax.f32 %v37, 0.0
  %v42 = vmax.f32 %v38, 0.0
  %v43 = vmax.f32 %v39, 0.0
  %v44 = vpack.c.bf16 %v41, %v40
  %v45 = vpack.c.bf16 %v43, %v42
  %v48 = vunpack.c.l.b16 %v44
  %v49 = vunpack.c.h.b16 %v44
  %v50 = vunpack.c.l.b16 %v45
  %v51 = vunpack.c.h.b16 %v45
  %v52 = vpack.c.b16 %v48, %v48
  %v53 = vpack.c.b16 %v49, %v49
  %v54 = vpack.c.b16 %v50, %v50
  %v55 = vpack.c.b16 %v51, %v51
  %60 = vst [vmem:[%s3] sm:$0xf] %v52
  %61 = vst [vmem:[%s3 + $0x4] sm:$0xf] %v53
  %62 = vst [vmem:[%s3 + $0x8] sm:$0xf] %v54
  %63 = vst [vmem:[%s3 + $0xc] sm:$0xf] %v55
  // Predicated region
  $region14: #{generator_forward.10} parent=0 // pred_check
    _
  $region15: #{generator_forward.10} parent=0 // pred_check_branch
    %65 = sbr.rel (0) target = $region17
  $region16: #{generator_forward.10} parent=0 // pred_region
    _
  $region17: #{generator_forward.10} parent=0 // pred_fallthru
    _
  // Predicated region
  $region18: #{generator_forward.10} parent=0 // pred_check
    _
  $region19: #{generator_forward.10} parent=0 // pred_check_branch
    %67 = sbr.rel (0) target = $region21
  $region20: #{generator_forward.10} parent=0 // pred_region
    _
  $region21: #{generator_forward.10} parent=0 // pred_fallthru
    _

// kernel: generator_forward.9
$region0: #{generator_forward.9}
  #allocation0 [shape = 'u32[]', space=smem, size = 0x4, offset = 0x4, fixed_abs, tag = 'smem constant byte address 0x4 - core index']
  #allocation1 [shape = 'u32[144,128]{1,0:T(1,128)}', space=vmem, size = 0x12000, scoped, tag = 'internal scratch']
  %s0 = inlined_call_operand.vmem [shape: bf16[32,576], index: 0, kind: input, shape index: {}]
  %s1 = inlined_call_operand.vmem [shape: bf16[576,128], index: 1, kind: input, shape index: {}]
  %s2 = inlined_call_operand.vmem [shape: f32[1,128], index: 2, kind: input, shape index: {}]
  %s3 = inlined_call_operand.vmem [shape: f32[32,128], index: 3, kind: output, shape index: {0}]
  %s4 = inlined_call_operand.vmem [shape: f32[1,2,128], index: 4, kind: output, shape index: {1}]
  %5 = xla_tuple %s3, %s4
  %s6 = sld [smem:[#allocation0]]
  $region30: #{generator_forward.9} parent=0
    _
  %s8 = ssub.s32 1, %s6
  %s9 = scalar_select 0, %s8, %s6
  // Predicated region
  $region2: #{generator_forward.9} parent=0 // pred_check
    _
  $region3: #{generator_forward.9} parent=0 // pred_check_branch
    %11 = sbr.rel (0) target = $region5
  $region4: #{generator_forward.9} parent=0 // pred_region
    _
  $region5: #{generator_forward.9} parent=0 // pred_fallthru
    _
  // Predicated region
  $region6: #{generator_forward.9} parent=0 // pred_check
    _
  $region7: #{generator_forward.9} parent=0 // pred_check_branch
    %13 = sbr.rel (0) target = $region9
  $region8: #{generator_forward.9} parent=0 // pred_region
    _
  $region9: #{generator_forward.9} parent=0 // pred_fallthru
    _
  // Predicated region
  $region10: #{generator_forward.9} parent=0 // pred_check
    _
  $region11: #{generator_forward.9} parent=0 // pred_check_branch
    %15 = sbr.rel (0) target = $region13
  $region12: #{generator_forward.9} parent=0 // pred_region
    _
  $region13: #{generator_forward.9} parent=0 // pred_fallthru
    _
  %v17 = vld [vmem:[%s0] sm:$0xff]
  %v18 = vld [vmem:[%s0 + $0x8] sm:$0xff]
  %v19 = vld [vmem:[%s0 + $0x10] sm:$0xf]
  %v20 = vld [vmem:[%s0 + $0x14] sm:$0xff]
  %v21 = vld [vmem:[%s0 + $0x1c] sm:$0xff]
  %v22 = vld [vmem:[%s0 + $0x24] sm:$0xf]
  %v23 = vld [vmem:[%s0 + $0x28] sm:$0xff]
  %v24 = vld [vmem:[%s0 + $0x30] sm:$0xff]
  %v25 = vld [vmem:[%s0 + $0x38] sm:$0xf]
  %v26 = vld [vmem:[%s0 + $0x3c] sm:$0xff]
  %v27 = vld [vmem:[%s0 + $0x44] sm:$0xff]
  %v28 = vld [vmem:[%s0 + $0x4c] sm:$0xf]
  %v29 = vld [vmem:[%s1] sm:$0xf]
  %v30 = vld [vmem:[%s1 + $0x4] sm:$0xf]
  %v31 = vld [vmem:[%s1 + $0x8] sm:$0xf]
  %v32 = vld [vmem:[%s1 + $0xc] sm:$0xf]
  %v33 = vld [vmem:[%s1 + $0x10] sm:$0xf]
  %v34 = vld [vmem:[%s1 + $0x14] sm:$0xf]
  %v35 = vld [vmem:[%s1 + $0x18] sm:$0xf]
  %v36 = vld [vmem:[%s1 + $0x1c] sm:$0xf]
  %v37 = vld [vmem:[%s1 + $0x20] sm:$0xf]
  %v38 = vld [vmem:[%s1 + $0x24] sm:$0xf]
  %v39 = vld [vmem:[%s1 + $0x28] sm:$0xf]
  %v40 = vld [vmem:[%s1 + $0x2c] sm:$0xf]
  %v41 = vld [vmem:[%s1 + $0x30] sm:$0xf]
  %v42 = vld [vmem:[%s1 + $0x34] sm:$0xf]
  %v43 = vld [vmem:[%s1 + $0x38] sm:$0xf]
  %v44 = vld [vmem:[%s1 + $0x3c] sm:$0xf]
  %v45 = vld [vmem:[%s1 + $0x40] sm:$0xf]
  %v46 = vld [vmem:[%s1 + $0x44] sm:$0xf]
  %v47 = vld [vmem:[%s1 + $0x48] sm:$0xf]
  %v48 = vld [vmem:[%s1 + $0x4c] sm:$0xf]
  %v49 = vld [vmem:[%s1 + $0x50] sm:$0xf]
  %v50 = vld [vmem:[%s1 + $0x54] sm:$0xf]
  %v51 = vld [vmem:[%s1 + $0x58] sm:$0xf]
  %v52 = vld [vmem:[%s1 + $0x5c] sm:$0xf]
  %v53 = vld [vmem:[%s1 + $0x60] sm:$0xf]
  %v54 = vld [vmem:[%s1 + $0x64] sm:$0xf]
  %v55 = vld [vmem:[%s1 + $0x68] sm:$0xf]
  %v56 = vld [vmem:[%s1 + $0x6c] sm:$0xf]
  %v57 = vld [vmem:[%s1 + $0x70] sm:$0xf]
  %v58 = vld [vmem:[%s1 + $0x74] sm:$0xf]
  %v59 = vld [vmem:[%s1 + $0x78] sm:$0xf]
  %v60 = vld [vmem:[%s1 + $0x7c] sm:$0xf]
  %v61 = vld [vmem:[%s1 + $0x80] sm:$0xf]
  %v62 = vld [vmem:[%s1 + $0x84] sm:$0xf]
  %v63 = vld [vmem:[%s1 + $0x88] sm:$0xf]
  %v64 = vld [vmem:[%s1 + $0x8c] sm:$0xf]
  %v65 = vld [vmem:[%s1 + $0x90] sm:$0xf]
  %v66 = vld [vmem:[%s1 + $0x94] sm:$0xf]
  %v67 = vld [vmem:[%s1 + $0x98] sm:$0xf]
  %v68 = vld [vmem:[%s1 + $0x9c] sm:$0xf]
  %v69 = vld [vmem:[%s1 + $0xa0] sm:$0xf]
  %v70 = vld [vmem:[%s1 + $0xa4] sm:$0xf]
  %v71 = vld [vmem:[%s1 + $0xa8] sm:$0xf]
  %v72 = vld [vmem:[%s1 + $0xac] sm:$0xf]
  %v73 = vld [vmem:[%s1 + $0xb0] sm:$0xf]
  %v74 = vld [vmem:[%s1 + $0xb4] sm:$0xf]
  %v75 = vld [vmem:[%s1 + $0xb8] sm:$0xf]
  %v76 = vld [vmem:[%s1 + $0xbc] sm:$0xf]
  %v77 = vld [vmem:[%s1 + $0xc0] sm:$0xf]
  %v78 = vld [vmem:[%s1 + $0xc4] sm:$0xf]
  %v79 = vld [vmem:[%s1 + $0xc8] sm:$0xf]
  %v80 = vld [vmem:[%s1 + $0xcc] sm:$0xf]
  %v81 = vld [vmem:[%s1 + $0xd0] sm:$0xf]
  %v82 = vld [vmem:[%s1 + $0xd4] sm:$0xf]
  %v83 = vld [vmem:[%s1 + $0xd8] sm:$0xf]
  %v84 = vld [vmem:[%s1 + $0xdc] sm:$0xf]
  %v85 = vld [vmem:[%s1 + $0xe0] sm:$0xf]
  %v86 = vld [vmem:[%s1 + $0xe4] sm:$0xf]
  %v87 = vld [vmem:[%s1 + $0xe8] sm:$0xf]
  %v88 = vld [vmem:[%s1 + $0xec] sm:$0xf]
  %v89 = vld [vmem:[%s1 + $0xf0] sm:$0xf]
  %v90 = vld [vmem:[%s1 + $0xf4] sm:$0xf]
  %v91 = vld [vmem:[%s1 + $0xf8] sm:$0xf]
  %v92 = vld [vmem:[%s1 + $0xfc] sm:$0xf]
  %v93 = vld [vmem:[%s1 + $0x100] sm:$0xf]
  %v94 = vld [vmem:[%s1 + $0x104] sm:$0xf]
  %v95 = vld [vmem:[%s1 + $0x108] sm:$0xf]
  %v96 = vld [vmem:[%s1 + $0x10c] sm:$0xf]
  %v97 = vld [vmem:[%s1 + $0x110] sm:$0xf]
  %v98 = vld [vmem:[%s1 + $0x114] sm:$0xf]
  %v99 = vld [vmem:[%s1 + $0x118] sm:$0xf]
  %v100 = vld [vmem:[%s1 + $0x11c] sm:$0xf]
  %v101 = vld [vmem:[%s2] sm:$0x1]
  %v103 = vlaneseq
  %v104 = vshrl.u32 %v103, 7
  %v105 = vsub.s32 0, %v104
  %v106 = vrot.slane %v101, %v105
  %v120 = vunpack.c.l.b16 %v17
  %v121 = vunpack.c.h.b16 %v17
  %v122 = vunpack.c.l.b16 %v18
  %v123 = vunpack.c.h.b16 %v18
  %v124 = vunpack.c.l.b16 %v19
  %v125 = vunpack.c.l.b16 %v20
  %v126 = vunpack.c.h.b16 %v20
  %v127 = vunpack.c.l.b16 %v21
  %v128 = vunpack.c.h.b16 %v21
  %v129 = vunpack.c.l.b16 %v22
  %v130 = vunpack.c.l.b16 %v23
  %v131 = vunpack.c.h.b16 %v23
  %v132 = vunpack.c.l.b16 %v24
  %v133 = vunpack.c.h.b16 %v24
  %v134 = vunpack.c.l.b16 %v25
  %v135 = vunpack.c.l.b16 %v26
  %v136 = vunpack.c.h.b16 %v26
  %v137 = vunpack.c.l.b16 %v27
  %v138 = vunpack.c.h.b16 %v27
  %v139 = vunpack.c.l.b16 %v28
  %v140 = vpack.c.b16 %v125, %v120
  %v141 = vpack.c.b16 %v126, %v121
  %v142 = vpack.c.b16 %v127, %v122
  %v143 = vpack.c.b16 %v128, %v123
  %v144 = vpack.c.b16 %v129, %v124
  %v145 = vpack.c.b16 %v135, %v130
  %v146 = vpack.c.b16 %v136, %v131
  %v147 = vpack.c.b16 %v137, %v132
  %v148 = vpack.c.b16 %v138, %v133
  %v149 = vpack.c.b16 %v139, %v134
  %v230 = vunpack.c.l.b16 %v29
  %v231 = vunpack.c.l.b16 %v30
  %v232 = vunpack.c.l.b16 %v31
  %v233 = vunpack.c.l.b16 %v32
  %v234 = vunpack.c.l.b16 %v33
  %v235 = vunpack.c.l.b16 %v34
  %v236 = vunpack.c.l.b16 %v35
  %v237 = vunpack.c.l.b16 %v36
  %v238 = vunpack.c.l.b16 %v37
  %v239 = vunpack.c.l.b16 %v38
  %v240 = vunpack.c.l.b16 %v39
  %v241 = vunpack.c.l.b16 %v40
  %v242 = vunpack.c.l.b16 %v41
  %v243 = vunpack.c.l.b16 %v42
  %v244 = vunpack.c.l.b16 %v43
  %v245 = vunpack.c.l.b16 %v44
  %v246 = vunpack.c.l.b16 %v45
  %v247 = vunpack.c.l.b16 %v46
  %v248 = vunpack.c.l.b16 %v47
  %v249 = vunpack.c.l.b16 %v48
  %v250 = vunpack.c.l.b16 %v49
  %v251 = vunpack.c.l.b16 %v50
  %v252 = vunpack.c.l.b16 %v51
  %v253 = vunpack.c.l.b16 %v52
  %v254 = vunpack.c.l.b16 %v53
  %v255 = vunpack.c.l.b16 %v54
  %v256 = vunpack.c.l.b16 %v55
  %v257 = vunpack.c.l.b16 %v56
  %v258 = vunpack.c.l.b16 %v57
  %v259 = vunpack.c.l.b16 %v58
  %v260 = vunpack.c.l.b16 %v59
  %v261 = vunpack.c.l.b16 %v60
  %v262 = vunpack.c.l.b16 %v61
  %v263 = vunpack.c.l.b16 %v62
  %v264 = vunpack.c.l.b16 %v63
  %v265 = vunpack.c.l.b16 %v64
  %v266 = vunpack.c.l.b16 %v65
  %v267 = vunpack.c.l.b16 %v66
  %v268 = vunpack.c.l.b16 %v67
  %v269 = vunpack.c.l.b16 %v68
  %v270 = vunpack.c.l.b16 %v69
  %v271 = vunpack.c.l.b16 %v70
  %v272 = vunpack.c.l.b16 %v71
  %v273 = vunpack.c.l.b16 %v72
  %v274 = vunpack.c.l.b16 %v73
  %v275 = vunpack.c.l.b16 %v74
  %v276 = vunpack.c.l.b16 %v75
  %v277 = vunpack.c.l.b16 %v76
  %v278 = vunpack.c.l.b16 %v77
  %v279 = vunpack.c.l.b16 %v78
  %v280 = vunpack.c.l.b16 %v79
  %v281 = vunpack.c.l.b16 %v80
  %v282 = vunpack.c.l.b16 %v81
  %v283 = vunpack.c.l.b16 %v82
  %v284 = vunpack.c.l.b16 %v83
  %v285 = vunpack.c.l.b16 %v84
  %v286 = vunpack.c.l.b16 %v85
  %v287 = vunpack.c.l.b16 %v86
  %v288 = vunpack.c.l.b16 %v87
  %v289 = vunpack.c.l.b16 %v88
  %v290 = vunpack.c.l.b16 %v89
  %v291 = vunpack.c.l.b16 %v90
  %v292 = vunpack.c.l.b16 %v91
  %v293 = vunpack.c.l.b16 %v92
  %v294 = vunpack.c.l.b16 %v93
  %v295 = vunpack.c.l.b16 %v94
  %v296 = vunpack.c.l.b16 %v95
  %v297 = vunpack.c.l.b16 %v96
  %v298 = vunpack.c.l.b16 %v97
  %v299 = vunpack.c.l.b16 %v98
  %v300 = vunpack.c.l.b16 %v99
  %v301 = vunpack.c.l.b16 %v100
  %v302 = vpack.c.b16 %v231, %v230
  %v303 = vpack.c.b16 %v233, %v232
  %v304 = vpack.c.b16 %v235, %v234
  %v305 = vpack.c.b16 %v237, %v236
  %v306 = vpack.c.b16 %v239, %v238
  %v307 = vpack.c.b16 %v241, %v240
  %v308 = vpack.c.b16 %v243, %v242
  %v309 = vpack.c.b16 %v245, %v244
  %v310 = vpack.c.b16 %v247, %v246
  %v311 = vpack.c.b16 %v249, %v248
  %v312 = vpack.c.b16 %v251, %v250
  %v313 = vpack.c.b16 %v253, %v252
  %v314 = vpack.c.b16 %v255, %v254
  %v315 = vpack.c.b16 %v257, %v256
  %v316 = vpack.c.b16 %v259, %v258
  %v317 = vpack.c.b16 %v261, %v260
  %v318 = vpack.c.b16 %v263, %v262
  %v319 = vpack.c.b16 %v265, %v264
  %v320 = vpack.c.b16 %v267, %v266
  %v321 = vpack.c.b16 %v269, %v268
  %v322 = vpack.c.b16 %v271, %v270
  %v323 = vpack.c.b16 %v273, %v272
  %v324 = vpack.c.b16 %v275, %v274
  %v325 = vpack.c.b16 %v277, %v276
  %v326 = vpack.c.b16 %v279, %v278
  %v327 = vpack.c.b16 %v281, %v280
  %v328 = vpack.c.b16 %v283, %v282
  %v329 = vpack.c.b16 %v285, %v284
  %v330 = vpack.c.b16 %v287, %v286
  %v331 = vpack.c.b16 %v289, %v288
  %v332 = vpack.c.b16 %v291, %v290
  %v333 = vpack.c.b16 %v293, %v292
  %v334 = vpack.c.b16 %v295, %v294
  %v335 = vpack.c.b16 %v297, %v296
  %v336 = vpack.c.b16 %v299, %v298
  %v337 = vpack.c.b16 %v301, %v300
  %vm374 = vcmask 523264
  %v376 = vsel %vm374, %v144, 0
  %v379 = vsel %vm374, %v149, 0
  %381 = vmatprep.subr.bf16.mxu0 0
  %382 = vmatpush1.bf16.msra.mxu0 %v309
  %383 = vmatprep.subr.bf16.mxu0 0
  %384 = vmatpush1.bf16.msra.mxu0 %v308
  %385 = vmatprep.subr.bf16.mxu0 0
  %386 = vmatpush1.bf16.msra.mxu0 %v307
  %387 = vmatprep.subr.bf16.mxu0 0
  %388 = vmatpush1.bf16.msra.mxu0 %v306
  %389 = vmatprep.subr.bf16.mxu0 0
  %390 = vmatpush1.bf16.msra.mxu0 %v305
  %391 = vmatprep.subr.bf16.mxu0 0
  %392 = vmatpush1.bf16.msra.mxu0 %v304
  %393 = vmatprep.subr.bf16.mxu0 0
  %394 = vmatpush1.bf16.msra.mxu0 %v303
  %395 = vmatprep.subr.bf16.mxu0 0
  %396 = vmatpush1.bf16.msra.mxu0 %v302
  %397 = vmatprep.subr.bf16.mxu0 0
  %398 = vmatpush2.bf16.msra.mxu0 %v317
  %399 = vmatprep.subr.bf16.mxu0 0
  %400 = vmatpush2.bf16.msra.mxu0 %v316
  %401 = vmatprep.subr.bf16.mxu0 0
  %402 = vmatpush2.bf16.msra.mxu0 %v315
  %403 = vmatprep.subr.bf16.mxu0 0
  %404 = vmatpush2.bf16.msra.mxu0 %v314
  %405 = vmatprep.subr.bf16.mxu0 0
  %406 = vmatpush2.bf16.msra.mxu0 %v313
  %407 = vmatprep.subr.bf16.mxu0 0
  %408 = vmatpush2.bf16.msra.mxu0 %v312
  %409 = vmatprep.subr.bf16.mxu0 0
  %410 = vmatpush2.bf16.msra.mxu0 %v311
  %411 = vmatprep.subr.bf16.mxu0 0
  %412 = vmatpush2.bf16.msra.mxu0 %v310
  %413 = vmatprep.mubr.bf16.mxu0 %v141
  %414 = vmatmul.mubr.bf16.gmra.mxu0 %v140
  %v415 = vpop.f32.mrf.mxu0
  %v416 = vadd.f32 %v106, %v415
  %v417 = vpop.f32.mrf.mxu0
  %v418 = vpop.f32.mrf.mxu0
  %v419 = vadd.f32 %v106, %v418
  %v420 = vpop.f32.mrf.mxu0
  %421 = vmatprep.mubr.bf16.mxu0 %v146
  %422 = vmatmul.mubr.bf16.gmra.mxu0 %v145
  %v423 = vpop.f32.mrf.mxu0
  %v424 = vadd.f32 %v106, %v423
  %v425 = vpop.f32.mrf.mxu0
  %v426 = vpop.f32.mrf.mxu0
  %v427 = vadd.f32 %v106, %v426
  %v428 = vpop.f32.mrf.mxu0
  %429 = vdwg.mxu0
  %430 = vmatprep.subr.bf16.mxu0 0
  %431 = vmatpush1.bf16.msra.mxu0 %v325
  %432 = vmatprep.subr.bf16.mxu0 0
  %433 = vmatpush1.bf16.msra.mxu0 %v324
  %434 = vmatprep.subr.bf16.mxu0 0
  %435 = vmatpush1.bf16.msra.mxu0 %v323
  %436 = vmatprep.subr.bf16.mxu0 0
  %437 = vmatpush1.bf16.msra.mxu0 %v322
  %438 = vmatprep.subr.bf16.mxu0 0
  %439 = vmatpush1.bf16.msra.mxu0 %v321
  %440 = vmatprep.subr.bf16.mxu0 0
  %441 = vmatpush1.bf16.msra.mxu0 %v320
  %442 = vmatprep.subr.bf16.mxu0 0
  %443 = vmatpush1.bf16.msra.mxu0 %v319
  %444 = vmatprep.subr.bf16.mxu0 0
  %445 = vmatpush1.bf16.msra.mxu0 %v318
  %446 = vmatprep.subr.bf16.mxu0 0
  %447 = vmatpush2.bf16.msra.mxu0 %v333
  %448 = vmatprep.subr.bf16.mxu0 0
  %449 = vmatpush2.bf16.msra.mxu0 %v332
  %450 = vmatprep.subr.bf16.mxu0 0
  %451 = vmatpush2.bf16.msra.mxu0 %v331
  %452 = vmatprep.subr.bf16.mxu0 0
  %453 = vmatpush2.bf16.msra.mxu0 %v330
  %454 = vmatprep.subr.bf16.mxu0 0
  %455 = vmatpush2.bf16.msra.mxu0 %v329
  %456 = vmatprep.subr.bf16.mxu0 0
  %457 = vmatpush2.bf16.msra.mxu0 %v328
  %458 = vmatprep.subr.bf16.mxu0 0
  %459 = vmatpush2.bf16.msra.mxu0 %v327
  %460 = vmatprep.subr.bf16.mxu0 0
  %461 = vmatpush2.bf16.msra.mxu0 %v326
  %462 = vmatprep.mubr.bf16.mxu0 %v143
  %463 = vmatmul.mubr.bf16.gmra.mxu0 %v142
  %v464 = vpop.f32.mrf.mxu0
  %v465 = vadd.f32 %v416, %v464
  %v466 = vpop.f32.mrf.mxu0
  %v467 = vpop.f32.mrf.mxu0
  %v468 = vadd.f32 %v419, %v467
  %v469 = vpop.f32.mrf.mxu0
  %470 = vmatprep.mubr.bf16.mxu0 %v148
  %471 = vmatmul.mubr.bf16.gmra.mxu0 %v147
  %v472 = vpop.f32.mrf.mxu0
  %v473 = vadd.f32 %v424, %v472
  %v474 = vpop.f32.mrf.mxu0
  %v475 = vpop.f32.mrf.mxu0
  %v476 = vadd.f32 %v427, %v475
  %v477 = vpop.f32.mrf.mxu0
  %478 = vdwg.mxu0
  %479 = vmatprep.subr.bf16.mxu0 0
  %480 = vmatpush1.bf16.msra.mxu0 0
  %481 = vmatprep.subr.bf16.mxu0 0
  %482 = vmatpush1.bf16.msra.mxu0 0
  %483 = vmatprep.subr.bf16.mxu0 0
  %484 = vmatpush1.bf16.msra.mxu0 0
  %485 = vmatprep.subr.bf16.mxu0 0
  %486 = vmatpush1.bf16.msra.mxu0 0
  %487 = vmatprep.subr.bf16.mxu0 0
  %488 = vmatpush1.bf16.msra.mxu0 %v337
  %489 = vmatprep.subr.bf16.mxu0 0
  %490 = vmatpush1.bf16.msra.mxu0 %v336
  %491 = vmatprep.subr.bf16.mxu0 0
  %492 = vmatpush1.bf16.msra.mxu0 %v335
  %493 = vmatprep.subr.bf16.mxu0 0
  %494 = vmatpush1.bf16.msra.mxu0 %v334
  %495 = vmatprep.subr.bf16.mxu0 0
  %496 = vmatpush2.bf16.msra.mxu0 0
  %497 = vmatprep.subr.bf16.mxu0 0
  %498 = vmatpush2.bf16.msra.mxu0 0
  %499 = vmatprep.subr.bf16.mxu0 0
  %500 = vmatpush2.bf16.msra.mxu0 0
  %501 = vmatprep.subr.bf16.mxu0 0
  %502 = vmatpush2.bf16.msra.mxu0 0
  %503 = vmatprep.subr.bf16.mxu0 0
  %504 = vmatpush2.bf16.msra.mxu0 0
  %505 = vmatprep.subr.bf16.mxu0 0
  %506 = vmatpush2.bf16.msra.mxu0 0
  %507 = vmatprep.subr.bf16.mxu0 0
  %508 = vmatpush2.bf16.msra.mxu0 0
  %509 = vmatprep.subr.bf16.mxu0 0
  %510 = vmatpush2.bf16.msra.mxu0 0
  %511 = vmatprep.mubr.bf16.mxu0 0
  %512 = vmatmul.mubr.bf16.gmra.mxu0 %v376
  %v513 = vpop.f32.mrf.mxu0
  %v514 = vadd.f32 %v465, %v513
  %v515 = vpop.f32.mrf.mxu0
  %v516 = vpop.f32.mrf.mxu0
  %v517 = vadd.f32 %v468, %v516
  %v518 = vpop.f32.mrf.mxu0
  %519 = vmatprep.mubr.bf16.mxu0 0
  %520 = vmatmul.mubr.bf16.gmra.mxu0 %v379
  %v521 = vpop.f32.mrf.mxu0
  %v522 = vadd.f32 %v473, %v521
  %v523 = vpop.f32.mrf.mxu0
  %v524 = vpop.f32.mrf.mxu0
  %v525 = vadd.f32 %v476, %v524
  %v526 = vpop.f32.mrf.mxu0
  %527 = vdwg.mxu0
  %528 = vst [vmem:[%s3] sm:$0xff] %v514
  %529 = vst [vmem:[%s3 + $0x8] sm:$0xff] %v517
  %530 = vst [vmem:[%s3 + $0x10] sm:$0xff] %v522
  %531 = vst [vmem:[%s3 + $0x18] sm:$0xff] %v525
  %v532 = vadd.f32 %v514, %v517
  %v533 = vadd.f32 %v532, %v522
  %v534 = vadd.f32 %v533, %v525
  %v535 = vrot.slane %v534, 4
  %v536 = vadd.f32 %v534, %v535
  %v537 = vrot.slane %v536, 2
  %v538 = vadd.f32 %v536, %v537
  %v539 = vrot.slane %v538, 1
  %v540 = vadd.f32 %v538, %v539
  %v541 = vmul.f32 %v514, %v514
  %v542 = vmul.f32 %v517, %v517
  %v543 = vmul.f32 %v522, %v522
  %v544 = vmul.f32 %v525, %v525
  %v545 = vadd.f32 %v541, %v542
  %v546 = vadd.f32 %v545, %v543
  %v547 = vadd.f32 %v546, %v544
  %v548 = vrot.slane %v547, 4
  %v549 = vadd.f32 %v547, %v548
  %v550 = vrot.slane %v549, 2
  %v551 = vadd.f32 %v549, %v550
  %v552 = vrot.slane %v551, 1
  %v553 = vadd.f32 %v551, %v552
  %vm554 = vcmask 1040384
  %v555 = vsel %vm554, %v540, %v553
  %556 = vst [vmem:[%s4] sm:$0x3] %v555
  // Predicated region
  $region14: #{generator_forward.9} parent=0 // pred_check
    _
  $region15: #{generator_forward.9} parent=0 // pred_check_branch
    %558 = sbr.rel (0) target = $region17
  $region16: #{generator_forward.9} parent=0 // pred_region
    _
  $region17: #{generator_forward.9} parent=0 // pred_fallthru
    _
  // Predicated region
  $region18: #{generator_forward.9} parent=0 // pred_check
    _
  $region19: #{generator_forward.9} parent=0 // pred_check_branch
    %560 = sbr.rel (0) target = $region21
  $region20: #{generator_forward.9} parent=0 // pred_region
    _
  $region21: #{generator_forward.9} parent=0 // pred_fallthru
    _
  // Predicated region
  $region22: #{generator_forward.9} parent=0 // pred_check
    _
  $region23: #{generator_forward.9} parent=0 // pred_check_branch
    %562 = sbr.rel (0) target = $region25
  $region24: #{generator_forward.9} parent=0 // pred_region
    _
  $region25: #{generator_forward.9} parent=0 // pred_fallthru
    _
  // Predicated region
  $region26: #{generator_forward.9} parent=0 // pred_check
    _
  $region27: #{generator_forward.9} parent=0 // pred_check_branch
    %564 = sbr.rel (0) target = $region29
  $region28: #{generator_forward.9} parent=0 // pred_region
    _
  $region29: #{generator_forward.9} parent=0 // pred_fallthru
    _

// kernel: tile.33
$region0: #{tile.33}
  #allocation0 [shape = 's32[1]{0}', space=sflag, size = 0x4, scoped, tag = 'scoped memory for tile.33']
  %s0 = inlined_call_operand.vmem [shape: f32[16], index: 0, kind: input, shape index: {}]
  %s1 = inlined_call_operand.vmem [shape: f32[4,16], index: 1, kind: output, shape index: {}]
  // Predicated region
  $region2: #{tile.33} parent=0 // pred_check
    _
  $region3: #{tile.33} parent=0 // pred_check_branch
    %3 = sbr.rel (0) target = $region5
  $region4: #{tile.33} parent=0 // pred_region
    _
  $region5: #{tile.33} parent=0 // pred_fallthru
    _
  %v4 = vld [vmem:[%s0] ss:$0 sm:$0xff]
  %5 = vst [vmem:[%s1] sm:$0xf] %v4

// kernel: tile.38
$region0: #{tile.38}
  %s0 = inlined_call_operand.vmem [shape: f32[4,16], index: 0, kind: input, shape index: {}]
  %s1 = inlined_call_operand.vmem [shape: f32[1,64], index: 1, kind: output, shape index: {}]
  $region1: #{tile.38} parent=0
    #allocation0 [shape = 'u8[4096]{0}', space=vmem, size = 0x1000, scoped, tag = 'scoped mem for output reshape']
    #allocation1 [shape = 'u8[4096]{0}', space=vmem, size = 0x1000, scoped, tag = 'scoped mem for input reshape']
    %s3 = sshll.u32 1, 4
    %s4 = ssub.s32 %s3, 1
    %v5 = vld [vmem:[%s0] sm:%s4]
    %6 = vst [vmem:[#allocation1] sm:%s4] %v5
    %v7 = vld [vmem:[#allocation1] sm:$0x1]
    %vm8 = vcmask 130048
    %9 = vst.msk [vmem:[#allocation0] sm:$0x1] %vm8, %v7
    %s10 = scalar_lea.vmem [#allocation1], 3
    %v11 = vld [vmem:[%s10] sm:$0x1]
    %12 = vrot.lane.b32.xlu0 %v11, 48
    %v13 = vpop.permute.xlu0 %12
    %vm14 = vcmask 523648
    %15 = vst.msk [vmem:[#allocation0] sm:$0x1] %vm14, %v13
    %s16 = scalar_lea.vmem [#allocation1], 2
    %v17 = vld [vmem:[%s16] sm:$0x1]
    %18 = vrot.lane.b32.xlu0 %v17, 32
    %v19 = vpop.permute.xlu0 %18
    %vm20 = vcmask 392448
    %21 = vst.msk [vmem:[#allocation0] sm:$0x1] %vm20, %v19
    %s22 = scalar_lea.vmem [#allocation1], 1
    %v23 = vld [vmem:[%s22] sm:$0x1]
    %24 = vrot.lane.b32.xlu0 %v23, 16
    %v25 = vpop.permute.xlu0 %24
    %vm26 = vcmask 261248
    %27 = vst.msk [vmem:[#allocation0] sm:$0x1] %vm26, %v25
    %s29 = sshll.u32 1, 1
    %s30 = ssub.s32 %s29, 1
    %v32 = vld [vmem:[#allocation0] sm:%s30]
    %s33 = sshll.u32 1, 1
    %s34 = ssub.s32 %s33, 1
    %35 = vst [vmem:[%s1] sm:%s34] %v32

// kernel: generator_forward.12
$region0: #{generator_forward.12}
  #allocation0 [shape = 'u32[]', space=smem, size = 0x4, offset = 0x4, fixed_abs, tag = 'smem constant byte address 0x4 - core index']
  #allocation1 [shape = 'u32[144,128]{1,0:T(1,128)}', space=vmem, size = 0x12000, scoped, tag = 'internal scratch']
  %s0 = inlined_call_operand.vmem [shape: f32[128,64], index: 0, kind: input, shape index: {}]
  %s1 = inlined_call_operand.vmem [shape: f32[1,64], index: 1, kind: input, shape index: {}]
  %s2 = inlined_call_operand.vmem [shape: f32[1,64], index: 2, kind: input, shape index: {}]
  %s3 = inlined_call_operand.vmem [shape: bf16[128,64], index: 3, kind: output, shape index: {}]
  %s4 = sld [smem:[#allocation0]]
  $region22: #{generator_forward.12} parent=0
    _
  %s6 = ssub.s32 1, %s4
  %s7 = scalar_select 0, %s6, %s4
  // Predicated region
  $region2: #{generator_forward.12} parent=0 // pred_check
    _
  $region3: #{generator_forward.12} parent=0 // pred_check_branch
    %9 = sbr.rel (0) target = $region5
  $region4: #{generator_forward.12} parent=0 // pred_region
    _
  $region5: #{generator_forward.12} parent=0 // pred_fallthru
    _
  // Predicated region
  $region6: #{generator_forward.12} parent=0 // pred_check
    _
  $region7: #{generator_forward.12} parent=0 // pred_check_branch
    %11 = sbr.rel (0) target = $region9
  $region8: #{generator_forward.12} parent=0 // pred_region
    _
  $region9: #{generator_forward.12} parent=0 // pred_fallthru
    _
  // Predicated region
  $region10: #{generator_forward.12} parent=0 // pred_check
    _
  $region11: #{generator_forward.12} parent=0 // pred_check_branch
    %13 = sbr.rel (0) target = $region13
  $region12: #{generator_forward.12} parent=0 // pred_region
    _
  $region13: #{generator_forward.12} parent=0 // pred_fallthru
    _
  %v14 = vld [vmem:[%s0] sm:$0xff]
  %v15 = vld [vmem:[%s0 + $0x8] sm:$0xff]
  %v16 = vld [vmem:[%s0 + $0x10] sm:$0xff]
  %v17 = vld [vmem:[%s0 + $0x18] sm:$0xff]
  %v18 = vld [vmem:[%s0 + $0x20] sm:$0xff]
  %v19 = vld [vmem:[%s0 + $0x28] sm:$0xff]
  %v20 = vld [vmem:[%s0 + $0x30] sm:$0xff]
  %v21 = vld [vmem:[%s0 + $0x38] sm:$0xff]
  %v22 = vld [vmem:[%s0 + $0x40] sm:$0xff]
  %v23 = vld [vmem:[%s0 + $0x48] sm:$0xff]
  %v24 = vld [vmem:[%s0 + $0x50] sm:$0xff]
  %v25 = vld [vmem:[%s0 + $0x58] sm:$0xff]
  %v26 = vld [vmem:[%s0 + $0x60] sm:$0xff]
  %v27 = vld [vmem:[%s0 + $0x68] sm:$0xff]
  %v28 = vld [vmem:[%s0 + $0x70] sm:$0xff]
  %v29 = vld [vmem:[%s0 + $0x78] sm:$0xff]
  %v30 = vld [vmem:[%s1] sm:$0x1]
  %v32 = vlaneseq
  %v33 = vshrl.u32 %v32, 7
  %v34 = vsub.s32 0, %v33
  %v35 = vrot.slane %v30, %v34
  %v37 = vmul.f32 %v14, %v35
  %v38 = vmul.f32 %v15, %v35
  %v39 = vmul.f32 %v16, %v35
  %v40 = vmul.f32 %v17, %v35
  %v41 = vmul.f32 %v18, %v35
  %v42 = vmul.f32 %v19, %v35
  %v43 = vmul.f32 %v20, %v35
  %v44 = vmul.f32 %v21, %v35
  %v45 = vmul.f32 %v22, %v35
  %v46 = vmul.f32 %v23, %v35
  %v47 = vmul.f32 %v24, %v35
  %v48 = vmul.f32 %v25, %v35
  %v49 = vmul.f32 %v26, %v35
  %v50 = vmul.f32 %v27, %v35
  %v51 = vmul.f32 %v28, %v35
  %v52 = vmul.f32 %v29, %v35
  %v53 = vld [vmem:[%s2] sm:$0x1]
  %v55 = vlaneseq
  %v56 = vshrl.u32 %v55, 7
  %v57 = vsub.s32 0, %v56
  %v58 = vrot.slane %v53, %v57
  %v60 = vadd.f32 %v37, %v58
  %v61 = vadd.f32 %v38, %v58
  %v62 = vadd.f32 %v39, %v58
  %v63 = vadd.f32 %v40, %v58
  %v64 = vadd.f32 %v41, %v58
  %v65 = vadd.f32 %v42, %v58
  %v66 = vadd.f32 %v43, %v58
  %v67 = vadd.f32 %v44, %v58
  %v68 = vadd.f32 %v45, %v58
  %v69 = vadd.f32 %v46, %v58
  %v70 = vadd.f32 %v47, %v58
  %v71 = vadd.f32 %v48, %v58
  %v72 = vadd.f32 %v49, %v58
  %v73 = vadd.f32 %v50, %v58
  %v74 = vadd.f32 %v51, %v58
  %v75 = vadd.f32 %v52, %v58
  %v76 = vmax.f32 %v60, 0.0
  %v77 = vmax.f32 %v61, 0.0
  %v78 = vmax.f32 %v62, 0.0
  %v79 = vmax.f32 %v63, 0.0
  %v80 = vmax.f32 %v64, 0.0
  %v81 = vmax.f32 %v65, 0.0
  %v82 = vmax.f32 %v66, 0.0
  %v83 = vmax.f32 %v67, 0.0
  %v84 = vmax.f32 %v68, 0.0
  %v85 = vmax.f32 %v69, 0.0
  %v86 = vmax.f32 %v70, 0.0
  %v87 = vmax.f32 %v71, 0.0
  %v88 = vmax.f32 %v72, 0.0
  %v89 = vmax.f32 %v73, 0.0
  %v90 = vmax.f32 %v74, 0.0
  %v91 = vmax.f32 %v75, 0.0
  %v92 = vpack.c.bf16 %v77, %v76
  %v93 = vpack.c.bf16 %v79, %v78
  %v94 = vpack.c.bf16 %v81, %v80
  %v95 = vpack.c.bf16 %v83, %v82
  %v96 = vpack.c.bf16 %v85, %v84
  %v97 = vpack.c.bf16 %v87, %v86
  %v98 = vpack.c.bf16 %v89, %v88
  %v99 = vpack.c.bf16 %v91, %v90
  %v108 = vunpack.c.l.b16 %v92
  %v109 = vunpack.c.h.b16 %v92
  %v110 = vunpack.c.l.b16 %v93
  %v111 = vunpack.c.h.b16 %v93
  %v112 = vunpack.c.l.b16 %v94
  %v113 = vunpack.c.h.b16 %v94
  %v114 = vunpack.c.l.b16 %v95
  %v115 = vunpack.c.h.b16 %v95
  %v116 = vunpack.c.l.b16 %v96
  %v117 = vunpack.c.h.b16 %v96
  %v118 = vunpack.c.l.b16 %v97
  %v119 = vunpack.c.h.b16 %v97
  %v120 = vunpack.c.l.b16 %v98
  %v121 = vunpack.c.h.b16 %v98
  %v122 = vunpack.c.l.b16 %v99
  %v123 = vunpack.c.h.b16 %v99
  %v124 = vpack.c.b16 %v108, %v108
  %v125 = vpack.c.b16 %v109, %v109
  %v126 = vpack.c.b16 %v110, %v110
  %v127 = vpack.c.b16 %v111, %v111
  %v128 = vpack.c.b16 %v112, %v112
  %v129 = vpack.c.b16 %v113, %v113
  %v130 = vpack.c.b16 %v114, %v114
  %v131 = vpack.c.b16 %v115, %v115
  %v132 = vpack.c.b16 %v116, %v116
  %v133 = vpack.c.b16 %v117, %v117
  %v134 = vpack.c.b16 %v118, %v118
  %v135 = vpack.c.b16 %v119, %v119
  %v136 = vpack.c.b16 %v120, %v120
  %v137 = vpack.c.b16 %v121, %v121
  %v138 = vpack.c.b16 %v122, %v122
  %v139 = vpack.c.b16 %v123, %v123
  %vm156 = vcmask 519168
  %157 = vst.msk [vmem:[%s3] sm:$0xf] %vm156, %v124
  %158 = vst.msk [vmem:[%s3 + $0x4] sm:$0xf] %vm156, %v125
  %159 = vst.msk [vmem:[%s3 + $0x8] sm:$0xf] %vm156, %v126
  %160 = vst.msk [vmem:[%s3 + $0xc] sm:$0xf] %vm156, %v127
  %161 = vst.msk [vmem:[%s3 + $0x10] sm:$0xf] %vm156, %v128
  %162 = vst.msk [vmem:[%s3 + $0x14] sm:$0xf] %vm156, %v129
  %163 = vst.msk [vmem:[%s3 + $0x18] sm:$0xf] %vm156, %v130
  %164 = vst.msk [vmem:[%s3 + $0x1c] sm:$0xf] %vm156, %v131
  %165 = vst.msk [vmem:[%s3 + $0x20] sm:$0xf] %vm156, %v132
  %166 = vst.msk [vmem:[%s3 + $0x24] sm:$0xf] %vm156, %v133
  %167 = vst.msk [vmem:[%s3 + $0x28] sm:$0xf] %vm156, %v134
  %168 = vst.msk [vmem:[%s3 + $0x2c] sm:$0xf] %vm156, %v135
  %169 = vst.msk [vmem:[%s3 + $0x30] sm:$0xf] %vm156, %v136
  %170 = vst.msk [vmem:[%s3 + $0x34] sm:$0xf] %vm156, %v137
  %171 = vst.msk [vmem:[%s3 + $0x38] sm:$0xf] %vm156, %v138
  %172 = vst.msk [vmem:[%s3 + $0x3c] sm:$0xf] %vm156, %v139
  // Predicated region
  $region14: #{generator_forward.12} parent=0 // pred_check
    _
  $region15: #{generator_forward.12} parent=0 // pred_check_branch
    %174 = sbr.rel (0) target = $region17
  $region16: #{generator_forward.12} parent=0 // pred_region
    _
  $region17: #{generator_forward.12} parent=0 // pred_fallthru
    _
  // Predicated region
  $region18: #{generator_forward.12} parent=0 // pred_check
    _
  $region19: #{generator_forward.12} parent=0 // pred_check_branch
    %176 = sbr.rel (0) target = $region21
  $region20: #{generator_forward.12} parent=0 // pred_region
    _
  $region21: #{generator_forward.12} parent=0 // pred_fallthru
    _

// kernel: generator_forward.11
$region0: #{generator_forward.11}
  #allocation0 [shape = 'u32[]', space=smem, size = 0x4, offset = 0x4, fixed_abs, tag = 'smem constant byte address 0x4 - core index']
  #allocation1 [shape = 'u32[144,128]{1,0:T(1,128)}', space=vmem, size = 0x12000, scoped, tag = 'internal scratch']
  %s0 = inlined_call_operand.vmem [shape: bf16[128,288], index: 0, kind: input, shape index: {}]
  %s1 = inlined_call_operand.vmem [shape: bf16[288,64], index: 1, kind: input, shape index: {}]
  %s2 = inlined_call_operand.vmem [shape: f32[1,64], index: 2, kind: input, shape index: {}]
  %s3 = inlined_call_operand.vmem [shape: f32[128,64], index: 3, kind: output, shape index: {0}]
  %s4 = inlined_call_operand.vmem [shape: f32[1,2,64], index: 4, kind: output, shape index: {1}]
  %5 = xla_tuple %s3, %s4
  %s6 = sld [smem:[#allocation0]]
  $region30: #{generator_forward.11} parent=0
    _
  %s8 = ssub.s32 1, %s6
  %s9 = scalar_select 0, %s8, %s6
  // Predicated region
  $region2: #{generator_forward.11} parent=0 // pred_check
    _
  $region3: #{generator_forward.11} parent=0 // pred_check_branch
    %11 = sbr.rel (0) target = $region5
  $region4: #{generator_forward.11} parent=0 // pred_region
    _
  $region5: #{generator_forward.11} parent=0 // pred_fallthru
    _
  // Predicated region
  $region6: #{generator_forward.11} parent=0 // pred_check
    _
  $region7: #{generator_forward.11} parent=0 // pred_check_branch
    %13 = sbr.rel (0) target = $region9
  $region8: #{generator_forward.11} parent=0 // pred_region
    _
  $region9: #{generator_forward.11} parent=0 // pred_fallthru
    _
  // Predicated region
  $region10: #{generator_forward.11} parent=0 // pred_check
    _
  $region11: #{generator_forward.11} parent=0 // pred_check_branch
    %15 = sbr.rel (0) target = $region13
  $region12: #{generator_forward.11} parent=0 // pred_region
    _
  $region13: #{generator_forward.11} parent=0 // pred_fallthru
    _
  %v17 = vld [vmem:[%s0] sm:$0xff]
  %v18 = vld [vmem:[%s0 + $0x8] sm:$0xf]
  %v19 = vld [vmem:[%s0 + $0xc] sm:$0xff]
  %v20 = vld [vmem:[%s0 + $0x14] sm:$0xf]
  %v21 = vld [vmem:[%s0 + $0x18] sm:$0xff]
  %v22 = vld [vmem:[%s0 + $0x20] sm:$0xf]
  %v23 = vld [vmem:[%s0 + $0x24] sm:$0xff]
  %v24 = vld [vmem:[%s0 + $0x2c] sm:$0xf]
  %v25 = vld [vmem:[%s0 + $0x30] sm:$0xff]
  %v26 = vld [vmem:[%s0 + $0x38] sm:$0xf]
  %v27 = vld [vmem:[%s0 + $0x3c] sm:$0xff]
  %v28 = vld [vmem:[%s0 + $0x44] sm:$0xf]
  %v29 = vld [vmem:[%s0 + $0x48] sm:$0xff]
  %v30 = vld [vmem:[%s0 + $0x50] sm:$0xf]
  %v31 = vld [vmem:[%s0 + $0x54] sm:$0xff]
  %v32 = vld [vmem:[%s0 + $0x5c] sm:$0xf]
  %v33 = vld [vmem:[%s0 + $0x60] sm:$0xff]
  %v34 = vld [vmem:[%s0 + $0x68] sm:$0xf]
  %v35 = vld [vmem:[%s0 + $0x6c] sm:$0xff]
  %v36 = vld [vmem:[%s0 + $0x74] sm:$0xf]
  %v37 = vld [vmem:[%s0 + $0x78] sm:$0xff]
  %v38 = vld [vmem:[%s0 + $0x80] sm:$0xf]
  %v39 = vld [vmem:[%s0 + $0x84] sm:$0xff]
  %v40 = vld [vmem:[%s0 + $0x8c] sm:$0xf]
  %v41 = vld [vmem:[%s0 + $0x90] sm:$0xff]
  %v42 = vld [vmem:[%s0 + $0x98] sm:$0xf]
  %v43 = vld [vmem:[%s0 + $0x9c] sm:$0xff]
  %v44 = vld [vmem:[%s0 + $0xa4] sm:$0xf]
  %v45 = vld [vmem:[%s0 + $0xa8] sm:$0xff]
  %v46 = vld [vmem:[%s0 + $0xb0] sm:$0xf]
  %v47 = vld [vmem:[%s0 + $0xb4] sm:$0xff]
  %v48 = vld [vmem:[%s0 + $0xbc] sm:$0xf]
  %v49 = vld [vmem:[%s1] sm:$0xf]
  %v50 = vld [vmem:[%s1 + $0x4] sm:$0xf]
  %v51 = vld [vmem:[%s1 + $0x8] sm:$0xf]
  %v52 = vld [vmem:[%s1 + $0xc] sm:$0xf]
  %v53 = vld [vmem:[%s1 + $0x10] sm:$0xf]
  %v54 = vld [vmem:[%s1 + $0x14] sm:$0xf]
  %v55 = vld [vmem:[%s1 + $0x18] sm:$0xf]
  %v56 = vld [vmem:[%s1 + $0x1c] sm:$0xf]
  %v57 = vld [vmem:[%s1 + $0x20] sm:$0xf]
  %v58 = vld [vmem:[%s1 + $0x24] sm:$0xf]
  %v59 = vld [vmem:[%s1 + $0x28] sm:$0xf]
  %v60 = vld [vmem:[%s1 + $0x2c] sm:$0xf]
  %v61 = vld [vmem:[%s1 + $0x30] sm:$0xf]
  %v62 = vld [vmem:[%s1 + $0x34] sm:$0xf]
  %v63 = vld [vmem:[%s1 + $0x38] sm:$0xf]
  %v64 = vld [vmem:[%s1 + $0x3c] sm:$0xf]
  %v65 = vld [vmem:[%s1 + $0x40] sm:$0xf]
  %v66 = vld [vmem:[%s1 + $0x44] sm:$0xf]
  %v67 = vld [vmem:[%s1 + $0x48] sm:$0xf]
  %v68 = vld [vmem:[%s1 + $0x4c] sm:$0xf]
  %v69 = vld [vmem:[%s1 + $0x50] sm:$0xf]
  %v70 = vld [vmem:[%s1 + $0x54] sm:$0xf]
  %v71 = vld [vmem:[%s1 + $0x58] sm:$0xf]
  %v72 = vld [vmem:[%s1 + $0x5c] sm:$0xf]
  %v73 = vld [vmem:[%s1 + $0x60] sm:$0xf]
  %v74 = vld [vmem:[%s1 + $0x64] sm:$0xf]
  %v75 = vld [vmem:[%s1 + $0x68] sm:$0xf]
  %v76 = vld [vmem:[%s1 + $0x6c] sm:$0xf]
  %v77 = vld [vmem:[%s1 + $0x70] sm:$0xf]
  %v78 = vld [vmem:[%s1 + $0x74] sm:$0xf]
  %v79 = vld [vmem:[%s1 + $0x78] sm:$0xf]
  %v80 = vld [vmem:[%s1 + $0x7c] sm:$0xf]
  %v81 = vld [vmem:[%s1 + $0x80] sm:$0xf]
  %v82 = vld [vmem:[%s1 + $0x84] sm:$0xf]
  %v83 = vld [vmem:[%s1 + $0x88] sm:$0xf]
  %v84 = vld [vmem:[%s1 + $0x8c] sm:$0xf]
  %v85 = vld [vmem:[%s2] sm:$0x1]
  %v87 = vlaneseq
  %v88 = vshrl.u32 %v87, 7
  %v89 = vsub.s32 0, %v88
  %v90 = vrot.slane %v85, %v89
  %v124 = vunpack.c.l.b16 %v17
  %v125 = vunpack.c.h.b16 %v17
  %v126 = vunpack.c.l.b16 %v18
  %v127 = vunpack.c.l.b16 %v19
  %v128 = vunpack.c.h.b16 %v19
  %v129 = vunpack.c.l.b16 %v20
  %v130 = vunpack.c.l.b16 %v21
  %v131 = vunpack.c.h.b16 %v21
  %v132 = vunpack.c.l.b16 %v22
  %v133 = vunpack.c.l.b16 %v23
  %v134 = vunpack.c.h.b16 %v23
  %v135 = vunpack.c.l.b16 %v24
  %v136 = vunpack.c.l.b16 %v25
  %v137 = vunpack.c.h.b16 %v25
  %v138 = vunpack.c.l.b16 %v26
  %v139 = vunpack.c.l.b16 %v27
  %v140 = vunpack.c.h.b16 %v27
  %v141 = vunpack.c.l.b16 %v28
  %v142 = vunpack.c.l.b16 %v29
  %v143 = vunpack.c.h.b16 %v29
  %v144 = vunpack.c.l.b16 %v30
  %v145 = vunpack.c.l.b16 %v31
  %v146 = vunpack.c.h.b16 %v31
  %v147 = vunpack.c.l.b16 %v32
  %v148 = vunpack.c.l.b16 %v33
  %v149 = vunpack.c.h.b16 %v33
  %v150 = vunpack.c.l.b16 %v34
  %v151 = vunpack.c.l.b16 %v35
  %v152 = vunpack.c.h.b16 %v35
  %v153 = vunpack.c.l.b16 %v36
  %v154 = vunpack.c.l.b16 %v37
  %v155 = vunpack.c.h.b16 %v37
  %v156 = vunpack.c.l.b16 %v38
  %v157 = vunpack.c.l.b16 %v39
  %v158 = vunpack.c.h.b16 %v39
  %v159 = vunpack.c.l.b16 %v40
  %v160 = vunpack.c.l.b16 %v41
  %v161 = vunpack.c.h.b16 %v41
  %v162 = vunpack.c.l.b16 %v42
  %v163 = vunpack.c.l.b16 %v43
  %v164 = vunpack.c.h.b16 %v43
  %v165 = vunpack.c.l.b16 %v44
  %v166 = vunpack.c.l.b16 %v45
  %v167 = vunpack.c.h.b16 %v45
  %v168 = vunpack.c.l.b16 %v46
  %v169 = vunpack.c.l.b16 %v47
  %v170 = vunpack.c.h.b16 %v47
  %v171 = vunpack.c.l.b16 %v48
  %v172 = vpack.c.b16 %v127, %v124
  %v173 = vpack.c.b16 %v128, %v125
  %v174 = vpack.c.b16 %v129, %v126
  %v175 = vpack.c.b16 %v133, %v130
  %v176 = vpack.c.b16 %v134, %v131
  %v177 = vpack.c.b16 %v135, %v132
  %v178 = vpack.c.b16 %v139, %v136
  %v179 = vpack.c.b16 %v140, %v137
  %v180 = vpack.c.b16 %v141, %v138
  %v181 = vpack.c.b16 %v145, %v142
  %v182 = vpack.c.b16 %v146, %v143
  %v183 = vpack.c.b16 %v147, %v144
  %v184 = vpack.c.b16 %v151, %v148
  %v185 = vpack.c.b16 %v152, %v149
  %v186 = vpack.c.b16 %v153, %v150
  %v187 = vpack.c.b16 %v157, %v154
  %v188 = vpack.c.b16 %v158, %v155
  %v189 = vpack.c.b16 %v159, %v156
  %v190 = vpack.c.b16 %v163, %v160
  %v191 = vpack.c.b16 %v164, %v161
  %v192 = vpack.c.b16 %v165, %v162
  %v193 = vpack.c.b16 %v169, %v166
  %v194 = vpack.c.b16 %v170, %v167
  %v195 = vpack.c.b16 %v171, %v168
  %v248 = vunpack.c.l.b16 %v49
  %v249 = vunpack.c.l.b16 %v50
  %v250 = vunpack.c.l.b16 %v51
  %v251 = vunpack.c.l.b16 %v52
  %v252 = vunpack.c.l.b16 %v53
  %v253 = vunpack.c.l.b16 %v54
  %v254 = vunpack.c.l.b16 %v55
  %v255 = vunpack.c.l.b16 %v56
  %v256 = vunpack.c.l.b16 %v57
  %v257 = vunpack.c.l.b16 %v58
  %v258 = vunpack.c.l.b16 %v59
  %v259 = vunpack.c.l.b16 %v60
  %v260 = vunpack.c.l.b16 %v61
  %v261 = vunpack.c.l.b16 %v62
  %v262 = vunpack.c.l.b16 %v63
  %v263 = vunpack.c.l.b16 %v64
  %v264 = vunpack.c.l.b16 %v65
  %v265 = vunpack.c.l.b16 %v66
  %v266 = vunpack.c.l.b16 %v67
  %v267 = vunpack.c.l.b16 %v68
  %v268 = vunpack.c.l.b16 %v69
  %v269 = vunpack.c.l.b16 %v70
  %v270 = vunpack.c.l.b16 %v71
  %v271 = vunpack.c.l.b16 %v72
  %v272 = vunpack.c.l.b16 %v73
  %v273 = vunpack.c.l.b16 %v74
  %v274 = vunpack.c.l.b16 %v75
  %v275 = vunpack.c.l.b16 %v76
  %v276 = vunpack.c.l.b16 %v77
  %v277 = vunpack.c.l.b16 %v78
  %v278 = vunpack.c.l.b16 %v79
  %v279 = vunpack.c.l.b16 %v80
  %v280 = vunpack.c.l.b16 %v81
  %v281 = vunpack.c.l.b16 %v82
  %v282 = vunpack.c.l.b16 %v83
  %v283 = vunpack.c.l.b16 %v84
  %v284 = vpack.c.b16 %v249, %v248
  %v285 = vpack.c.b16 %v251, %v250
  %v286 = vpack.c.b16 %v253, %v252
  %v287 = vpack.c.b16 %v255, %v254
  %v288 = vpack.c.b16 %v257, %v256
  %v289 = vpack.c.b16 %v259, %v258
  %v290 = vpack.c.b16 %v261, %v260
  %v291 = vpack.c.b16 %v263, %v262
  %v292 = vpack.c.b16 %v265, %v264
  %v293 = vpack.c.b16 %v267, %v266
  %v294 = vpack.c.b16 %v269, %v268
  %v295 = vpack.c.b16 %v271, %v270
  %v296 = vpack.c.b16 %v273, %v272
  %v297 = vpack.c.b16 %v275, %v274
  %v298 = vpack.c.b16 %v277, %v276
  %v299 = vpack.c.b16 %v279, %v278
  %v300 = vpack.c.b16 %v281, %v280
  %v301 = vpack.c.b16 %v283, %v282
  %vm320 = vcmask 261120
  %v322 = vsel %vm320, %v174, 0
  %v325 = vsel %vm320, %v177, 0
  %v328 = vsel %vm320, %v180, 0
  %v331 = vsel %vm320, %v183, 0
  %v334 = vsel %vm320, %v186, 0
  %v337 = vsel %vm320, %v189, 0
  %v340 = vsel %vm320, %v192, 0
  %v343 = vsel %vm320, %v195, 0
  %345 = vmatprep.subr.bf16.mxu0 0
  %346 = vmatpush1.bf16.msra.mxu0 %v291
  %347 = vmatprep.subr.bf16.mxu0 0
  %348 = vmatpush1.bf16.msra.mxu0 %v290
  %349 = vmatprep.subr.bf16.mxu0 0
  %350 = vmatpush1.bf16.msra.mxu0 %v289
  %351 = vmatprep.subr.bf16.mxu0 0
  %352 = vmatpush1.bf16.msra.mxu0 %v288
  %353 = vmatprep.subr.bf16.mxu0 0
  %354 = vmatpush1.bf16.msra.mxu0 %v287
  %355 = vmatprep.subr.bf16.mxu0 0
  %356 = vmatpush1.bf16.msra.mxu0 %v286
  %357 = vmatprep.subr.bf16.mxu0 0
  %358 = vmatpush1.bf16.msra.mxu0 %v285
  %359 = vmatprep.subr.bf16.mxu0 0
  %360 = vmatpush1.bf16.msra.mxu0 %v284
  %361 = vmatprep.subr.bf16.mxu0 0
  %362 = vmatpush2.bf16.msra.mxu0 %v299
  %363 = vmatprep.subr.bf16.mxu0 0
  %364 = vmatpush2.bf16.msra.mxu0 %v298
  %365 = vmatprep.subr.bf16.mxu0 0
  %366 = vmatpush2.bf16.msra.mxu0 %v297
  %367 = vmatprep.subr.bf16.mxu0 0
  %368 = vmatpush2.bf16.msra.mxu0 %v296
  %369 = vmatprep.subr.bf16.mxu0 0
  %370 = vmatpush2.bf16.msra.mxu0 %v295
  %371 = vmatprep.subr.bf16.mxu0 0
  %372 = vmatpush2.bf16.msra.mxu0 %v294
  %373 = vmatprep.subr.bf16.mxu0 0
  %374 = vmatpush2.bf16.msra.mxu0 %v293
  %375 = vmatprep.subr.bf16.mxu0 0
  %376 = vmatpush2.bf16.msra.mxu0 %v292
  %377 = vmatprep.mubr.bf16.mxu0 %v173
  %378 = vmatmul.mubr.bf16.gmra.mxu0 %v172
  %v379 = vpop.f32.mrf.mxu0
  %v380 = vadd.f32 %v90, %v379
  %v381 = vpop.f32.mrf.mxu0
  %v382 = vpop.f32.mrf.mxu0
  %v383 = vadd.f32 %v90, %v382
  %v384 = vpop.f32.mrf.mxu0
  %385 = vmatprep.mubr.bf16.mxu0 %v176
  %386 = vmatmul.mubr.bf16.gmra.mxu0 %v175
  %v387 = vpop.f32.mrf.mxu0
  %v388 = vadd.f32 %v90, %v387
  %v389 = vpop.f32.mrf.mxu0
  %v390 = vpop.f32.mrf.mxu0
  %v391 = vadd.f32 %v90, %v390
  %v392 = vpop.f32.mrf.mxu0
  %393 = vmatprep.mubr.bf16.mxu0 %v179
  %394 = vmatmul.mubr.bf16.gmra.mxu0 %v178
  %v395 = vpop.f32.mrf.mxu0
  %v396 = vadd.f32 %v90, %v395
  %v397 = vpop.f32.mrf.mxu0
  %v398 = vpop.f32.mrf.mxu0
  %v399 = vadd.f32 %v90, %v398
  %v400 = vpop.f32.mrf.mxu0
  %401 = vmatprep.mubr.bf16.mxu0 %v182
  %402 = vmatmul.mubr.bf16.gmra.mxu0 %v181
  %v403 = vpop.f32.mrf.mxu0
  %v404 = vadd.f32 %v90, %v403
  %v405 = vpop.f32.mrf.mxu0
  %v406 = vpop.f32.mrf.mxu0
  %v407 = vadd.f32 %v90, %v406
  %v408 = vpop.f32.mrf.mxu0
  %409 = vmatprep.mubr.bf16.mxu0 %v185
  %410 = vmatmul.mubr.bf16.gmra.mxu0 %v184
  %v411 = vpop.f32.mrf.mxu0
  %v412 = vadd.f32 %v90, %v411
  %v413 = vpop.f32.mrf.mxu0
  %v414 = vpop.f32.mrf.mxu0
  %v415 = vadd.f32 %v90, %v414
  %v416 = vpop.f32.mrf.mxu0
  %417 = vmatprep.mubr.bf16.mxu0 %v188
  %418 = vmatmul.mubr.bf16.gmra.mxu0 %v187
  %v419 = vpop.f32.mrf.mxu0
  %v420 = vadd.f32 %v90, %v419
  %v421 = vpop.f32.mrf.mxu0
  %v422 = vpop.f32.mrf.mxu0
  %v423 = vadd.f32 %v90, %v422
  %v424 = vpop.f32.mrf.mxu0
  %425 = vmatprep.mubr.bf16.mxu0 %v191
  %426 = vmatmul.mubr.bf16.gmra.mxu0 %v190
  %v427 = vpop.f32.mrf.mxu0
  %v428 = vadd.f32 %v90, %v427
  %v429 = vpop.f32.mrf.mxu0
  %v430 = vpop.f32.mrf.mxu0
  %v431 = vadd.f32 %v90, %v430
  %v432 = vpop.f32.mrf.mxu0
  %433 = vmatprep.mubr.bf16.mxu0 %v194
  %434 = vmatmul.mubr.bf16.gmra.mxu0 %v193
  %v435 = vpop.f32.mrf.mxu0
  %v436 = vadd.f32 %v90, %v435
  %v437 = vpop.f32.mrf.mxu0
  %v438 = vpop.f32.mrf.mxu0
  %v439 = vadd.f32 %v90, %v438
  %v440 = vpop.f32.mrf.mxu0
  %441 = vdwg.mxu0
  %442 = vmatprep.subr.bf16.mxu0 0
  %443 = vmatpush1.bf16.msra.mxu0 0
  %444 = vmatprep.subr.bf16.mxu0 0
  %445 = vmatpush1.bf16.msra.mxu0 0
  %446 = vmatprep.subr.bf16.mxu0 0
  %447 = vmatpush1.bf16.msra.mxu0 0
  %448 = vmatprep.subr.bf16.mxu0 0
  %449 = vmatpush1.bf16.msra.mxu0 0
  %450 = vmatprep.subr.bf16.mxu0 0
  %451 = vmatpush1.bf16.msra.mxu0 0
  %452 = vmatprep.subr.bf16.mxu0 0
  %453 = vmatpush1.bf16.msra.mxu0 0
  %454 = vmatprep.subr.bf16.mxu0 0
  %455 = vmatpush1.bf16.msra.mxu0 %v301
  %456 = vmatprep.subr.bf16.mxu0 0
  %457 = vmatpush1.bf16.msra.mxu0 %v300
  %458 = vmatprep.subr.bf16.mxu0 0
  %459 = vmatpush2.bf16.msra.mxu0 0
  %460 = vmatprep.subr.bf16.mxu0 0
  %461 = vmatpush2.bf16.msra.mxu0 0
  %462 = vmatprep.subr.bf16.mxu0 0
  %463 = vmatpush2.bf16.msra.mxu0 0
  %464 = vmatprep.subr.bf16.mxu0 0
  %465 = vmatpush2.bf16.msra.mxu0 0
  %466 = vmatprep.subr.bf16.mxu0 0
  %467 = vmatpush2.bf16.msra.mxu0 0
  %468 = vmatprep.subr.bf16.mxu0 0
  %469 = vmatpush2.bf16.msra.mxu0 0
  %470 = vmatprep.subr.bf16.mxu0 0
  %471 = vmatpush2.bf16.msra.mxu0 0
  %472 = vmatprep.subr.bf16.mxu0 0
  %473 = vmatpush2.bf16.msra.mxu0 0
  %474 = vmatprep.mubr.bf16.mxu0 0
  %475 = vmatmul.mubr.bf16.gmra.mxu0 %v322
  %v476 = vpop.f32.mrf.mxu0
  %v477 = vadd.f32 %v380, %v476
  %v478 = vpop.f32.mrf.mxu0
  %v479 = vpop.f32.mrf.mxu0
  %v480 = vadd.f32 %v383, %v479
  %v481 = vpop.f32.mrf.mxu0
  %482 = vmatprep.mubr.bf16.mxu0 0
  %483 = vmatmul.mubr.bf16.gmra.mxu0 %v325
  %v484 = vpop.f32.mrf.mxu0
  %v485 = vadd.f32 %v388, %v484
  %v486 = vpop.f32.mrf.mxu0
  %v487 = vpop.f32.mrf.mxu0
  %v488 = vadd.f32 %v391, %v487
  %v489 = vpop.f32.mrf.mxu0
  %490 = vmatprep.mubr.bf16.mxu0 0
  %491 = vmatmul.mubr.bf16.gmra.mxu0 %v328
  %v492 = vpop.f32.mrf.mxu0
  %v493 = vadd.f32 %v396, %v492
  %v494 = vpop.f32.mrf.mxu0
  %v495 = vpop.f32.mrf.mxu0
  %v496 = vadd.f32 %v399, %v495
  %v497 = vpop.f32.mrf.mxu0
  %498 = vmatprep.mubr.bf16.mxu0 0
  %499 = vmatmul.mubr.bf16.gmra.mxu0 %v331
  %v500 = vpop.f32.mrf.mxu0
  %v501 = vadd.f32 %v404, %v500
  %v502 = vpop.f32.mrf.mxu0
  %v503 = vpop.f32.mrf.mxu0
  %v504 = vadd.f32 %v407, %v503
  %v505 = vpop.f32.mrf.mxu0
  %506 = vmatprep.mubr.bf16.mxu0 0
  %507 = vmatmul.mubr.bf16.gmra.mxu0 %v334
  %v508 = vpop.f32.mrf.mxu0
  %v509 = vadd.f32 %v412, %v508
  %v510 = vpop.f32.mrf.mxu0
  %v511 = vpop.f32.mrf.mxu0
  %v512 = vadd.f32 %v415, %v511
  %v513 = vpop.f32.mrf.mxu0
  %514 = vmatprep.mubr.bf16.mxu0 0
  %515 = vmatmul.mubr.bf16.gmra.mxu0 %v337
  %v516 = vpop.f32.mrf.mxu0
  %v517 = vadd.f32 %v420, %v516
  %v518 = vpop.f32.mrf.mxu0
  %v519 = vpop.f32.mrf.mxu0
  %v520 = vadd.f32 %v423, %v519
  %v521 = vpop.f32.mrf.mxu0
  %522 = vmatprep.mubr.bf16.mxu0 0
  %523 = vmatmul.mubr.bf16.gmra.mxu0 %v340
  %v524 = vpop.f32.mrf.mxu0
  %v525 = vadd.f32 %v428, %v524
  %v526 = vpop.f32.mrf.mxu0
  %v527 = vpop.f32.mrf.mxu0
  %v528 = vadd.f32 %v431, %v527
  %v529 = vpop.f32.mrf.mxu0
  %530 = vmatprep.mubr.bf16.mxu0 0
  %531 = vmatmul.mubr.bf16.gmra.mxu0 %v343
  %v532 = vpop.f32.mrf.mxu0
  %v533 = vadd.f32 %v436, %v532
  %v534 = vpop.f32.mrf.mxu0
  %v535 = vpop.f32.mrf.mxu0
  %v536 = vadd.f32 %v439, %v535
  %v537 = vpop.f32.mrf.mxu0
  %538 = vdwg.mxu0
  %vm539 = vcmask 523264
  %540 = vst.msk [vmem:[%s3] sm:$0xff] %vm539, %v477
  %541 = vst.msk [vmem:[%s3 + $0x8] sm:$0xff] %vm539, %v480
  %542 = vst.msk [vmem:[%s3 + $0x10] sm:$0xff] %vm539, %v485
  %543 = vst.msk [vmem:[%s3 + $0x18] sm:$0xff] %vm539, %v488
  %544 = vst.msk [vmem:[%s3 + $0x20] sm:$0xff] %vm539, %v493
  %545 = vst.msk [vmem:[%s3 + $0x28] sm:$0xff] %vm539, %v496
  %546 = vst.msk [vmem:[%s3 + $0x30] sm:$0xff] %vm539, %v501
  %547 = vst.msk [vmem:[%s3 + $0x38] sm:$0xff] %vm539, %v504
  %548 = vst.msk [vmem:[%s3 + $0x40] sm:$0xff] %vm539, %v509
  %549 = vst.msk [vmem:[%s3 + $0x48] sm:$0xff] %vm539, %v512
  %550 = vst.msk [vmem:[%s3 + $0x50] sm:$0xff] %vm539, %v517
  %551 = vst.msk [vmem:[%s3 + $0x58] sm:$0xff] %vm539, %v520
  %552 = vst.msk [vmem:[%s3 + $0x60] sm:$0xff] %vm539, %v525
  %553 = vst.msk [vmem:[%s3 + $0x68] sm:$0xff] %vm539, %v528
  %554 = vst.msk [vmem:[%s3 + $0x70] sm:$0xff] %vm539, %v533
  %555 = vst.msk [vmem:[%s3 + $0x78] sm:$0xff] %vm539, %v536
  %v556 = vsel %vm539, %v477, 0.0
  %v557 = vsel %vm539, %v480, 0.0
  %v558 = vadd.f32 %v556, %v557
  %v559 = vsel %vm539, %v485, 0.0
  %v560 = vadd.f32 %v558, %v559
  %v561 = vsel %vm539, %v488, 0.0
  %v562 = vadd.f32 %v560, %v561
  %v563 = vsel %vm539, %v493, 0.0
  %v564 = vadd.f32 %v562, %v563
  %v565 = vsel %vm539, %v496, 0.0
  %v566 = vadd.f32 %v564, %v565
  %v567 = vsel %vm539, %v501, 0.0
  %v568 = vadd.f32 %v566, %v567
  %v569 = vsel %vm539, %v504, 0.0
  %v570 = vadd.f32 %v568, %v569
  %v571 = vsel %vm539, %v509, 0.0
  %v572 = vadd.f32 %v570, %v571
  %v573 = vsel %vm539, %v512, 0.0
  %v574 = vadd.f32 %v572, %v573
  %v575 = vsel %vm539, %v517, 0.0
  %v576 = vadd.f32 %v574, %v575
  %v577 = vsel %vm539, %v520, 0.0
  %v578 = vadd.f32 %v576, %v577
  %v579 = vsel %vm539, %v525, 0.0
  %v580 = vadd.f32 %v578, %v579
  %v581 = vsel %vm539, %v528, 0.0
  %v582 = vadd.f32 %v580, %v581
  %v583 = vsel %vm539, %v533, 0.0
  %v584 = vadd.f32 %v582, %v583
  %v585 = vsel %vm539, %v536, 0.0
  %v586 = vadd.f32 %v584, %v585
  %v587 = vrot.slane %v586, 4
  %v588 = vadd.f32 %v586, %v587
  %v589 = vrot.slane %v588, 2
  %v590 = vadd.f32 %v588, %v589
  %v591 = vrot.slane %v590, 1
  %v592 = vadd.f32 %v590, %v591
  %v593 = vmul.f32 %v477, %v477
  %v594 = vmul.f32 %v480, %v480
  %v595 = vmul.f32 %v485, %v485
  %v596 = vmul.f32 %v488, %v488
  %v597 = vmul.f32 %v493, %v493
  %v598 = vmul.f32 %v496, %v496
  %v599 = vmul.f32 %v501, %v501
  %v600 = vmul.f32 %v504, %v504
  %v601 = vmul.f32 %v509, %v509
  %v602 = vmul.f32 %v512, %v512
  %v603 = vmul.f32 %v517, %v517
  %v604 = vmul.f32 %v520, %v520
  %v605 = vmul.f32 %v525, %v525
  %v606 = vmul.f32 %v528, %v528
  %v607 = vmul.f32 %v533, %v533
  %v608 = vmul.f32 %v536, %v536
  %v609 = vsel %vm539, %v593, 0.0
  %v610 = vsel %vm539, %v594, 0.0
  %v611 = vadd.f32 %v609, %v610
  %v612 = vsel %vm539, %v595, 0.0
  %v613 = vadd.f32 %v611, %v612
  %v614 = vsel %vm539, %v596, 0.0
  %v615 = vadd.f32 %v613, %v614
  %v616 = vsel %vm539, %v597, 0.0
  %v617 = vadd.f32 %v615, %v616
  %v618 = vsel %vm539, %v598, 0.0
  %v619 = vadd.f32 %v617, %v618
  %v620 = vsel %vm539, %v599, 0.0
  %v621 = vadd.f32 %v619, %v620
  %v622 = vsel %vm539, %v600, 0.0
  %v623 = vadd.f32 %v621, %v622
  %v624 = vsel %vm539, %v601, 0.0
  %v625 = vadd.f32 %v623, %v624
  %v626 = vsel %vm539, %v602, 0.0
  %v627 = vadd.f32 %v625, %v626
  %v628 = vsel %vm539, %v603, 0.0
  %v629 = vadd.f32 %v627, %v628
  %v630 = vsel %vm539, %v604, 0.0
  %v631 = vadd.f32 %v629, %v630
  %v632 = vsel %vm539, %v605, 0.0
  %v633 = vadd.f32 %v631, %v632
  %v634 = vsel %vm539, %v606, 0.0
  %v635 = vadd.f32 %v633, %v634
  %v636 = vsel %vm539, %v607, 0.0
  %v637 = vadd.f32 %v635, %v636
  %v638 = vsel %vm539, %v608, 0.0
  %v639 = vadd.f32 %v637, %v638
  %v640 = vrot.slane %v639, 4
  %v641 = vadd.f32 %v639, %v640
  %v642 = vrot.slane %v641, 2
  %v643 = vadd.f32 %v641, %v642
  %v644 = vrot.slane %v643, 1
  %v645 = vadd.f32 %v643, %v644
  %vm646 = vcmask 1040384
  %v647 = vsel %vm646, %v592, %v645
  %vm648 = vcmask 517120
  %649 = vst.msk [vmem:[%s4] sm:$0x3] %vm648, %v647
  // Predicated region
  $region14: #{generator_forward.11} parent=0 // pred_check
    _
  $region15: #{generator_forward.11} parent=0 // pred_check_branch
    %651 = sbr.rel (0) target = $region17
  $region16: #{generator_forward.11} parent=0 // pred_region
    _
  $region17: #{generator_forward.11} parent=0 // pred_fallthru
    _
  // Predicated region
  $region18: #{generator_forward.11} parent=0 // pred_check
    _
  $region19: #{generator_forward.11} parent=0 // pred_check_branch
    %653 = sbr.rel (0) target = $region21
  $region20: #{generator_forward.11} parent=0 // pred_region
    _
  $region21: #{generator_forward.11} parent=0 // pred_fallthru
    _
  // Predicated region
  $region22: #{generator_forward.11} parent=0 // pred_check
    _
  $region23: #{generator_forward.11} parent=0 // pred_check_branch
    %655 = sbr.rel (0) target = $region25
  $region24: #{generator_forward.11} parent=0 // pred_region
    _
  $region25: #{generator_forward.11} parent=0 // pred_fallthru
    _
  // Predicated region
  $region26: #{generator_forward.11} parent=0 // pred_check
    _
  $region27: #{generator_forward.11} parent=0 // pred_check_branch
    %657 = sbr.rel (0) target = $region29
  $region28: #{generator_forward.11} parent=0 // pred_region
    _
  $region29: #{generator_forward.11} parent=0 // pred_fallthru
    _

// kernel: generator_forward.13
$region0: #{generator_forward.13}
  #allocation0 [shape = 'u32[]', space=smem, size = 0x4, offset = 0x4, fixed_abs, tag = 'smem constant byte address 0x4 - core index']
  #allocation1 [shape = 'u32[144,128]{1,0:T(1,128)}', space=vmem, size = 0x12000, scoped, tag = 'internal scratch']
  %s0 = inlined_call_operand.vmem [shape: bf16[512,16], index: 0, kind: input, shape index: {}]
  %s1 = inlined_call_operand.vmem [shape: bf16[16,16], index: 1, kind: input, shape index: {}]
  %s2 = inlined_call_operand.vmem [shape: f32[1,16], index: 2, kind: input, shape index: {}]
  %s3 = inlined_call_operand.vmem [shape: f32[512,16], index: 3, kind: output, shape index: {}]
  %s4 = sld [smem:[#allocation0]]
  $region45: #{generator_forward.13} parent=0
    _
  %s6 = ssub.s32 1, %s4
  %s7 = scalar_select 0, %s6, %s4
  loop: start=0, step=1, limit=4
  $region2: #{generator_forward.13} parent=0 // loop_pre_header
    _
  $region3: #{generator_forward.13} parent=0 // loop_header
    %s9 = sphi 0, %s13
    %p10 = scmp.ge.s32.totalorder %s9, 4
    %s19 = sphi 0, %s21
    %s22 = sphi 0, %s19
    %s23 = sphi 0, %s22
    %s39 = sphi 0, %s23
    %s43 = sphi 0, %s43
    %s45 = sphi 0, %s43
    %s46 = sphi 0, %s45
    %s60 = sphi 0, %s46
    %s64 = sphi 0, %s64
    %s66 = sphi 0, %s64
    %s67 = sphi 0, %s66
    %s81 = sphi 0, %s67
    %s87 = sphi 0, %s89
    %s90 = sphi 0, %s87
    %s91 = sphi 0, %s90
    %s107 = sphi 0, %s91
  $region4: #{generator_forward.13} parent=0 // loop_header_branch
    %12 = sbr.rel (%p10) target = $region8
  $region5: #{generator_forward.13} parent=0 // loop_body
    %s14 = ssub.s32 %s9, 1
    %s15 = ssub.s32 %s9, 2
    %s16 = sadd.s32 %s9, 1
    %s17 = ssub.s32 %s9, %s16
    %p18 = scmp.eq.s32.totalorder %s17, 0
    %s20 = sadd.s32 %s19, 1
    %s21 = scalar_select %p18, %s19, %s20
    %p24 = pneg %p18
    %p25 = scmp.eq.s32.totalorder %s9, 1
    %p26 = por %p24, %p25
    %p27 = scmp.ne.s32.totalorder %s19, %s22
    %p28 = scmp.eq.s32.totalorder %s9, 0
    %p29 = por %p27, %p28
    %p30 = scmp.ne.s32.totalorder %s19, %s22
    %p31 = scmp.eq.s32.totalorder %s14, 1
    %p32 = por %p30, %p31
    %p33 = scmp.ne.s32.totalorder %s22, %s23
    %p34 = scmp.eq.s32.totalorder %s14, 0
    %p35 = por %p33, %p34
    %p36 = scmp.ne.s32.totalorder %s22, %s23
    %p37 = scmp.eq.s32.totalorder %s15, 1
    %p38 = por %p36, %p37
    %p40 = scmp.ne.s32.totalorder %s23, %s39
    %p41 = scmp.eq.s32.totalorder %s15, 0
    %p42 = por %p40, %p41
    %s44 = sadd.s32 %s43, 1
    %p47 = scmp.eq.s32.totalorder %s9, 1
    %p48 = scmp.ne.s32.totalorder %s43, %s45
    %p49 = scmp.eq.s32.totalorder %s9, 0
    %p50 = por %p48, %p49
    %p51 = scmp.ne.s32.totalorder %s43, %s45
    %p52 = scmp.eq.s32.totalorder %s14, 1
    %p53 = por %p51, %p52
    %p54 = scmp.ne.s32.totalorder %s45, %s46
    %p55 = scmp.eq.s32.totalorder %s14, 0
    %p56 = por %p54, %p55
    %p57 = scmp.ne.s32.totalorder %s45, %s46
    %p58 = scmp.eq.s32.totalorder %s15, 1
    %p59 = por %p57, %p58
    %p61 = scmp.ne.s32.totalorder %s46, %s60
    %p62 = scmp.eq.s32.totalorder %s15, 0
    %p63 = por %p61, %p62
    %s65 = sadd.s32 %s64, 1
    %p68 = scmp.eq.s32.totalorder %s9, 1
    %p69 = scmp.ne.s32.totalorder %s64, %s66
    %p70 = scmp.eq.s32.totalorder %s9, 0
    %p71 = por %p69, %p70
    %p72 = scmp.ne.s32.totalorder %s64, %s66
    %p73 = scmp.eq.s32.totalorder %s14, 1
    %p74 = por %p72, %p73
    %p75 = scmp.ne.s32.totalorder %s66, %s67
    %p76 = scmp.eq.s32.totalorder %s14, 0
    %p77 = por %p75, %p76
    %p78 = scmp.ne.s32.totalorder %s66, %s67
    %p79 = scmp.eq.s32.totalorder %s15, 1
    %p80 = por %p78, %p79
    %p82 = scmp.ne.s32.totalorder %s67, %s81
    %p83 = scmp.eq.s32.totalorder %s15, 0
    %p84 = por %p82, %p83
    %s85 = ssub.s32 %s9, %s16
    %p86 = scmp.eq.s32.totalorder %s85, 0
    %s88 = sadd.s32 %s87, 1
    %s89 = scalar_select %p86, %s87, %s88
    %p92 = pneg %p86
    %p93 = scmp.eq.s32.totalorder %s9, 1
    %p94 = por %p92, %p93
    %p95 = scmp.ne.s32.totalorder %s87, %s90
    %p96 = scmp.eq.s32.totalorder %s9, 0
    %p97 = por %p95, %p96
    %p98 = scmp.ne.s32.totalorder %s87, %s90
    %p99 = scmp.eq.s32.totalorder %s14, 1
    %p100 = por %p98, %p99
    %p101 = scmp.ne.s32.totalorder %s90, %s91
    %p102 = scmp.eq.s32.totalorder %s14, 0
    %p103 = por %p101, %p102
    %p104 = scmp.ne.s32.totalorder %s90, %s91
    %p105 = scmp.eq.s32.totalorder %s15, 1
    %p106 = por %p104, %p105
    %p108 = scmp.ne.s32.totalorder %s91, %s107
    %p109 = scmp.eq.s32.totalorder %s15, 0
    %p110 = por %p108, %p109
    %p111 = scmp.le.s32.totalorder 1, %s9
    %p112 = scmp.lt.s32.totalorder %s9, 3
    %p113 = pnand %p111, %p112
    %p114 = pneg %p113
    // Predicated region
    $region9: #{generator_forward.13} parent=5 // pred_check
      _
    $region10: #{generator_forward.13} parent=5 // pred_check_branch
      %116 = sbr.rel (%p113) target = $region12
    $region11: #{generator_forward.13} parent=5 // pred_region
      %s117 = ssub.s32 %s9, 1
      // Predicated region
      $region13: #{generator_forward.13} parent=11 // pred_check
        %p118 = pneg %p56
      $region14: #{generator_forward.13} parent=11 // pred_check_branch
        %120 = sbr.rel (%p118) target = $region16
      $region15: #{generator_forward.13} parent=11 // pred_region
        _
      $region16: #{generator_forward.13} parent=11 // pred_fallthru
        _
      // Predicated region
      $region17: #{generator_forward.13} parent=11 // pred_check
        %p121 = pneg %p77
      $region18: #{generator_forward.13} parent=11 // pred_check_branch
        %123 = sbr.rel (%p121) target = $region20
      $region19: #{generator_forward.13} parent=11 // pred_region
        _
      $region20: #{generator_forward.13} parent=11 // pred_fallthru
        _
    $region12: #{generator_forward.13} parent=5 // pred_fallthru
      _
    %p124 = scmp.lt.s32.totalorder %s9, 2
    // Predicated region
    $region21: #{generator_forward.13} parent=5 // pred_check
      %p125 = pneg %p124
    $region22: #{generator_forward.13} parent=5 // pred_check_branch
      %127 = sbr.rel (%p125) target = $region24
    $region23: #{generator_forward.13} parent=5 // pred_region
      // Predicated region
      $region25: #{generator_forward.13} parent=23 // pred_check
        %p128 = pneg %p29
      $region26: #{generator_forward.13} parent=23 // pred_check_branch
        %130 = sbr.rel (%p128) target = $region28
      $region27: #{generator_forward.13} parent=23 // pred_region
        %s131 = smul.u32 32, %s9
        %p132 = scmp.lt.s32.totalorder %s131, 63
        %s133 = scalar_select %p132, %s131, 63
        %s134 = smul.addr %s133, 4
        %s135 = scalar_lea.vmem %s0, %s134
        %s136 = smul.u32 32, %s9
      $region28: #{generator_forward.13} parent=23 // pred_fallthru
        _
    $region24: #{generator_forward.13} parent=5 // pred_fallthru
      _
    %p137 = scmp.le.s32.totalorder 1, %s9
    %p138 = scmp.lt.s32.totalorder %s9, 3
    %p139 = pnand %p137, %p138
    %p140 = pneg %p139
    // Predicated region
    $region29: #{generator_forward.13} parent=5 // pred_check
      _
    $region30: #{generator_forward.13} parent=5 // pred_check_branch
      %142 = sbr.rel (%p139) target = $region32
    $region31: #{generator_forward.13} parent=5 // pred_region
      %s143 = ssub.s32 %s9, 1
      %s144 = smul.u32 32, %s14
      %p145 = scmp.lt.s32.totalorder %s144, 63
      %s146 = scalar_select %p145, %s144, 63
      %s147 = smul.addr %s146, 4
      %s148 = scalar_lea.vmem %s0, %s147
      %p149 = pneg %p35
      %p150 = pneg %p32
      %p151 = pneg %p56
      %p152 = pneg %p53
      %p153 = pneg %p77
      %p154 = pneg %p74
      %p155 = pneg %p103
      %p156 = pneg %p100
      %s157 = smul.u32 32, %s14
      %p158 = scmp.lt.s32.totalorder %s157, 63
      %s159 = scalar_select %p158, %s157, 63
      %s160 = smul.addr %s159, 8
      %s161 = scalar_lea.vmem %s3, %s160
      %s162 = smul.u32 32, %s14
      %p163 = scmp.lt.s32.totalorder %s162, 63
      %s164 = scalar_select %p163, %s162, 63
      %s165 = smul.addr %s164, 4
      %s166 = scalar_lea.vmem %s0, %s165
      %s167 = smul.u32 32, %s14
      %s168 = smul.u32 32, %s14
      %p169 = scmp.lt.s32.totalorder %s168, 63
      %s170 = scalar_select %p169, %s168, 63
      %s171 = smul.addr %s170, 8
      %s172 = scalar_lea.vmem %s3, %s171
      %s173 = smul.u32 32, %s14
      %v175 = vld [vmem:[%s166] sm:$0xf]
      %v176 = vld [vmem:[%s166 + $0x4] sm:$0xf]
      %v177 = vld [vmem:[%s166 + $0x8] sm:$0xf]
      %v178 = vld [vmem:[%s166 + $0xc] sm:$0xf]
      %v179 = vld [vmem:[%s166 + $0x10] sm:$0xf]
      %v180 = vld [vmem:[%s166 + $0x14] sm:$0xf]
      %v181 = vld [vmem:[%s166 + $0x18] sm:$0xf]
      %v182 = vld [vmem:[%s166 + $0x1c] sm:$0xf]
      %v183 = vld [vmem:[%s166 + $0x20] sm:$0xf]
      %v184 = vld [vmem:[%s166 + $0x24] sm:$0xf]
      %v185 = vld [vmem:[%s166 + $0x28] sm:$0xf]
      %v186 = vld [vmem:[%s166 + $0x2c] sm:$0xf]
      %v187 = vld [vmem:[%s166 + $0x30] sm:$0xf]
      %v188 = vld [vmem:[%s166 + $0x34] sm:$0xf]
      %v189 = vld [vmem:[%s166 + $0x38] sm:$0xf]
      %v190 = vld [vmem:[%s166 + $0x3c] sm:$0xf]
      %v191 = vld [vmem:[%s166 + $0x40] sm:$0xf]
      %v192 = vld [vmem:[%s166 + $0x44] sm:$0xf]
      %v193 = vld [vmem:[%s166 + $0x48] sm:$0xf]
      %v194 = vld [vmem:[%s166 + $0x4c] sm:$0xf]
      %v195 = vld [vmem:[%s166 + $0x50] sm:$0xf]
      %v196 = vld [vmem:[%s166 + $0x54] sm:$0xf]
      %v197 = vld [vmem:[%s166 + $0x58] sm:$0xf]
      %v198 = vld [vmem:[%s166 + $0x5c] sm:$0xf]
      %v199 = vld [vmem:[%s166 + $0x60] sm:$0xf]
      %v200 = vld [vmem:[%s166 + $0x64] sm:$0xf]
      %v201 = vld [vmem:[%s166 + $0x68] sm:$0xf]
      %v202 = vld [vmem:[%s166 + $0x6c] sm:$0xf]
      %v203 = vld [vmem:[%s166 + $0x70] sm:$0xf]
      %v204 = vld [vmem:[%s166 + $0x74] sm:$0xf]
      %v205 = vld [vmem:[%s166 + $0x78] sm:$0xf]
      %v206 = vld [vmem:[%s166 + $0x7c] sm:$0xf]
      %v207 = vld [vmem:[%s1] sm:$0xf]
      %v208 = vld [vmem:[%s1 + $0x4] sm:$0xf]
      %v209 = vld [vmem:[%s2] sm:$0x1]
      %v211 = vlaneseq
      %v212 = vshrl.u32 %v211, 7
      %v213 = vsub.s32 0, %v212
      %v214 = vrot.slane %v209, %v213
      %v248 = vunpack.c.l.b16 %v175
      %v249 = vunpack.c.l.b16 %v176
      %v250 = vunpack.c.l.b16 %v177
      %v251 = vunpack.c.l.b16 %v178
      %v252 = vunpack.c.l.b16 %v179
      %v253 = vunpack.c.l.b16 %v180
      %v254 = vunpack.c.l.b16 %v181
      %v255 = vunpack.c.l.b16 %v182
      %v256 = vunpack.c.l.b16 %v183
      %v257 = vunpack.c.l.b16 %v184
      %v258 = vunpack.c.l.b16 %v185
      %v259 = vunpack.c.l.b16 %v186
      %v260 = vunpack.c.l.b16 %v187
      %v261 = vunpack.c.l.b16 %v188
      %v262 = vunpack.c.l.b16 %v189
      %v263 = vunpack.c.l.b16 %v190
      %v264 = vunpack.c.l.b16 %v191
      %v265 = vunpack.c.l.b16 %v192
      %v266 = vunpack.c.l.b16 %v193
      %v267 = vunpack.c.l.b16 %v194
      %v268 = vunpack.c.l.b16 %v195
      %v269 = vunpack.c.l.b16 %v196
      %v270 = vunpack.c.l.b16 %v197
      %v271 = vunpack.c.l.b16 %v198
      %v272 = vunpack.c.l.b16 %v199
      %v273 = vunpack.c.l.b16 %v200
      %v274 = vunpack.c.l.b16 %v201
      %v275 = vunpack.c.l.b16 %v202
      %v276 = vunpack.c.l.b16 %v203
      %v277 = vunpack.c.l.b16 %v204
      %v278 = vunpack.c.l.b16 %v205
      %v279 = vunpack.c.l.b16 %v206
      %v280 = vpack.c.b16 %v249, %v248
      %v281 = vpack.c.b16 %v251, %v250
      %v282 = vpack.c.b16 %v253, %v252
      %v283 = vpack.c.b16 %v255, %v254
      %v284 = vpack.c.b16 %v257, %v256
      %v285 = vpack.c.b16 %v259, %v258
      %v286 = vpack.c.b16 %v261, %v260
      %v287 = vpack.c.b16 %v263, %v262
      %v288 = vpack.c.b16 %v265, %v264
      %v289 = vpack.c.b16 %v267, %v266
      %v290 = vpack.c.b16 %v269, %v268
      %v291 = vpack.c.b16 %v271, %v270
      %v292 = vpack.c.b16 %v273, %v272
      %v293 = vpack.c.b16 %v275, %v274
      %v294 = vpack.c.b16 %v277, %v276
      %v295 = vpack.c.b16 %v279, %v278
      %v298 = vunpack.c.l.b16 %v207
      %v299 = vunpack.c.l.b16 %v208
      %v300 = vpack.c.b16 %v299, %v298
      %vm302 = vcmask 130048
      %v304 = vsel %vm302, %v280, 0
      %v307 = vsel %vm302, %v281, 0
      %v310 = vsel %vm302, %v282, 0
      %v313 = vsel %vm302, %v283, 0
      %v316 = vsel %vm302, %v284, 0
      %v319 = vsel %vm302, %v285, 0
      %v322 = vsel %vm302, %v286, 0
      %v325 = vsel %vm302, %v287, 0
      %v328 = vsel %vm302, %v288, 0
      %v331 = vsel %vm302, %v289, 0
      %v334 = vsel %vm302, %v290, 0
      %v337 = vsel %vm302, %v291, 0
      %v340 = vsel %vm302, %v292, 0
      %v343 = vsel %vm302, %v293, 0
      %v346 = vsel %vm302, %v294, 0
      %v349 = vsel %vm302, %v295, 0
      %351 = vmatprep.subr.bf16.mxu0 0
      %352 = vmatpush1.bf16.msra.mxu0 0
      %353 = vmatprep.subr.bf16.mxu0 0
      %354 = vmatpush1.bf16.msra.mxu0 0
      %355 = vmatprep.subr.bf16.mxu0 0
      %356 = vmatpush1.bf16.msra.mxu0 0
      %357 = vmatprep.subr.bf16.mxu0 0
      %358 = vmatpush1.bf16.msra.mxu0 0
      %359 = vmatprep.subr.bf16.mxu0 0
      %360 = vmatpush1.bf16.msra.mxu0 0
      %361 = vmatprep.subr.bf16.mxu0 0
      %362 = vmatpush1.bf16.msra.mxu0 0
      %363 = vmatprep.subr.bf16.mxu0 0
      %364 = vmatpush1.bf16.msra.mxu0 0
      %365 = vmatprep.subr.bf16.mxu0 0
      %366 = vmatpush1.bf16.msra.mxu0 %v300
      %367 = vmatprep.subr.bf16.mxu0 0
      %368 = vmatpush2.bf16.msra.mxu0 0
      %369 = vmatprep.subr.bf16.mxu0 0
      %370 = vmatpush2.bf16.msra.mxu0 0
      %371 = vmatprep.subr.bf16.mxu0 0
      %372 = vmatpush2.bf16.msra.mxu0 0
      %373 = vmatprep.subr.bf16.mxu0 0
      %374 = vmatpush2.bf16.msra.mxu0 0
      %375 = vmatprep.subr.bf16.mxu0 0
      %376 = vmatpush2.bf16.msra.mxu0 0
      %377 = vmatprep.subr.bf16.mxu0 0
      %378 = vmatpush2.bf16.msra.mxu0 0
      %379 = vmatprep.subr.bf16.mxu0 0
      %380 = vmatpush2.bf16.msra.mxu0 0
      %381 = vmatprep.subr.bf16.mxu0 0
      %382 = vmatpush2.bf16.msra.mxu0 0
      %383 = vmatprep.mubr.bf16.mxu0 0
      %384 = vmatmul.mubr.bf16.gmra.mxu0 %v304
      %v385 = vpop.f32.mrf.mxu0
      %v386 = vadd.f32 %v214, %v385
      %v387 = vpop.f32.mrf.mxu0
      %v388 = vpop.f32.mrf.mxu0
      %v389 = vadd.f32 %v214, %v388
      %v390 = vpop.f32.mrf.mxu0
      %391 = vmatprep.mubr.bf16.mxu0 0
      %392 = vmatmul.mubr.bf16.gmra.mxu0 %v307
      %v393 = vpop.f32.mrf.mxu0
      %v394 = vadd.f32 %v214, %v393
      %v395 = vpop.f32.mrf.mxu0
      %v396 = vpop.f32.mrf.mxu0
      %v397 = vadd.f32 %v214, %v396
      %v398 = vpop.f32.mrf.mxu0
      %399 = vmatprep.mubr.bf16.mxu0 0
      %400 = vmatmul.mubr.bf16.gmra.mxu0 %v310
      %v401 = vpop.f32.mrf.mxu0
      %v402 = vadd.f32 %v214, %v401
      %v403 = vpop.f32.mrf.mxu0
      %v404 = vpop.f32.mrf.mxu0
      %v405 = vadd.f32 %v214, %v404
      %v406 = vpop.f32.mrf.mxu0
      %407 = vmatprep.mubr.bf16.mxu0 0
      %408 = vmatmul.mubr.bf16.gmra.mxu0 %v313
      %v409 = vpop.f32.mrf.mxu0
      %v410 = vadd.f32 %v214, %v409
      %v411 = vpop.f32.mrf.mxu0
      %v412 = vpop.f32.mrf.mxu0
      %v413 = vadd.f32 %v214, %v412
      %v414 = vpop.f32.mrf.mxu0
      %415 = vmatprep.mubr.bf16.mxu0 0
      %416 = vmatmul.mubr.bf16.gmra.mxu0 %v316
      %v417 = vpop.f32.mrf.mxu0
      %v418 = vadd.f32 %v214, %v417
      %v419 = vpop.f32.mrf.mxu0
      %v420 = vpop.f32.mrf.mxu0
      %v421 = vadd.f32 %v214, %v420
      %v422 = vpop.f32.mrf.mxu0
      %423 = vmatprep.mubr.bf16.mxu0 0
      %424 = vmatmul.mubr.bf16.gmra.mxu0 %v319
      %v425 = vpop.f32.mrf.mxu0
      %v426 = vadd.f32 %v214, %v425
      %v427 = vpop.f32.mrf.mxu0
      %v428 = vpop.f32.mrf.mxu0
      %v429 = vadd.f32 %v214, %v428
      %v430 = vpop.f32.mrf.mxu0
      %431 = vmatprep.mubr.bf16.mxu0 0
      %432 = vmatmul.mubr.bf16.gmra.mxu0 %v322
      %v433 = vpop.f32.mrf.mxu0
      %v434 = vadd.f32 %v214, %v433
      %v435 = vpop.f32.mrf.mxu0
      %v436 = vpop.f32.mrf.mxu0
      %v437 = vadd.f32 %v214, %v436
      %v438 = vpop.f32.mrf.mxu0
      %439 = vmatprep.mubr.bf16.mxu0 0
      %440 = vmatmul.mubr.bf16.gmra.mxu0 %v325
      %v441 = vpop.f32.mrf.mxu0
      %v442 = vadd.f32 %v214, %v441
      %v443 = vpop.f32.mrf.mxu0
      %v444 = vpop.f32.mrf.mxu0
      %v445 = vadd.f32 %v214, %v444
      %v446 = vpop.f32.mrf.mxu0
      %447 = vmatprep.mubr.bf16.mxu0 0
      %448 = vmatmul.mubr.bf16.gmra.mxu0 %v328
      %v449 = vpop.f32.mrf.mxu0
      %v450 = vadd.f32 %v214, %v449
      %v451 = vpop.f32.mrf.mxu0
      %v452 = vpop.f32.mrf.mxu0
      %v453 = vadd.f32 %v214, %v452
      %v454 = vpop.f32.mrf.mxu0
      %455 = vmatprep.mubr.bf16.mxu0 0
      %456 = vmatmul.mubr.bf16.gmra.mxu0 %v331
      %v457 = vpop.f32.mrf.mxu0
      %v458 = vadd.f32 %v214, %v457
      %v459 = vpop.f32.mrf.mxu0
      %v460 = vpop.f32.mrf.mxu0
      %v461 = vadd.f32 %v214, %v460
      %v462 = vpop.f32.mrf.mxu0
      %463 = vmatprep.mubr.bf16.mxu0 0
      %464 = vmatmul.mubr.bf16.gmra.mxu0 %v334
      %v465 = vpop.f32.mrf.mxu0
      %v466 = vadd.f32 %v214, %v465
      %v467 = vpop.f32.mrf.mxu0
      %v468 = vpop.f32.mrf.mxu0
      %v469 = vadd.f32 %v214, %v468
      %v470 = vpop.f32.mrf.mxu0
      %471 = vmatprep.mubr.bf16.mxu0 0
      %472 = vmatmul.mubr.bf16.gmra.mxu0 %v337
      %v473 = vpop.f32.mrf.mxu0
      %v474 = vadd.f32 %v214, %v473
      %v475 = vpop.f32.mrf.mxu0
      %v476 = vpop.f32.mrf.mxu0
      %v477 = vadd.f32 %v214, %v476
      %v478 = vpop.f32.mrf.mxu0
      %479 = vmatprep.mubr.bf16.mxu0 0
      %480 = vmatmul.mubr.bf16.gmra.mxu0 %v340
      %v481 = vpop.f32.mrf.mxu0
      %v482 = vadd.f32 %v214, %v481
      %v483 = vpop.f32.mrf.mxu0
      %v484 = vpop.f32.mrf.mxu0
      %v485 = vadd.f32 %v214, %v484
      %v486 = vpop.f32.mrf.mxu0
      %487 = vmatprep.mubr.bf16.mxu0 0
      %488 = vmatmul.mubr.bf16.gmra.mxu0 %v343
      %v489 = vpop.f32.mrf.mxu0
      %v490 = vadd.f32 %v214, %v489
      %v491 = vpop.f32.mrf.mxu0
      %v492 = vpop.f32.mrf.mxu0
      %v493 = vadd.f32 %v214, %v492
      %v494 = vpop.f32.mrf.mxu0
      %495 = vmatprep.mubr.bf16.mxu0 0
      %496 = vmatmul.mubr.bf16.gmra.mxu0 %v346
      %v497 = vpop.f32.mrf.mxu0
      %v498 = vadd.f32 %v214, %v497
      %v499 = vpop.f32.mrf.mxu0
      %v500 = vpop.f32.mrf.mxu0
      %v501 = vadd.f32 %v214, %v500
      %v502 = vpop.f32.mrf.mxu0
      %503 = vmatprep.mubr.bf16.mxu0 0
      %504 = vmatmul.mubr.bf16.gmra.mxu0 %v349
      %v505 = vpop.f32.mrf.mxu0
      %v506 = vadd.f32 %v214, %v505
      %v507 = vpop.f32.mrf.mxu0
      %v508 = vpop.f32.mrf.mxu0
      %v509 = vadd.f32 %v214, %v508
      %v510 = vpop.f32.mrf.mxu0
      %511 = vdwg.mxu0
      %512 = vst.msk [vmem:[%s172] sm:$0xff] %vm302, %v386
      %513 = vst.msk [vmem:[%s172 + $0x8] sm:$0xff] %vm302, %v389
      %514 = vst.msk [vmem:[%s172 + $0x10] sm:$0xff] %vm302, %v394
      %515 = vst.msk [vmem:[%s172 + $0x18] sm:$0xff] %vm302, %v397
      %516 = vst.msk [vmem:[%s172 + $0x20] sm:$0xff] %vm302, %v402
      %517 = vst.msk [vmem:[%s172 + $0x28] sm:$0xff] %vm302, %v405
      %518 = vst.msk [vmem:[%s172 + $0x30] sm:$0xff] %vm302, %v410
      %519 = vst.msk [vmem:[%s172 + $0x38] sm:$0xff] %vm302, %v413
      %520 = vst.msk [vmem:[%s172 + $0x40] sm:$0xff] %vm302, %v418
      %521 = vst.msk [vmem:[%s172 + $0x48] sm:$0xff] %vm302, %v421
      %522 = vst.msk [vmem:[%s172 + $0x50] sm:$0xff] %vm302, %v426
      %523 = vst.msk [vmem:[%s172 + $0x58] sm:$0xff] %vm302, %v429
      %524 = vst.msk [vmem:[%s172 + $0x60] sm:$0xff] %vm302, %v434
      %525 = vst.msk [vmem:[%s172 + $0x68] sm:$0xff] %vm302, %v437
      %526 = vst.msk [vmem:[%s172 + $0x70] sm:$0xff] %vm302, %v442
      %527 = vst.msk [vmem:[%s172 + $0x78] sm:$0xff] %vm302, %v445
      %528 = vst.msk [vmem:[%s172 + $0x80] sm:$0xff] %vm302, %v450
      %529 = vst.msk [vmem:[%s172 + $0x88] sm:$0xff] %vm302, %v453
      %530 = vst.msk [vmem:[%s172 + $0x90] sm:$0xff] %vm302, %v458
      %531 = vst.msk [vmem:[%s172 + $0x98] sm:$0xff] %vm302, %v461
      %532 = vst.msk [vmem:[%s172 + $0xa0] sm:$0xff] %vm302, %v466
      %533 = vst.msk [vmem:[%s172 + $0xa8] sm:$0xff] %vm302, %v469
      %534 = vst.msk [vmem:[%s172 + $0xb0] sm:$0xff] %vm302, %v474
      %535 = vst.msk [vmem:[%s172 + $0xb8] sm:$0xff] %vm302, %v477
      %536 = vst.msk [vmem:[%s172 + $0xc0] sm:$0xff] %vm302, %v482
      %537 = vst.msk [vmem:[%s172 + $0xc8] sm:$0xff] %vm302, %v485
      %538 = vst.msk [vmem:[%s172 + $0xd0] sm:$0xff] %vm302, %v490
      %539 = vst.msk [vmem:[%s172 + $0xd8] sm:$0xff] %vm302, %v493
      %540 = vst.msk [vmem:[%s172 + $0xe0] sm:$0xff] %vm302, %v498
      %541 = vst.msk [vmem:[%s172 + $0xe8] sm:$0xff] %vm302, %v501
      %542 = vst.msk [vmem:[%s172 + $0xf0] sm:$0xff] %vm302, %v506
      %543 = vst.msk [vmem:[%s172 + $0xf8] sm:$0xff] %vm302, %v509
      %s544 = smul.u32 32, %s14
      %p545 = scmp.lt.s32.totalorder %s544, 63
      %s546 = scalar_select %p545, %s544, 63
      %s547 = smul.addr %s546, 8
      %s548 = scalar_lea.vmem %s3, %s547
      // Predicated region
      $region33: #{generator_forward.13} parent=31 // pred_check
        %p549 = pneg %p100
      $region34: #{generator_forward.13} parent=31 // pred_check_branch
        %551 = sbr.rel (%p549) target = $region36
      $region35: #{generator_forward.13} parent=31 // pred_region
        %s552 = smul.u32 32, %s14
      $region36: #{generator_forward.13} parent=31 // pred_fallthru
        _
    $region32: #{generator_forward.13} parent=5 // pred_fallthru
      _
    %p553 = scmp.le.s32.totalorder 2, %s9
    // Predicated region
    $region37: #{generator_forward.13} parent=5 // pred_check
      %p554 = pneg %p553
    $region38: #{generator_forward.13} parent=5 // pred_check_branch
      %556 = sbr.rel (%p554) target = $region40
    $region39: #{generator_forward.13} parent=5 // pred_region
      %s557 = ssub.s32 %s9, 2
      // Predicated region
      $region41: #{generator_forward.13} parent=39 // pred_check
        %p558 = pneg %p106
      $region42: #{generator_forward.13} parent=39 // pred_check_branch
        %560 = sbr.rel (%p558) target = $region44
      $region43: #{generator_forward.13} parent=39 // pred_region
        %s561 = smul.u32 32, %s15
        %p562 = scmp.lt.s32.totalorder %s561, 63
        %s563 = scalar_select %p562, %s561, 63
        %s564 = smul.addr %s563, 8
        %s565 = scalar_lea.vmem %s3, %s564
      $region44: #{generator_forward.13} parent=39 // pred_fallthru
        _
    $region40: #{generator_forward.13} parent=5 // pred_fallthru
      _
  $region6: #{generator_forward.13} parent=0 // loop_footer
    %s13 = sadd.s32 1, %s9
  $region7: #{generator_forward.13} parent=0 // loop_footer_branch
    %8 = sbr.rel target = $region3
  $region8: #{generator_forward.13} parent=0 // loop_exit
    _

</llo_original>
